<compile_context>
chip_gen: v5e
topology: v5e:2x2
jax: 0.10.0
libtpu: 0.0.40
codegen_flags: <defaults>
</compile_context>

<pallas_src>
import functools

import jax
import jax.numpy as jnp
from jax.experimental import pallas as pl
from jax.experimental.pallas import tpu as pltpu


def _recurrent_block_kernel(x_ref, w_ref, g_ref, bt_ref, m_ref, o_ref,
                            pad_ref, *, N, H, W, C, T, SH, eps):
    Hp, Wp = H + 2, W + 2
    Rp = N * Hp * Wp            # padded pixels (lane axis of every slab)
    R = N * H * W               # real (interior) pixels
    inv_r = 1.0 / R

    g = g_ref[...]              # [C, 1]  BN gamma
    bt = bt_ref[...]            # [C, 1]  BN beta
    mask = m_ref[...]           # [1, Rp] 1.0 on interior pixels, 0.0 on halo
    x = x_ref[...]              # [C, Rp] zero-padded, channels-first slab

    # One-time: zero the scratch lane-halos.  Tap reads issued for (masked)
    # halo output pixels land there; they must be finite (0 * NaN poisons the
    # BN sums), and the interior window is fully rewritten every conv.
    pad_ref[:, 0:SH] = jnp.zeros((C, SH), jnp.float32)
    pad_ref[:, SH + Rp:SH + Rp + SH] = jnp.zeros((C, SH), jnp.float32)

    # flat-pixel offsets of the 9 taps inside the padded slab
    offs = [(dy - 1) * Wp + (dx - 1) for dy in range(3) for dx in range(3)]

    def conv_bn_relu(inp):
        # Stage the input once (its own halo pixels are zero by construction,
        # the scratch halo columns stay zero from the one-time init above).
        pad_ref[:, SH:SH + Rp] = inp

        # 3x3 conv as 9 tap-shifted MXU dots accumulated in f32:
        #   acc[co, r] += sum_ci w[tap][co, ci] * pad[ci, r + off_tap]
        acc = jnp.dot(w_ref[0], pad_ref[:, SH + offs[0]:SH + offs[0] + Rp],
                      preferred_element_type=jnp.float32)        # [C, Rp]
        for tap in range(1, 9):
            off = offs[tap]
            acc = acc + jnp.dot(w_ref[tap],
                                pad_ref[:, SH + off:SH + off + Rp],
                                preferred_element_type=jnp.float32)
        # conv bias intentionally omitted: the batch-mean subtraction below
        # cancels any per-channel constant added to acc.

        # Training-mode BN fused to one scale+shift, then ReLU.
        am = acc * mask                                          # halo cols -> 0
        mean = jnp.sum(am, axis=1, keepdims=True) * inv_r        # [C, 1]
        ex2 = jnp.sum(am * am, axis=1, keepdims=True) * inv_r    # E[y^2] (f32)
        var = ex2 - mean * mean                                  # biased var
        scale = g * jax.lax.rsqrt(var + eps)
        shift = bt - mean * scale
        # final *mask keeps the halo pixels exactly zero for the next iteration
        return jnp.maximum(am * scale + shift, 0.0) * mask

    x1 = conv_bn_relu(x)
    for _ in range(T):
        x1 = conv_bn_relu(x + x1)
    o_ref[...] = x1


def recurrent_block(x_nchw, w, b, gamma, beta, *, t=2, eps=1e-5):
    """x_nchw: [N, C, H, W]; w: [Cout, Cin, 3, 3]; b, gamma, beta: [C].

    `b` is accepted for API parity but unused: under training-mode BatchNorm
    the conv bias is algebraically cancelled by the batch-mean subtraction.
    """
    del b
    N, C, H, W = x_nchw.shape
    Hp, Wp = H + 2, W + 2
    Rp = N * Hp * Wp
    # lane halo on each side of the pad scratch; >= max tap shift (Wp+1) and a
    # multiple of 128 so the interior window starts lane-aligned
    SH = ((Wp + 1 + 127) // 128) * 128

    # NCHW -> zero-padded channels-first slab [C, Rp] (SAME padding once)
    xs = jnp.pad(x_nchw.astype(jnp.float32), ((0, 0), (0, 0), (1, 1), (1, 1)))
    x2d = jnp.transpose(xs, (1, 0, 2, 3)).reshape(C, Rp)

    # interior-pixel mask [1, Rp]
    idx = jnp.arange(Rp)
    hp = (idx // Wp) % Hp
    wp = idx % Wp
    interior = (hp >= 1) & (hp <= H) & (wp >= 1) & (wp <= W)
    mask = interior.astype(jnp.float32)[None, :]

    # w[co, ci, dy, dx] -> per-tap matrices [9, Cout, Cin]
    w9 = jnp.transpose(w, (2, 3, 0, 1)).reshape(9, C, C).astype(jnp.float32)
    g2 = gamma.reshape(C, 1).astype(jnp.float32)
    bt2 = beta.reshape(C, 1).astype(jnp.float32)

    # VMEM budget sized from the actual working set (slabs + scratch + params)
    bpe = 4
    ws = (2 * C * Rp                      # x slab, output slab
          + Rp                            # mask
          + C * (Rp + 2 * SH)             # pad scratch
          + 9 * C * C + 2 * C) * bpe      # weights, BN params
    vmem_limit = int(min(100 * 1024 * 1024, max(16 * 1024 * 1024, 4 * ws)))

    kernel = functools.partial(_recurrent_block_kernel, N=N, H=H, W=W, C=C,
                               T=t, SH=SH, eps=eps)

    out2d = pl.pallas_call(
        kernel,
        out_shape=jax.ShapeDtypeStruct((C, Rp), jnp.float32),
        scratch_shapes=[
            pltpu.VMEM((C, Rp + 2 * SH), jnp.float32),   # padded input slab
        ],
        compiler_params=pltpu.CompilerParams(vmem_limit_bytes=vmem_limit),
    )(x2d, w9, g2, bt2, mask)

    # drop halos, back to NCHW
    out = out2d.reshape(C, N, Hp, Wp)[:, :, 1:1 + H, 1:1 + W]
    return jnp.transpose(out, (1, 0, 2, 3))


def _reference(x, w, b, gamma, beta, *, t=2, eps=1e-5):
    """Pure-JAX reference mirroring the PyTorch module (training-mode BN)."""
    def conv_bn_relu(inp):
        y = jax.lax.conv_general_dilated(
            inp, w, window_strides=(1, 1), padding="SAME",
            dimension_numbers=("NCHW", "OIHW", "NCHW"))
        y = y + b[None, :, None, None]
        mean = jnp.mean(y, axis=(0, 2, 3), keepdims=True)
        var = jnp.mean(jnp.square(y - mean), axis=(0, 2, 3), keepdims=True)
        y = (y - mean) * jax.lax.rsqrt(var + eps)
        y = y * gamma[None, :, None, None] + beta[None, :, None, None]
        return jnp.maximum(y, 0.0)

    x1 = conv_bn_relu(x)
    for _ in range(t):
        x1 = conv_bn_relu(x + x1)
    return x1


if __name__ == "__main__":
    N, C, H, W = 2, 4, 16, 16
    T = 2

    key = jax.random.PRNGKey(0)
    kx, kw, kb, kg, kbt = jax.random.split(key, 5)
    x = jax.random.normal(kx, (N, C, H, W), dtype=jnp.float32)
    w = 0.1 * jax.random.normal(kw, (C, C, 3, 3), dtype=jnp.float32)
    b = 0.1 * jax.random.normal(kb, (C,), dtype=jnp.float32)
    gamma = 1.0 + 0.1 * jax.random.normal(kg, (C,), dtype=jnp.float32)
    beta = 0.1 * jax.random.normal(kbt, (C,), dtype=jnp.float32)

    out = recurrent_block(x, w, b, gamma, beta, t=T)
    out = jax.block_until_ready(out)

    ref = jax.block_until_ready(_reference(x, w, b, gamma, beta, t=T))
    assert out.shape == (N, C, H, W)
    assert jnp.allclose(out, ref, atol=2e-3, rtol=2e-3), (
        float(jnp.max(jnp.abs(out - ref))))

    print("KERNEL_OK")
</pallas_src>

<mosaic_0001>
module attributes {stable_mosaic.version = 11 : i64} {
  func.func @_recurrent_block_kernel(%arg0: memref<4x648xf32, #tpu.memory_space<vmem>>, %arg1: memref<9x4x4xf32, #tpu.memory_space<vmem>>, %arg2: memref<4x1xf32, #tpu.memory_space<vmem>>, %arg3: memref<4x1xf32, #tpu.memory_space<vmem>>, %arg4: memref<1x648xf32, #tpu.memory_space<vmem>>, %arg5: memref<4x648xf32, #tpu.memory_space<vmem>>, %arg6: memref<4x904xf32, #tpu.memory_space<vmem>>) attributes {dimension_semantics = [], scalar_prefetch = 0 : i64, scratch_operands = 1 : i64, tpu.core_type = #tpu.core_type<tc>} {
    %c0 = arith.constant 0 : index
    %c0_0 = arith.constant 0 : index
    %0 = vector.load %arg2[%c0, %c0_0] : memref<4x1xf32, #tpu.memory_space<vmem>>, vector<4x1xf32>
    %c0_1 = arith.constant 0 : index
    %c0_2 = arith.constant 0 : index
    %1 = vector.load %arg3[%c0_1, %c0_2] : memref<4x1xf32, #tpu.memory_space<vmem>>, vector<4x1xf32>
    %c0_3 = arith.constant 0 : index
    %c0_4 = arith.constant 0 : index
    %2 = vector.load %arg4[%c0_3, %c0_4] : memref<1x648xf32, #tpu.memory_space<vmem>>, vector<1x648xf32>
    %c0_5 = arith.constant 0 : index
    %c0_6 = arith.constant 0 : index
    %3 = vector.load %arg0[%c0_5, %c0_6] : memref<4x648xf32, #tpu.memory_space<vmem>>, vector<4x648xf32>
    %cst = arith.constant 0.000000e+00 : f32
    %4 = vector.broadcast %cst : f32 to vector<4x128xf32>
    %c0_7 = arith.constant 0 : index
    %c0_8 = arith.constant 0 : index
    %5 = vector.load %arg6[%c0_7, %c0_8] : memref<4x904xf32, #tpu.memory_space<vmem>>, vector<4x128xf32>
    tpu.vector_store %arg6[%c0_7, %c0_8], %4 {strides = array<i32>} : memref<4x904xf32, #tpu.memory_space<vmem>>, vector<4x128xf32>,
    %cst_9 = arith.constant 0.000000e+00 : f32
    %6 = vector.broadcast %cst_9 : f32 to vector<4x128xf32>
    %c0_10 = arith.constant 0 : index
    %c776 = arith.constant 776 : index
    %7 = vector.load %arg6[%c0_10, %c776] : memref<4x904xf32, #tpu.memory_space<vmem>>, vector<4x128xf32>
    tpu.vector_store %arg6[%c0_10, %c776], %6 {strides = array<i32>} : memref<4x904xf32, #tpu.memory_space<vmem>>, vector<4x128xf32>,
    %c0_11 = arith.constant 0 : index
    %c128 = arith.constant 128 : index
    %8 = vector.load %arg6[%c0_11, %c128] : memref<4x904xf32, #tpu.memory_space<vmem>>, vector<4x648xf32>
    tpu.vector_store %arg6[%c0_11, %c128], %3 {strides = array<i32>} : memref<4x904xf32, #tpu.memory_space<vmem>>, vector<4x648xf32>,
    %c0_12 = arith.constant 0 : index
    %c0_13 = arith.constant 0 : index
    %c0_14 = arith.constant 0 : index
    %9 = vector.load %arg1[%c0_12, %c0_13, %c0_14] : memref<9x4x4xf32, #tpu.memory_space<vmem>>, vector<1x4x4xf32>
    %10 = vector.shape_cast %9 : vector<1x4x4xf32> to vector<4x4xf32>
    %c0_15 = arith.constant 0 : index
    %c109 = arith.constant 109 : index
    %11 = vector.load %arg6[%c0_15, %c109] : memref<4x904xf32, #tpu.memory_space<vmem>>, vector<4x648xf32>
    %cst_16 = arith.constant dense<0.000000e+00> : vector<4x648xf32>
    %12 = tpu.matmul %10, %11, %cst_16 {dimension_numbers = #tpu.dot_dimension_numbers<[1], [0], [0], [1], [0, 0, 1, 1], [], []>} : vector<4x4xf32>, vector<4x648xf32>, vector<4x648xf32> -> vector<4x648xf32>
    %c1 = arith.constant 1 : index
    %c0_17 = arith.constant 0 : index
    %c0_18 = arith.constant 0 : index
    %13 = vector.load %arg1[%c1, %c0_17, %c0_18] : memref<9x4x4xf32, #tpu.memory_space<vmem>>, vector<1x4x4xf32>
    %14 = vector.shape_cast %13 : vector<1x4x4xf32> to vector<4x4xf32>
    %c0_19 = arith.constant 0 : index
    %c110 = arith.constant 110 : index
    %15 = vector.load %arg6[%c0_19, %c110] : memref<4x904xf32, #tpu.memory_space<vmem>>, vector<4x648xf32>
    %cst_20 = arith.constant dense<0.000000e+00> : vector<4x648xf32>
    %16 = tpu.matmul %14, %15, %cst_20 {dimension_numbers = #tpu.dot_dimension_numbers<[1], [0], [0], [1], [0, 0, 1, 1], [], []>} : vector<4x4xf32>, vector<4x648xf32>, vector<4x648xf32> -> vector<4x648xf32>
    %17 = arith.addf %12, %16 : vector<4x648xf32>
    %c2 = arith.constant 2 : index
    %c0_21 = arith.constant 0 : index
    %c0_22 = arith.constant 0 : index
    %18 = vector.load %arg1[%c2, %c0_21, %c0_22] : memref<9x4x4xf32, #tpu.memory_space<vmem>>, vector<1x4x4xf32>
    %19 = vector.shape_cast %18 : vector<1x4x4xf32> to vector<4x4xf32>
    %c0_23 = arith.constant 0 : index
    %c111 = arith.constant 111 : index
    %20 = vector.load %arg6[%c0_23, %c111] : memref<4x904xf32, #tpu.memory_space<vmem>>, vector<4x648xf32>
    %cst_24 = arith.constant dense<0.000000e+00> : vector<4x648xf32>
    %21 = tpu.matmul %19, %20, %cst_24 {dimension_numbers = #tpu.dot_dimension_numbers<[1], [0], [0], [1], [0, 0, 1, 1], [], []>} : vector<4x4xf32>, vector<4x648xf32>, vector<4x648xf32> -> vector<4x648xf32>
    %22 = arith.addf %17, %21 : vector<4x648xf32>
    %c3 = arith.constant 3 : index
    %c0_25 = arith.constant 0 : index
    %c0_26 = arith.constant 0 : index
    %23 = vector.load %arg1[%c3, %c0_25, %c0_26] : memref<9x4x4xf32, #tpu.memory_space<vmem>>, vector<1x4x4xf32>
    %24 = vector.shape_cast %23 : vector<1x4x4xf32> to vector<4x4xf32>
    %c0_27 = arith.constant 0 : index
    %c127 = arith.constant 127 : index
    %25 = vector.load %arg6[%c0_27, %c127] : memref<4x904xf32, #tpu.memory_space<vmem>>, vector<4x648xf32>
    %cst_28 = arith.constant dense<0.000000e+00> : vector<4x648xf32>
    %26 = tpu.matmul %24, %25, %cst_28 {dimension_numbers = #tpu.dot_dimension_numbers<[1], [0], [0], [1], [0, 0, 1, 1], [], []>} : vector<4x4xf32>, vector<4x648xf32>, vector<4x648xf32> -> vector<4x648xf32>
    %27 = arith.addf %22, %26 : vector<4x648xf32>
    %c4 = arith.constant 4 : index
    %c0_29 = arith.constant 0 : index
    %c0_30 = arith.constant 0 : index
    %28 = vector.load %arg1[%c4, %c0_29, %c0_30] : memref<9x4x4xf32, #tpu.memory_space<vmem>>, vector<1x4x4xf32>
    %29 = vector.shape_cast %28 : vector<1x4x4xf32> to vector<4x4xf32>
    %c0_31 = arith.constant 0 : index
    %c128_32 = arith.constant 128 : index
    %30 = vector.load %arg6[%c0_31, %c128_32] : memref<4x904xf32, #tpu.memory_space<vmem>>, vector<4x648xf32>
    %cst_33 = arith.constant dense<0.000000e+00> : vector<4x648xf32>
    %31 = tpu.matmul %29, %30, %cst_33 {dimension_numbers = #tpu.dot_dimension_numbers<[1], [0], [0], [1], [0, 0, 1, 1], [], []>} : vector<4x4xf32>, vector<4x648xf32>, vector<4x648xf32> -> vector<4x648xf32>
    %32 = arith.addf %27, %31 : vector<4x648xf32>
    %c5 = arith.constant 5 : index
    %c0_34 = arith.constant 0 : index
    %c0_35 = arith.constant 0 : index
    %33 = vector.load %arg1[%c5, %c0_34, %c0_35] : memref<9x4x4xf32, #tpu.memory_space<vmem>>, vector<1x4x4xf32>
    %34 = vector.shape_cast %33 : vector<1x4x4xf32> to vector<4x4xf32>
    %c0_36 = arith.constant 0 : index
    %c129 = arith.constant 129 : index
    %35 = vector.load %arg6[%c0_36, %c129] : memref<4x904xf32, #tpu.memory_space<vmem>>, vector<4x648xf32>
    %cst_37 = arith.constant dense<0.000000e+00> : vector<4x648xf32>
    %36 = tpu.matmul %34, %35, %cst_37 {dimension_numbers = #tpu.dot_dimension_numbers<[1], [0], [0], [1], [0, 0, 1, 1], [], []>} : vector<4x4xf32>, vector<4x648xf32>, vector<4x648xf32> -> vector<4x648xf32>
    %37 = arith.addf %32, %36 : vector<4x648xf32>
    %c6 = arith.constant 6 : index
    %c0_38 = arith.constant 0 : index
    %c0_39 = arith.constant 0 : index
    %38 = vector.load %arg1[%c6, %c0_38, %c0_39] : memref<9x4x4xf32, #tpu.memory_space<vmem>>, vector<1x4x4xf32>
    %39 = vector.shape_cast %38 : vector<1x4x4xf32> to vector<4x4xf32>
    %c0_40 = arith.constant 0 : index
    %c145 = arith.constant 145 : index
    %40 = vector.load %arg6[%c0_40, %c145] : memref<4x904xf32, #tpu.memory_space<vmem>>, vector<4x648xf32>
    %cst_41 = arith.constant dense<0.000000e+00> : vector<4x648xf32>
    %41 = tpu.matmul %39, %40, %cst_41 {dimension_numbers = #tpu.dot_dimension_numbers<[1], [0], [0], [1], [0, 0, 1, 1], [], []>} : vector<4x4xf32>, vector<4x648xf32>, vector<4x648xf32> -> vector<4x648xf32>
    %42 = arith.addf %37, %41 : vector<4x648xf32>
    %c7 = arith.constant 7 : index
    %c0_42 = arith.constant 0 : index
    %c0_43 = arith.constant 0 : index
    %43 = vector.load %arg1[%c7, %c0_42, %c0_43] : memref<9x4x4xf32, #tpu.memory_space<vmem>>, vector<1x4x4xf32>
    %44 = vector.shape_cast %43 : vector<1x4x4xf32> to vector<4x4xf32>
    %c0_44 = arith.constant 0 : index
    %c146 = arith.constant 146 : index
    %45 = vector.load %arg6[%c0_44, %c146] : memref<4x904xf32, #tpu.memory_space<vmem>>, vector<4x648xf32>
    %cst_45 = arith.constant dense<0.000000e+00> : vector<4x648xf32>
    %46 = tpu.matmul %44, %45, %cst_45 {dimension_numbers = #tpu.dot_dimension_numbers<[1], [0], [0], [1], [0, 0, 1, 1], [], []>} : vector<4x4xf32>, vector<4x648xf32>, vector<4x648xf32> -> vector<4x648xf32>
    %47 = arith.addf %42, %46 : vector<4x648xf32>
    %c8 = arith.constant 8 : index
    %c0_46 = arith.constant 0 : index
    %c0_47 = arith.constant 0 : index
    %48 = vector.load %arg1[%c8, %c0_46, %c0_47] : memref<9x4x4xf32, #tpu.memory_space<vmem>>, vector<1x4x4xf32>
    %49 = vector.shape_cast %48 : vector<1x4x4xf32> to vector<4x4xf32>
    %c0_48 = arith.constant 0 : index
    %c147 = arith.constant 147 : index
    %50 = vector.load %arg6[%c0_48, %c147] : memref<4x904xf32, #tpu.memory_space<vmem>>, vector<4x648xf32>
    %cst_49 = arith.constant dense<0.000000e+00> : vector<4x648xf32>
    %51 = tpu.matmul %49, %50, %cst_49 {dimension_numbers = #tpu.dot_dimension_numbers<[1], [0], [0], [1], [0, 0, 1, 1], [], []>} : vector<4x4xf32>, vector<4x648xf32>, vector<4x648xf32> -> vector<4x648xf32>
    %52 = arith.addf %47, %51 : vector<4x648xf32>
    %53 = vector.broadcast %2 : vector<1x648xf32> to vector<4x648xf32>
    %54 = arith.mulf %52, %53 : vector<4x648xf32>
    %cst_50 = arith.constant dense<0.000000e+00> : vector<4xf32>
    %55 = vector.multi_reduction <add>, %54, %cst_50 [1] : vector<4x648xf32> to vector<4xf32>
    %56 = vector.shape_cast %55 : vector<4xf32> to vector<4x1xf32>
    %cst_51 = arith.constant 0.001953125 : f32
    %57 = vector.broadcast %cst_51 : f32 to vector<4x1xf32>
    %58 = arith.mulf %56, %57 : vector<4x1xf32>
    %59 = arith.mulf %54, %54 : vector<4x648xf32>
    %cst_52 = arith.constant dense<0.000000e+00> : vector<4xf32>
    %60 = vector.multi_reduction <add>, %59, %cst_52 [1] : vector<4x648xf32> to vector<4xf32>
    %61 = vector.shape_cast %60 : vector<4xf32> to vector<4x1xf32>
    %cst_53 = arith.constant 0.001953125 : f32
    %62 = vector.broadcast %cst_53 : f32 to vector<4x1xf32>
    %63 = arith.mulf %61, %62 : vector<4x1xf32>
    %64 = arith.mulf %58, %58 : vector<4x1xf32>
    %65 = arith.subf %63, %64 : vector<4x1xf32>
    %cst_54 = arith.constant 9.99999974E-6 : f32
    %66 = vector.broadcast %cst_54 : f32 to vector<4x1xf32>
    %67 = arith.addf %65, %66 : vector<4x1xf32>
    %68 = math.rsqrt %67 : vector<4x1xf32>
    %69 = arith.mulf %0, %68 : vector<4x1xf32>
    %70 = arith.mulf %58, %69 : vector<4x1xf32>
    %71 = arith.subf %1, %70 : vector<4x1xf32>
    %72 = vector.broadcast %69 : vector<4x1xf32> to vector<4x648xf32>
    %73 = arith.mulf %54, %72 : vector<4x648xf32>
    %74 = vector.broadcast %71 : vector<4x1xf32> to vector<4x648xf32>
    %75 = arith.addf %73, %74 : vector<4x648xf32>
    %cst_55 = arith.constant 0.000000e+00 : f32
    %76 = vector.broadcast %cst_55 : f32 to vector<4x648xf32>
    %77 = arith.maximumf %75, %76 : vector<4x648xf32>
    %78 = vector.broadcast %2 : vector<1x648xf32> to vector<4x648xf32>
    %79 = arith.mulf %77, %78 : vector<4x648xf32>
    %80 = arith.addf %3, %79 : vector<4x648xf32>
    %c0_56 = arith.constant 0 : index
    %c128_57 = arith.constant 128 : index
    %81 = vector.load %arg6[%c0_56, %c128_57] : memref<4x904xf32, #tpu.memory_space<vmem>>, vector<4x648xf32>
    tpu.vector_store %arg6[%c0_56, %c128_57], %80 {strides = array<i32>} : memref<4x904xf32, #tpu.memory_space<vmem>>, vector<4x648xf32>,
    %c0_58 = arith.constant 0 : index
    %c0_59 = arith.constant 0 : index
    %c0_60 = arith.constant 0 : index
    %82 = vector.load %arg1[%c0_58, %c0_59, %c0_60] : memref<9x4x4xf32, #tpu.memory_space<vmem>>, vector<1x4x4xf32>
    %83 = vector.shape_cast %82 : vector<1x4x4xf32> to vector<4x4xf32>
    %c0_61 = arith.constant 0 : index
    %c109_62 = arith.constant 109 : index
    %84 = vector.load %arg6[%c0_61, %c109_62] : memref<4x904xf32, #tpu.memory_space<vmem>>, vector<4x648xf32>
    %cst_63 = arith.constant dense<0.000000e+00> : vector<4x648xf32>
    %85 = tpu.matmul %83, %84, %cst_63 {dimension_numbers = #tpu.dot_dimension_numbers<[1], [0], [0], [1], [0, 0, 1, 1], [], []>} : vector<4x4xf32>, vector<4x648xf32>, vector<4x648xf32> -> vector<4x648xf32>
    %c1_64 = arith.constant 1 : index
    %c0_65 = arith.constant 0 : index
    %c0_66 = arith.constant 0 : index
    %86 = vector.load %arg1[%c1_64, %c0_65, %c0_66] : memref<9x4x4xf32, #tpu.memory_space<vmem>>, vector<1x4x4xf32>
    %87 = vector.shape_cast %86 : vector<1x4x4xf32> to vector<4x4xf32>
    %c0_67 = arith.constant 0 : index
    %c110_68 = arith.constant 110 : index
    %88 = vector.load %arg6[%c0_67, %c110_68] : memref<4x904xf32, #tpu.memory_space<vmem>>, vector<4x648xf32>
    %cst_69 = arith.constant dense<0.000000e+00> : vector<4x648xf32>
    %89 = tpu.matmul %87, %88, %cst_69 {dimension_numbers = #tpu.dot_dimension_numbers<[1], [0], [0], [1], [0, 0, 1, 1], [], []>} : vector<4x4xf32>, vector<4x648xf32>, vector<4x648xf32> -> vector<4x648xf32>
    %90 = arith.addf %85, %89 : vector<4x648xf32>
    %c2_70 = arith.constant 2 : index
    %c0_71 = arith.constant 0 : index
    %c0_72 = arith.constant 0 : index
    %91 = vector.load %arg1[%c2_70, %c0_71, %c0_72] : memref<9x4x4xf32, #tpu.memory_space<vmem>>, vector<1x4x4xf32>
    %92 = vector.shape_cast %91 : vector<1x4x4xf32> to vector<4x4xf32>
    %c0_73 = arith.constant 0 : index
    %c111_74 = arith.constant 111 : index
    %93 = vector.load %arg6[%c0_73, %c111_74] : memref<4x904xf32, #tpu.memory_space<vmem>>, vector<4x648xf32>
    %cst_75 = arith.constant dense<0.000000e+00> : vector<4x648xf32>
    %94 = tpu.matmul %92, %93, %cst_75 {dimension_numbers = #tpu.dot_dimension_numbers<[1], [0], [0], [1], [0, 0, 1, 1], [], []>} : vector<4x4xf32>, vector<4x648xf32>, vector<4x648xf32> -> vector<4x648xf32>
    %95 = arith.addf %90, %94 : vector<4x648xf32>
    %c3_76 = arith.constant 3 : index
    %c0_77 = arith.constant 0 : index
    %c0_78 = arith.constant 0 : index
    %96 = vector.load %arg1[%c3_76, %c0_77, %c0_78] : memref<9x4x4xf32, #tpu.memory_space<vmem>>, vector<1x4x4xf32>
    %97 = vector.shape_cast %96 : vector<1x4x4xf32> to vector<4x4xf32>
    %c0_79 = arith.constant 0 : index
    %c127_80 = arith.constant 127 : index
    %98 = vector.load %arg6[%c0_79, %c127_80] : memref<4x904xf32, #tpu.memory_space<vmem>>, vector<4x648xf32>
    %cst_81 = arith.constant dense<0.000000e+00> : vector<4x648xf32>
    %99 = tpu.matmul %97, %98, %cst_81 {dimension_numbers = #tpu.dot_dimension_numbers<[1], [0], [0], [1], [0, 0, 1, 1], [], []>} : vector<4x4xf32>, vector<4x648xf32>, vector<4x648xf32> -> vector<4x648xf32>
    %100 = arith.addf %95, %99 : vector<4x648xf32>
    %c4_82 = arith.constant 4 : index
    %c0_83 = arith.constant 0 : index
    %c0_84 = arith.constant 0 : index
    %101 = vector.load %arg1[%c4_82, %c0_83, %c0_84] : memref<9x4x4xf32, #tpu.memory_space<vmem>>, vector<1x4x4xf32>
    %102 = vector.shape_cast %101 : vector<1x4x4xf32> to vector<4x4xf32>
    %c0_85 = arith.constant 0 : index
    %c128_86 = arith.constant 128 : index
    %103 = vector.load %arg6[%c0_85, %c128_86] : memref<4x904xf32, #tpu.memory_space<vmem>>, vector<4x648xf32>
    %cst_87 = arith.constant dense<0.000000e+00> : vector<4x648xf32>
    %104 = tpu.matmul %102, %103, %cst_87 {dimension_numbers = #tpu.dot_dimension_numbers<[1], [0], [0], [1], [0, 0, 1, 1], [], []>} : vector<4x4xf32>, vector<4x648xf32>, vector<4x648xf32> -> vector<4x648xf32>
    %105 = arith.addf %100, %104 : vector<4x648xf32>
    %c5_88 = arith.constant 5 : index
    %c0_89 = arith.constant 0 : index
    %c0_90 = arith.constant 0 : index
    %106 = vector.load %arg1[%c5_88, %c0_89, %c0_90] : memref<9x4x4xf32, #tpu.memory_space<vmem>>, vector<1x4x4xf32>
    %107 = vector.shape_cast %106 : vector<1x4x4xf32> to vector<4x4xf32>
    %c0_91 = arith.constant 0 : index
    %c129_92 = arith.constant 129 : index
    %108 = vector.load %arg6[%c0_91, %c129_92] : memref<4x904xf32, #tpu.memory_space<vmem>>, vector<4x648xf32>
    %cst_93 = arith.constant dense<0.000000e+00> : vector<4x648xf32>
    %109 = tpu.matmul %107, %108, %cst_93 {dimension_numbers = #tpu.dot_dimension_numbers<[1], [0], [0], [1], [0, 0, 1, 1], [], []>} : vector<4x4xf32>, vector<4x648xf32>, vector<4x648xf32> -> vector<4x648xf32>
    %110 = arith.addf %105, %109 : vector<4x648xf32>
    %c6_94 = arith.constant 6 : index
    %c0_95 = arith.constant 0 : index
    %c0_96 = arith.constant 0 : index
    %111 = vector.load %arg1[%c6_94, %c0_95, %c0_96] : memref<9x4x4xf32, #tpu.memory_space<vmem>>, vector<1x4x4xf32>
    %112 = vector.shape_cast %111 : vector<1x4x4xf32> to vector<4x4xf32>
    %c0_97 = arith.constant 0 : index
    %c145_98 = arith.constant 145 : index
    %113 = vector.load %arg6[%c0_97, %c145_98] : memref<4x904xf32, #tpu.memory_space<vmem>>, vector<4x648xf32>
    %cst_99 = arith.constant dense<0.000000e+00> : vector<4x648xf32>
    %114 = tpu.matmul %112, %113, %cst_99 {dimension_numbers = #tpu.dot_dimension_numbers<[1], [0], [0], [1], [0, 0, 1, 1], [], []>} : vector<4x4xf32>, vector<4x648xf32>, vector<4x648xf32> -> vector<4x648xf32>
    %115 = arith.addf %110, %114 : vector<4x648xf32>
    %c7_100 = arith.constant 7 : index
    %c0_101 = arith.constant 0 : index
    %c0_102 = arith.constant 0 : index
    %116 = vector.load %arg1[%c7_100, %c0_101, %c0_102] : memref<9x4x4xf32, #tpu.memory_space<vmem>>, vector<1x4x4xf32>
    %117 = vector.shape_cast %116 : vector<1x4x4xf32> to vector<4x4xf32>
    %c0_103 = arith.constant 0 : index
    %c146_104 = arith.constant 146 : index
    %118 = vector.load %arg6[%c0_103, %c146_104] : memref<4x904xf32, #tpu.memory_space<vmem>>, vector<4x648xf32>
    %cst_105 = arith.constant dense<0.000000e+00> : vector<4x648xf32>
    %119 = tpu.matmul %117, %118, %cst_105 {dimension_numbers = #tpu.dot_dimension_numbers<[1], [0], [0], [1], [0, 0, 1, 1], [], []>} : vector<4x4xf32>, vector<4x648xf32>, vector<4x648xf32> -> vector<4x648xf32>
    %120 = arith.addf %115, %119 : vector<4x648xf32>
    %c8_106 = arith.constant 8 : index
    %c0_107 = arith.constant 0 : index
    %c0_108 = arith.constant 0 : index
    %121 = vector.load %arg1[%c8_106, %c0_107, %c0_108] : memref<9x4x4xf32, #tpu.memory_space<vmem>>, vector<1x4x4xf32>
    %122 = vector.shape_cast %121 : vector<1x4x4xf32> to vector<4x4xf32>
    %c0_109 = arith.constant 0 : index
    %c147_110 = arith.constant 147 : index
    %123 = vector.load %arg6[%c0_109, %c147_110] : memref<4x904xf32, #tpu.memory_space<vmem>>, vector<4x648xf32>
    %cst_111 = arith.constant dense<0.000000e+00> : vector<4x648xf32>
    %124 = tpu.matmul %122, %123, %cst_111 {dimension_numbers = #tpu.dot_dimension_numbers<[1], [0], [0], [1], [0, 0, 1, 1], [], []>} : vector<4x4xf32>, vector<4x648xf32>, vector<4x648xf32> -> vector<4x648xf32>
    %125 = arith.addf %120, %124 : vector<4x648xf32>
    %126 = vector.broadcast %2 : vector<1x648xf32> to vector<4x648xf32>
    %127 = arith.mulf %125, %126 : vector<4x648xf32>
    %cst_112 = arith.constant dense<0.000000e+00> : vector<4xf32>
    %128 = vector.multi_reduction <add>, %127, %cst_112 [1] : vector<4x648xf32> to vector<4xf32>
    %129 = vector.shape_cast %128 : vector<4xf32> to vector<4x1xf32>
    %cst_113 = arith.constant 0.001953125 : f32
    %130 = vector.broadcast %cst_113 : f32 to vector<4x1xf32>
    %131 = arith.mulf %129, %130 : vector<4x1xf32>
    %132 = arith.mulf %127, %127 : vector<4x648xf32>
    %cst_114 = arith.constant dense<0.000000e+00> : vector<4xf32>
    %133 = vector.multi_reduction <add>, %132, %cst_114 [1] : vector<4x648xf32> to vector<4xf32>
    %134 = vector.shape_cast %133 : vector<4xf32> to vector<4x1xf32>
    %cst_115 = arith.constant 0.001953125 : f32
    %135 = vector.broadcast %cst_115 : f32 to vector<4x1xf32>
    %136 = arith.mulf %134, %135 : vector<4x1xf32>
    %137 = arith.mulf %131, %131 : vector<4x1xf32>
    %138 = arith.subf %136, %137 : vector<4x1xf32>
    %cst_116 = arith.constant 9.99999974E-6 : f32
    %139 = vector.broadcast %cst_116 : f32 to vector<4x1xf32>
    %140 = arith.addf %138, %139 : vector<4x1xf32>
    %141 = math.rsqrt %140 : vector<4x1xf32>
    %142 = arith.mulf %0, %141 : vector<4x1xf32>
    %143 = arith.mulf %131, %142 : vector<4x1xf32>
    %144 = arith.subf %1, %143 : vector<4x1xf32>
    %145 = vector.broadcast %142 : vector<4x1xf32> to vector<4x648xf32>
    %146 = arith.mulf %127, %145 : vector<4x648xf32>
    %147 = vector.broadcast %144 : vector<4x1xf32> to vector<4x648xf32>
    %148 = arith.addf %146, %147 : vector<4x648xf32>
    %cst_117 = arith.constant 0.000000e+00 : f32
    %149 = vector.broadcast %cst_117 : f32 to vector<4x648xf32>
    %150 = arith.maximumf %148, %149 : vector<4x648xf32>
    %151 = vector.broadcast %2 : vector<1x648xf32> to vector<4x648xf32>
    %152 = arith.mulf %150, %151 : vector<4x648xf32>
    %153 = arith.addf %3, %152 : vector<4x648xf32>
    %c0_118 = arith.constant 0 : index
    %c128_119 = arith.constant 128 : index
    %154 = vector.load %arg6[%c0_118, %c128_119] : memref<4x904xf32, #tpu.memory_space<vmem>>, vector<4x648xf32>
    tpu.vector_store %arg6[%c0_118, %c128_119], %153 {strides = array<i32>} : memref<4x904xf32, #tpu.memory_space<vmem>>, vector<4x648xf32>,
    %c0_120 = arith.constant 0 : index
    %c0_121 = arith.constant 0 : index
    %c0_122 = arith.constant 0 : index
    %155 = vector.load %arg1[%c0_120, %c0_121, %c0_122] : memref<9x4x4xf32, #tpu.memory_space<vmem>>, vector<1x4x4xf32>
    %156 = vector.shape_cast %155 : vector<1x4x4xf32> to vector<4x4xf32>
    %c0_123 = arith.constant 0 : index
    %c109_124 = arith.constant 109 : index
    %157 = vector.load %arg6[%c0_123, %c109_124] : memref<4x904xf32, #tpu.memory_space<vmem>>, vector<4x648xf32>
    %cst_125 = arith.constant dense<0.000000e+00> : vector<4x648xf32>
    %158 = tpu.matmul %156, %157, %cst_125 {dimension_numbers = #tpu.dot_dimension_numbers<[1], [0], [0], [1], [0, 0, 1, 1], [], []>} : vector<4x4xf32>, vector<4x648xf32>, vector<4x648xf32> -> vector<4x648xf32>
    %c1_126 = arith.constant 1 : index
    %c0_127 = arith.constant 0 : index
    %c0_128 = arith.constant 0 : index
    %159 = vector.load %arg1[%c1_126, %c0_127, %c0_128] : memref<9x4x4xf32, #tpu.memory_space<vmem>>, vector<1x4x4xf32>
    %160 = vector.shape_cast %159 : vector<1x4x4xf32> to vector<4x4xf32>
    %c0_129 = arith.constant 0 : index
    %c110_130 = arith.constant 110 : index
    %161 = vector.load %arg6[%c0_129, %c110_130] : memref<4x904xf32, #tpu.memory_space<vmem>>, vector<4x648xf32>
    %cst_131 = arith.constant dense<0.000000e+00> : vector<4x648xf32>
    %162 = tpu.matmul %160, %161, %cst_131 {dimension_numbers = #tpu.dot_dimension_numbers<[1], [0], [0], [1], [0, 0, 1, 1], [], []>} : vector<4x4xf32>, vector<4x648xf32>, vector<4x648xf32> -> vector<4x648xf32>
    %163 = arith.addf %158, %162 : vector<4x648xf32>
    %c2_132 = arith.constant 2 : index
    %c0_133 = arith.constant 0 : index
    %c0_134 = arith.constant 0 : index
    %164 = vector.load %arg1[%c2_132, %c0_133, %c0_134] : memref<9x4x4xf32, #tpu.memory_space<vmem>>, vector<1x4x4xf32>
    %165 = vector.shape_cast %164 : vector<1x4x4xf32> to vector<4x4xf32>
    %c0_135 = arith.constant 0 : index
    %c111_136 = arith.constant 111 : index
    %166 = vector.load %arg6[%c0_135, %c111_136] : memref<4x904xf32, #tpu.memory_space<vmem>>, vector<4x648xf32>
    %cst_137 = arith.constant dense<0.000000e+00> : vector<4x648xf32>
    %167 = tpu.matmul %165, %166, %cst_137 {dimension_numbers = #tpu.dot_dimension_numbers<[1], [0], [0], [1], [0, 0, 1, 1], [], []>} : vector<4x4xf32>, vector<4x648xf32>, vector<4x648xf32> -> vector<4x648xf32>
    %168 = arith.addf %163, %167 : vector<4x648xf32>
    %c3_138 = arith.constant 3 : index
    %c0_139 = arith.constant 0 : index
    %c0_140 = arith.constant 0 : index
    %169 = vector.load %arg1[%c3_138, %c0_139, %c0_140] : memref<9x4x4xf32, #tpu.memory_space<vmem>>, vector<1x4x4xf32>
    %170 = vector.shape_cast %169 : vector<1x4x4xf32> to vector<4x4xf32>
    %c0_141 = arith.constant 0 : index
    %c127_142 = arith.constant 127 : index
    %171 = vector.load %arg6[%c0_141, %c127_142] : memref<4x904xf32, #tpu.memory_space<vmem>>, vector<4x648xf32>
    %cst_143 = arith.constant dense<0.000000e+00> : vector<4x648xf32>
    %172 = tpu.matmul %170, %171, %cst_143 {dimension_numbers = #tpu.dot_dimension_numbers<[1], [0], [0], [1], [0, 0, 1, 1], [], []>} : vector<4x4xf32>, vector<4x648xf32>, vector<4x648xf32> -> vector<4x648xf32>
    %173 = arith.addf %168, %172 : vector<4x648xf32>
    %c4_144 = arith.constant 4 : index
    %c0_145 = arith.constant 0 : index
    %c0_146 = arith.constant 0 : index
    %174 = vector.load %arg1[%c4_144, %c0_145, %c0_146] : memref<9x4x4xf32, #tpu.memory_space<vmem>>, vector<1x4x4xf32>
    %175 = vector.shape_cast %174 : vector<1x4x4xf32> to vector<4x4xf32>
    %c0_147 = arith.constant 0 : index
    %c128_148 = arith.constant 128 : index
    %176 = vector.load %arg6[%c0_147, %c128_148] : memref<4x904xf32, #tpu.memory_space<vmem>>, vector<4x648xf32>
    %cst_149 = arith.constant dense<0.000000e+00> : vector<4x648xf32>
    %177 = tpu.matmul %175, %176, %cst_149 {dimension_numbers = #tpu.dot_dimension_numbers<[1], [0], [0], [1], [0, 0, 1, 1], [], []>} : vector<4x4xf32>, vector<4x648xf32>, vector<4x648xf32> -> vector<4x648xf32>
    %178 = arith.addf %173, %177 : vector<4x648xf32>
    %c5_150 = arith.constant 5 : index
    %c0_151 = arith.constant 0 : index
    %c0_152 = arith.constant 0 : index
    %179 = vector.load %arg1[%c5_150, %c0_151, %c0_152] : memref<9x4x4xf32, #tpu.memory_space<vmem>>, vector<1x4x4xf32>
    %180 = vector.shape_cast %179 : vector<1x4x4xf32> to vector<4x4xf32>
    %c0_153 = arith.constant 0 : index
    %c129_154 = arith.constant 129 : index
    %181 = vector.load %arg6[%c0_153, %c129_154] : memref<4x904xf32, #tpu.memory_space<vmem>>, vector<4x648xf32>
    %cst_155 = arith.constant dense<0.000000e+00> : vector<4x648xf32>
    %182 = tpu.matmul %180, %181, %cst_155 {dimension_numbers = #tpu.dot_dimension_numbers<[1], [0], [0], [1], [0, 0, 1, 1], [], []>} : vector<4x4xf32>, vector<4x648xf32>, vector<4x648xf32> -> vector<4x648xf32>
    %183 = arith.addf %178, %182 : vector<4x648xf32>
    %c6_156 = arith.constant 6 : index
    %c0_157 = arith.constant 0 : index
    %c0_158 = arith.constant 0 : index
    %184 = vector.load %arg1[%c6_156, %c0_157, %c0_158] : memref<9x4x4xf32, #tpu.memory_space<vmem>>, vector<1x4x4xf32>
    %185 = vector.shape_cast %184 : vector<1x4x4xf32> to vector<4x4xf32>
    %c0_159 = arith.constant 0 : index
    %c145_160 = arith.constant 145 : index
    %186 = vector.load %arg6[%c0_159, %c145_160] : memref<4x904xf32, #tpu.memory_space<vmem>>, vector<4x648xf32>
    %cst_161 = arith.constant dense<0.000000e+00> : vector<4x648xf32>
    %187 = tpu.matmul %185, %186, %cst_161 {dimension_numbers = #tpu.dot_dimension_numbers<[1], [0], [0], [1], [0, 0, 1, 1], [], []>} : vector<4x4xf32>, vector<4x648xf32>, vector<4x648xf32> -> vector<4x648xf32>
    %188 = arith.addf %183, %187 : vector<4x648xf32>
    %c7_162 = arith.constant 7 : index
    %c0_163 = arith.constant 0 : index
    %c0_164 = arith.constant 0 : index
    %189 = vector.load %arg1[%c7_162, %c0_163, %c0_164] : memref<9x4x4xf32, #tpu.memory_space<vmem>>, vector<1x4x4xf32>
    %190 = vector.shape_cast %189 : vector<1x4x4xf32> to vector<4x4xf32>
    %c0_165 = arith.constant 0 : index
    %c146_166 = arith.constant 146 : index
    %191 = vector.load %arg6[%c0_165, %c146_166] : memref<4x904xf32, #tpu.memory_space<vmem>>, vector<4x648xf32>
    %cst_167 = arith.constant dense<0.000000e+00> : vector<4x648xf32>
    %192 = tpu.matmul %190, %191, %cst_167 {dimension_numbers = #tpu.dot_dimension_numbers<[1], [0], [0], [1], [0, 0, 1, 1], [], []>} : vector<4x4xf32>, vector<4x648xf32>, vector<4x648xf32> -> vector<4x648xf32>
    %193 = arith.addf %188, %192 : vector<4x648xf32>
    %c8_168 = arith.constant 8 : index
    %c0_169 = arith.constant 0 : index
    %c0_170 = arith.constant 0 : index
    %194 = vector.load %arg1[%c8_168, %c0_169, %c0_170] : memref<9x4x4xf32, #tpu.memory_space<vmem>>, vector<1x4x4xf32>
    %195 = vector.shape_cast %194 : vector<1x4x4xf32> to vector<4x4xf32>
    %c0_171 = arith.constant 0 : index
    %c147_172 = arith.constant 147 : index
    %196 = vector.load %arg6[%c0_171, %c147_172] : memref<4x904xf32, #tpu.memory_space<vmem>>, vector<4x648xf32>
    %cst_173 = arith.constant dense<0.000000e+00> : vector<4x648xf32>
    %197 = tpu.matmul %195, %196, %cst_173 {dimension_numbers = #tpu.dot_dimension_numbers<[1], [0], [0], [1], [0, 0, 1, 1], [], []>} : vector<4x4xf32>, vector<4x648xf32>, vector<4x648xf32> -> vector<4x648xf32>
    %198 = arith.addf %193, %197 : vector<4x648xf32>
    %199 = vector.broadcast %2 : vector<1x648xf32> to vector<4x648xf32>
    %200 = arith.mulf %198, %199 : vector<4x648xf32>
    %cst_174 = arith.constant dense<0.000000e+00> : vector<4xf32>
    %201 = vector.multi_reduction <add>, %200, %cst_174 [1] : vector<4x648xf32> to vector<4xf32>
    %202 = vector.shape_cast %201 : vector<4xf32> to vector<4x1xf32>
    %cst_175 = arith.constant 0.001953125 : f32
    %203 = vector.broadcast %cst_175 : f32 to vector<4x1xf32>
    %204 = arith.mulf %202, %203 : vector<4x1xf32>
    %205 = arith.mulf %200, %200 : vector<4x648xf32>
    %cst_176 = arith.constant dense<0.000000e+00> : vector<4xf32>
    %206 = vector.multi_reduction <add>, %205, %cst_176 [1] : vector<4x648xf32> to vector<4xf32>
    %207 = vector.shape_cast %206 : vector<4xf32> to vector<4x1xf32>
    %cst_177 = arith.constant 0.001953125 : f32
    %208 = vector.broadcast %cst_177 : f32 to vector<4x1xf32>
    %209 = arith.mulf %207, %208 : vector<4x1xf32>
    %210 = arith.mulf %204, %204 : vector<4x1xf32>
    %211 = arith.subf %209, %210 : vector<4x1xf32>
    %cst_178 = arith.constant 9.99999974E-6 : f32
    %212 = vector.broadcast %cst_178 : f32 to vector<4x1xf32>
    %213 = arith.addf %211, %212 : vector<4x1xf32>
    %214 = math.rsqrt %213 : vector<4x1xf32>
    %215 = arith.mulf %0, %214 : vector<4x1xf32>
    %216 = arith.mulf %204, %215 : vector<4x1xf32>
    %217 = arith.subf %1, %216 : vector<4x1xf32>
    %218 = vector.broadcast %215 : vector<4x1xf32> to vector<4x648xf32>
    %219 = arith.mulf %200, %218 : vector<4x648xf32>
    %220 = vector.broadcast %217 : vector<4x1xf32> to vector<4x648xf32>
    %221 = arith.addf %219, %220 : vector<4x648xf32>
    %cst_179 = arith.constant 0.000000e+00 : f32
    %222 = vector.broadcast %cst_179 : f32 to vector<4x648xf32>
    %223 = arith.maximumf %221, %222 : vector<4x648xf32>
    %224 = vector.broadcast %2 : vector<1x648xf32> to vector<4x648xf32>
    %225 = arith.mulf %223, %224 : vector<4x648xf32>
    %c0_180 = arith.constant 0 : index
    %c0_181 = arith.constant 0 : index
    %226 = vector.load %arg5[%c0_180, %c0_181] : memref<4x648xf32, #tpu.memory_space<vmem>>, vector<4x648xf32>
    tpu.vector_store %arg5[%c0_180, %c0_181], %225 {strides = array<i32>} : memref<4x648xf32, #tpu.memory_space<vmem>>, vector<4x648xf32>,
    return
  }
}

</mosaic_0001>

<llo_original>
// kernel: tpu_custom_call.1
$region0: #{tpu_custom_call.1}
  #allocation0 [shape = 'u32[]', space=smem, size = 0x4, offset = 0x4, fixed_abs, tag = 'smem constant byte address 0x4 - core index']
  #allocation1 [shape = 'u32[72,128]{1,0:T(1,128)}', space=vmem, size = 0x9000, scoped, tag = 'internal scratch']
  #allocation2 [shape = 'f32[4,904]{1,0:T(4,128)}', space=vmem, size = 0x4000, scoped, tag = 'scratch operand']
  %s0 = inlined_call_operand.vmem [shape: f32[4,648], index: 0, kind: input, shape index: {}]
  %s1 = inlined_call_operand.vmem [shape: f32[9,4,4], index: 1, kind: input, shape index: {}]
  %s2 = inlined_call_operand.vmem [shape: f32[4,1], index: 2, kind: input, shape index: {}]
  %s3 = inlined_call_operand.vmem [shape: f32[4,1], index: 3, kind: input, shape index: {}]
  %s4 = inlined_call_operand.vmem [shape: f32[1,648], index: 4, kind: input, shape index: {}]
  %s5 = inlined_call_operand.hbm [shape: f32[4,648], index: 5, kind: output, shape index: {}]
  %s6 = sld [smem:[#allocation0]]
  $region30: #{tpu_custom_call.1} parent=0
    _
  %s8 = ssub.s32 1, %s6
  %s9 = scalar_select 0, %s8, %s6
  $region1: #{tpu_custom_call.1} parent=0
    #allocation3 [shape = 'u8[12288]{0}', space=vmem, size = 0x3000, scoped, tag = 'output window, operand 0, single buffered']
    #allocation4 [shape = 's32[1]{0}', space=sflag, size = 0x4, scoped, tag = 'scoped memory for tpu_custom_call.1']
    %10 = vsyncpa [#allocation4], 0
    // Predicated region
    $region2: #{tpu_custom_call.1} parent=1 // pred_check
      _
    $region3: #{tpu_custom_call.1} parent=1 // pred_check_branch
      %12 = sbr.rel (0) target = $region5
    $region4: #{tpu_custom_call.1} parent=1 // pred_region
      _
    $region5: #{tpu_custom_call.1} parent=1 // pred_fallthru
      _
    // Predicated region
    $region6: #{tpu_custom_call.1} parent=1 // pred_check
      _
    $region7: #{tpu_custom_call.1} parent=1 // pred_check_branch
      %14 = sbr.rel (0) target = $region9
    $region8: #{tpu_custom_call.1} parent=1 // pred_region
      _
    $region9: #{tpu_custom_call.1} parent=1 // pred_fallthru
      _
    // Predicated region
    $region10: #{tpu_custom_call.1} parent=1 // pred_check
      _
    $region11: #{tpu_custom_call.1} parent=1 // pred_check_branch
      %16 = sbr.rel (0) target = $region13
    $region12: #{tpu_custom_call.1} parent=1 // pred_region
      _
    $region13: #{tpu_custom_call.1} parent=1 // pred_fallthru
      _
    // Predicated region
    $region14: #{tpu_custom_call.1} parent=1 // pred_check
      _
    $region15: #{tpu_custom_call.1} parent=1 // pred_check_branch
      %18 = sbr.rel (0) target = $region17
    $region16: #{tpu_custom_call.1} parent=1 // pred_region
      _
    $region17: #{tpu_custom_call.1} parent=1 // pred_fallthru
      _
    // Predicated region
    $region18: #{tpu_custom_call.1} parent=1 // pred_check
      _
    $region19: #{tpu_custom_call.1} parent=1 // pred_check_branch
      %20 = sbr.rel (0) target = $region21
    $region20: #{tpu_custom_call.1} parent=1 // pred_region
      _
    $region21: #{tpu_custom_call.1} parent=1 // pred_fallthru
      _
    %v21 = vld [vmem:[%s2] sm:$0xf]
    %v22 = vld [vmem:[%s3] sm:$0xf]
    %v23 = vld [vmem:[%s4] sm:$0x3f]
    %v24 = vld [vmem:[%s0] sm:$0xff]
    %v25 = vld [vmem:[%s0 + $0x8] sm:$0xff]
    %v26 = vld [vmem:[%s0 + $0x10] sm:$0xff]
    %27 = vst [vmem:[#allocation2] sm:$0xf] 0.0
    %vm28 = vcmask 1043520
    %vm29 = vcmask 64516
    %vm30 = vmor %vm29, %vm28
    %31 = vst.msk [vmem:[#allocation2 + $0x18] sm:$0xff] %vm30, 0.0
    %32 = vst [vmem:[#allocation2 + $0x4] sm:$0xff] %v24
    %33 = vst [vmem:[#allocation2 + $0xc] sm:$0xff] %v25
    %vm34 = vcmask 1043456
    %vm35 = vmor %vm29, %vm34
    %36 = vst.msk [vmem:[#allocation2 + $0x14] sm:$0xff] %vm35, %v26
    %v37 = vld [vmem:[%s1] sm:$0xf]
    %v38 = vld [vmem:[#allocation2] sm:$0xff]
    %v39 = vld [vmem:[#allocation2 + $0x8] sm:$0xff]
    %v40 = vld [vmem:[#allocation2 + $0x10] sm:$0xff]
    %s41 = scalar_lea.vmem %s1, 4
    %v42 = vld [vmem:[%s41] sm:$0xf]
    %46 = vst [vmem:[#allocation1] ss:$2 sm:$0xff] %v38
    %s47 = scalar_lea.vmem [#allocation1], 16
    %48 = vst [vmem:[%s47] ss:$2 sm:$0xff] %v39
    %s49 = scalar_lea.vmem [#allocation1], 32
    %50 = vst [vmem:[%s49] ss:$2 sm:$0xff] %v40
    %v51 = vld.sshfl [vmem:[#allocation1] sm:$0xff pattern:$0x75316420]
    %v52 = vld.sshfl [vmem:[#allocation1 + $0x8] sm:$0xff pattern:$0x75316420]
    %v53 = vld.sshfl [vmem:[#allocation1 + $0x10] sm:$0xff pattern:$0x75316420]
    %v54 = vld.sshfl [vmem:[#allocation1 + $0x18] sm:$0xff pattern:$0x75316420]
    %v55 = vld.sshfl [vmem:[#allocation1 + $0x20] sm:$0xff pattern:$0x75316420]
    %v56 = vld.sshfl [vmem:[#allocation1 + $0x28] sm:$0xff pattern:$0x75316420]
    %57 = vrot.lane.b32.xlu0 %v51, 18
    %v58 = vpop.permute.xlu0 %57
    %59 = vrot.lane.b32.xlu0 %v52, 18
    %v60 = vpop.permute.xlu0 %59
    %61 = vrot.lane.b32.xlu0 %v53, 18
    %v62 = vpop.permute.xlu0 %61
    %63 = vrot.lane.b32.xlu0 %v54, 18
    %v64 = vpop.permute.xlu0 %63
    %65 = vrot.lane.b32.xlu0 %v55, 18
    %v66 = vpop.permute.xlu0 %65
    %67 = vrot.lane.b32.xlu0 %v56, 18
    %v68 = vpop.permute.xlu0 %67
    %vm69 = vcmask 146432
    %v70 = vsel %vm69, %v58, %v60
    %v71 = vsel %vm69, %v60, %v62
    %v72 = vsel %vm69, %v62, %v64
    %v73 = vsel %vm69, %v64, %v66
    %v74 = vsel %vm69, %v66, %v68
    %vm75 = vcmask 31744
    %v77 = vsel %vm75, %v42, 0
    %v79 = vsel %vm34, %v70, 0
    %v81 = vsel %vm34, %v71, 0
    %v83 = vsel %vm34, %v72, 0
    %v85 = vsel %vm34, %v73, 0
    %v87 = vsel %vm34, %v74, 0
    %v89 = vsel %vm34, %v68, 0
    %91 = vmatpush.msra.mxu0 0.0
    %92 = vmatpush.msra.mxu0 0.0
    %93 = vmatpush.msra.mxu0 0.0
    %94 = vmatpush.msra.mxu0 0.0
    %95 = vmatpush.msra.mxu0 0.0
    %96 = vmatpush.msra.mxu0 0.0
    %97 = vmatpush.msra.mxu0 0.0
    %98 = vmatpush.msra.mxu0 0.0
    %99 = vmatpush.msra.mxu0 0.0
    %100 = vmatpush.msra.mxu0 0.0
    %101 = vmatpush.msra.mxu0 0.0
    %102 = vmatpush.msra.mxu0 0.0
    %103 = vmatpush.msra.mxu0 0.0
    %104 = vmatpush.msra.mxu0 0.0
    %105 = vmatpush.msra.mxu0 0.0
    %106 = vmatpush.msra.mxu0 %v79
    %107 = vmatmul.f32.gmra.mxu0 %v77
    %v108 = vpop.f32.mrf.mxu0
    %v109 = vadd.f32 0.0, %v108
    %110 = vdwg.mxu0
    %111 = vmatpush.msra.mxu0 0.0
    %112 = vmatpush.msra.mxu0 0.0
    %113 = vmatpush.msra.mxu0 0.0
    %114 = vmatpush.msra.mxu0 0.0
    %115 = vmatpush.msra.mxu0 0.0
    %116 = vmatpush.msra.mxu0 0.0
    %117 = vmatpush.msra.mxu0 0.0
    %118 = vmatpush.msra.mxu0 0.0
    %119 = vmatpush.msra.mxu0 0.0
    %120 = vmatpush.msra.mxu0 0.0
    %121 = vmatpush.msra.mxu0 0.0
    %122 = vmatpush.msra.mxu0 0.0
    %123 = vmatpush.msra.mxu0 0.0
    %124 = vmatpush.msra.mxu0 0.0
    %125 = vmatpush.msra.mxu0 0.0
    %126 = vmatpush.msra.mxu0 %v81
    %127 = vmatmul.f32.gmra.mxu0 %v77
    %v128 = vpop.f32.mrf.mxu0
    %v129 = vadd.f32 0.0, %v128
    %130 = vdwg.mxu0
    %131 = vmatpush.msra.mxu0 0.0
    %132 = vmatpush.msra.mxu0 0.0
    %133 = vmatpush.msra.mxu0 0.0
    %134 = vmatpush.msra.mxu0 0.0
    %135 = vmatpush.msra.mxu0 0.0
    %136 = vmatpush.msra.mxu0 0.0
    %137 = vmatpush.msra.mxu0 0.0
    %138 = vmatpush.msra.mxu0 0.0
    %139 = vmatpush.msra.mxu0 0.0
    %140 = vmatpush.msra.mxu0 0.0
    %141 = vmatpush.msra.mxu0 0.0
    %142 = vmatpush.msra.mxu0 0.0
    %143 = vmatpush.msra.mxu0 0.0
    %144 = vmatpush.msra.mxu0 0.0
    %145 = vmatpush.msra.mxu0 0.0
    %146 = vmatpush.msra.mxu0 %v83
    %147 = vmatmul.f32.gmra.mxu0 %v77
    %v148 = vpop.f32.mrf.mxu0
    %v149 = vadd.f32 0.0, %v148
    %150 = vdwg.mxu0
    %151 = vmatpush.msra.mxu0 0.0
    %152 = vmatpush.msra.mxu0 0.0
    %153 = vmatpush.msra.mxu0 0.0
    %154 = vmatpush.msra.mxu0 0.0
    %155 = vmatpush.msra.mxu0 0.0
    %156 = vmatpush.msra.mxu0 0.0
    %157 = vmatpush.msra.mxu0 0.0
    %158 = vmatpush.msra.mxu0 0.0
    %159 = vmatpush.msra.mxu0 0.0
    %160 = vmatpush.msra.mxu0 0.0
    %161 = vmatpush.msra.mxu0 0.0
    %162 = vmatpush.msra.mxu0 0.0
    %163 = vmatpush.msra.mxu0 0.0
    %164 = vmatpush.msra.mxu0 0.0
    %165 = vmatpush.msra.mxu0 0.0
    %166 = vmatpush.msra.mxu0 %v85
    %167 = vmatmul.f32.gmra.mxu0 %v77
    %v168 = vpop.f32.mrf.mxu0
    %v169 = vadd.f32 0.0, %v168
    %170 = vdwg.mxu0
    %171 = vmatpush.msra.mxu0 0.0
    %172 = vmatpush.msra.mxu0 0.0
    %173 = vmatpush.msra.mxu0 0.0
    %174 = vmatpush.msra.mxu0 0.0
    %175 = vmatpush.msra.mxu0 0.0
    %176 = vmatpush.msra.mxu0 0.0
    %177 = vmatpush.msra.mxu0 0.0
    %178 = vmatpush.msra.mxu0 0.0
    %179 = vmatpush.msra.mxu0 0.0
    %180 = vmatpush.msra.mxu0 0.0
    %181 = vmatpush.msra.mxu0 0.0
    %182 = vmatpush.msra.mxu0 0.0
    %183 = vmatpush.msra.mxu0 0.0
    %184 = vmatpush.msra.mxu0 0.0
    %185 = vmatpush.msra.mxu0 0.0
    %186 = vmatpush.msra.mxu0 %v87
    %187 = vmatmul.f32.gmra.mxu0 %v77
    %v188 = vpop.f32.mrf.mxu0
    %v189 = vadd.f32 0.0, %v188
    %190 = vdwg.mxu0
    %191 = vmatpush.msra.mxu0 0.0
    %192 = vmatpush.msra.mxu0 0.0
    %193 = vmatpush.msra.mxu0 0.0
    %194 = vmatpush.msra.mxu0 0.0
    %195 = vmatpush.msra.mxu0 0.0
    %196 = vmatpush.msra.mxu0 0.0
    %197 = vmatpush.msra.mxu0 0.0
    %198 = vmatpush.msra.mxu0 0.0
    %199 = vmatpush.msra.mxu0 0.0
    %200 = vmatpush.msra.mxu0 0.0
    %201 = vmatpush.msra.mxu0 0.0
    %202 = vmatpush.msra.mxu0 0.0
    %203 = vmatpush.msra.mxu0 0.0
    %204 = vmatpush.msra.mxu0 0.0
    %205 = vmatpush.msra.mxu0 0.0
    %206 = vmatpush.msra.mxu0 %v89
    %207 = vmatmul.f32.gmra.mxu0 %v77
    %v208 = vpop.f32.mrf.mxu0
    %v209 = vadd.f32 0.0, %v208
    %210 = vdwg.mxu0
    %211 = vst [vmem:[#allocation1] ss:$2 sm:$0xff] %v38
    %s212 = scalar_lea.vmem [#allocation1], 16
    %213 = vst [vmem:[%s212] ss:$2 sm:$0xff] %v39
    %s214 = scalar_lea.vmem [#allocation1], 32
    %215 = vst [vmem:[%s214] ss:$2 sm:$0xff] %v40
    %v216 = vld.sshfl [vmem:[#allocation1] sm:$0xff pattern:$0x75316420]
    %v217 = vld.sshfl [vmem:[#allocation1 + $0x8] sm:$0xff pattern:$0x75316420]
    %v218 = vld.sshfl [vmem:[#allocation1 + $0x10] sm:$0xff pattern:$0x75316420]
    %v219 = vld.sshfl [vmem:[#allocation1 + $0x18] sm:$0xff pattern:$0x75316420]
    %v220 = vld.sshfl [vmem:[#allocation1 + $0x20] sm:$0xff pattern:$0x75316420]
    %v221 = vld.sshfl [vmem:[#allocation1 + $0x28] sm:$0xff pattern:$0x75316420]
    %222 = vrot.lane.b32.xlu0 %v216, 19
    %v223 = vpop.permute.xlu0 %222
    %224 = vrot.lane.b32.xlu0 %v217, 19
    %v225 = vpop.permute.xlu0 %224
    %226 = vrot.lane.b32.xlu0 %v218, 19
    %v227 = vpop.permute.xlu0 %226
    %228 = vrot.lane.b32.xlu0 %v219, 19
    %v229 = vpop.permute.xlu0 %228
    %230 = vrot.lane.b32.xlu0 %v220, 19
    %v231 = vpop.permute.xlu0 %230
    %232 = vrot.lane.b32.xlu0 %v221, 19
    %v233 = vpop.permute.xlu0 %232
    %vm234 = vcmask 154624
    %v235 = vsel %vm234, %v223, %v225
    %v236 = vsel %vm234, %v225, %v227
    %v237 = vsel %vm234, %v227, %v229
    %v238 = vsel %vm234, %v229, %v231
    %v239 = vsel %vm234, %v231, %v233
    %v241 = vsel %vm75, %v37, 0
    %v243 = vsel %vm34, %v235, 0
    %v245 = vsel %vm34, %v236, 0
    %v247 = vsel %vm34, %v237, 0
    %v249 = vsel %vm34, %v238, 0
    %v251 = vsel %vm34, %v239, 0
    %v253 = vsel %vm34, %v233, 0
    %255 = vmatpush.msra.mxu0 0.0
    %256 = vmatpush.msra.mxu0 0.0
    %257 = vmatpush.msra.mxu0 0.0
    %258 = vmatpush.msra.mxu0 0.0
    %259 = vmatpush.msra.mxu0 0.0
    %260 = vmatpush.msra.mxu0 0.0
    %261 = vmatpush.msra.mxu0 0.0
    %262 = vmatpush.msra.mxu0 0.0
    %263 = vmatpush.msra.mxu0 0.0
    %264 = vmatpush.msra.mxu0 0.0
    %265 = vmatpush.msra.mxu0 0.0
    %266 = vmatpush.msra.mxu0 0.0
    %267 = vmatpush.msra.mxu0 0.0
    %268 = vmatpush.msra.mxu0 0.0
    %269 = vmatpush.msra.mxu0 0.0
    %270 = vmatpush.msra.mxu0 %v243
    %271 = vmatmul.f32.gmra.mxu0 %v241
    %v272 = vpop.f32.mrf.mxu0
    %v273 = vadd.f32 %v109, %v272
    %274 = vdwg.mxu0
    %275 = vmatpush.msra.mxu0 0.0
    %276 = vmatpush.msra.mxu0 0.0
    %277 = vmatpush.msra.mxu0 0.0
    %278 = vmatpush.msra.mxu0 0.0
    %279 = vmatpush.msra.mxu0 0.0
    %280 = vmatpush.msra.mxu0 0.0
    %281 = vmatpush.msra.mxu0 0.0
    %282 = vmatpush.msra.mxu0 0.0
    %283 = vmatpush.msra.mxu0 0.0
    %284 = vmatpush.msra.mxu0 0.0
    %285 = vmatpush.msra.mxu0 0.0
    %286 = vmatpush.msra.mxu0 0.0
    %287 = vmatpush.msra.mxu0 0.0
    %288 = vmatpush.msra.mxu0 0.0
    %289 = vmatpush.msra.mxu0 0.0
    %290 = vmatpush.msra.mxu0 %v245
    %291 = vmatmul.f32.gmra.mxu0 %v241
    %v292 = vpop.f32.mrf.mxu0
    %v293 = vadd.f32 %v129, %v292
    %294 = vdwg.mxu0
    %295 = vmatpush.msra.mxu0 0.0
    %296 = vmatpush.msra.mxu0 0.0
    %297 = vmatpush.msra.mxu0 0.0
    %298 = vmatpush.msra.mxu0 0.0
    %299 = vmatpush.msra.mxu0 0.0
    %300 = vmatpush.msra.mxu0 0.0
    %301 = vmatpush.msra.mxu0 0.0
    %302 = vmatpush.msra.mxu0 0.0
    %303 = vmatpush.msra.mxu0 0.0
    %304 = vmatpush.msra.mxu0 0.0
    %305 = vmatpush.msra.mxu0 0.0
    %306 = vmatpush.msra.mxu0 0.0
    %307 = vmatpush.msra.mxu0 0.0
    %308 = vmatpush.msra.mxu0 0.0
    %309 = vmatpush.msra.mxu0 0.0
    %310 = vmatpush.msra.mxu0 %v247
    %311 = vmatmul.f32.gmra.mxu0 %v241
    %v312 = vpop.f32.mrf.mxu0
    %v313 = vadd.f32 %v149, %v312
    %314 = vdwg.mxu0
    %315 = vmatpush.msra.mxu0 0.0
    %316 = vmatpush.msra.mxu0 0.0
    %317 = vmatpush.msra.mxu0 0.0
    %318 = vmatpush.msra.mxu0 0.0
    %319 = vmatpush.msra.mxu0 0.0
    %320 = vmatpush.msra.mxu0 0.0
    %321 = vmatpush.msra.mxu0 0.0
    %322 = vmatpush.msra.mxu0 0.0
    %323 = vmatpush.msra.mxu0 0.0
    %324 = vmatpush.msra.mxu0 0.0
    %325 = vmatpush.msra.mxu0 0.0
    %326 = vmatpush.msra.mxu0 0.0
    %327 = vmatpush.msra.mxu0 0.0
    %328 = vmatpush.msra.mxu0 0.0
    %329 = vmatpush.msra.mxu0 0.0
    %330 = vmatpush.msra.mxu0 %v249
    %331 = vmatmul.f32.gmra.mxu0 %v241
    %v332 = vpop.f32.mrf.mxu0
    %v333 = vadd.f32 %v169, %v332
    %334 = vdwg.mxu0
    %335 = vmatpush.msra.mxu0 0.0
    %336 = vmatpush.msra.mxu0 0.0
    %337 = vmatpush.msra.mxu0 0.0
    %338 = vmatpush.msra.mxu0 0.0
    %339 = vmatpush.msra.mxu0 0.0
    %340 = vmatpush.msra.mxu0 0.0
    %341 = vmatpush.msra.mxu0 0.0
    %342 = vmatpush.msra.mxu0 0.0
    %343 = vmatpush.msra.mxu0 0.0
    %344 = vmatpush.msra.mxu0 0.0
    %345 = vmatpush.msra.mxu0 0.0
    %346 = vmatpush.msra.mxu0 0.0
    %347 = vmatpush.msra.mxu0 0.0
    %348 = vmatpush.msra.mxu0 0.0
    %349 = vmatpush.msra.mxu0 0.0
    %350 = vmatpush.msra.mxu0 %v251
    %351 = vmatmul.f32.gmra.mxu0 %v241
    %v352 = vpop.f32.mrf.mxu0
    %v353 = vadd.f32 %v189, %v352
    %354 = vdwg.mxu0
    %355 = vmatpush.msra.mxu0 0.0
    %356 = vmatpush.msra.mxu0 0.0
    %357 = vmatpush.msra.mxu0 0.0
    %358 = vmatpush.msra.mxu0 0.0
    %359 = vmatpush.msra.mxu0 0.0
    %360 = vmatpush.msra.mxu0 0.0
    %361 = vmatpush.msra.mxu0 0.0
    %362 = vmatpush.msra.mxu0 0.0
    %363 = vmatpush.msra.mxu0 0.0
    %364 = vmatpush.msra.mxu0 0.0
    %365 = vmatpush.msra.mxu0 0.0
    %366 = vmatpush.msra.mxu0 0.0
    %367 = vmatpush.msra.mxu0 0.0
    %368 = vmatpush.msra.mxu0 0.0
    %369 = vmatpush.msra.mxu0 0.0
    %370 = vmatpush.msra.mxu0 %v253
    %371 = vmatmul.f32.gmra.mxu0 %v241
    %v372 = vpop.f32.mrf.mxu0
    %v373 = vadd.f32 %v209, %v372
    %374 = vdwg.mxu0
    %s375 = scalar_lea.vmem %s1, 8
    %v376 = vld [vmem:[%s375] sm:$0xf]
    %v377 = vld [vmem:[#allocation2] sm:$0xff]
    %v378 = vld [vmem:[#allocation2 + $0x8] sm:$0xff]
    %v379 = vld [vmem:[#allocation2 + $0x10] sm:$0xff]
    %383 = vst [vmem:[#allocation1] ss:$2 sm:$0xff] %v377
    %s384 = scalar_lea.vmem [#allocation1], 16
    %385 = vst [vmem:[%s384] ss:$2 sm:$0xff] %v378
    %s386 = scalar_lea.vmem [#allocation1], 32
    %387 = vst [vmem:[%s386] ss:$2 sm:$0xff] %v379
    %v388 = vld.sshfl [vmem:[#allocation1] sm:$0xff pattern:$0x75316420]
    %v389 = vld.sshfl [vmem:[#allocation1 + $0x8] sm:$0xff pattern:$0x75316420]
    %v390 = vld.sshfl [vmem:[#allocation1 + $0x10] sm:$0xff pattern:$0x75316420]
    %v391 = vld.sshfl [vmem:[#allocation1 + $0x18] sm:$0xff pattern:$0x75316420]
    %v392 = vld.sshfl [vmem:[#allocation1 + $0x20] sm:$0xff pattern:$0x75316420]
    %v393 = vld.sshfl [vmem:[#allocation1 + $0x28] sm:$0xff pattern:$0x75316420]
    %394 = vrot.lane.b32.xlu0 %v388, 17
    %v395 = vpop.permute.xlu0 %394
    %396 = vrot.lane.b32.xlu0 %v389, 17
    %v397 = vpop.permute.xlu0 %396
    %398 = vrot.lane.b32.xlu0 %v390, 17
    %v399 = vpop.permute.xlu0 %398
    %400 = vrot.lane.b32.xlu0 %v391, 17
    %v401 = vpop.permute.xlu0 %400
    %402 = vrot.lane.b32.xlu0 %v392, 17
    %v403 = vpop.permute.xlu0 %402
    %404 = vrot.lane.b32.xlu0 %v393, 17
    %v405 = vpop.permute.xlu0 %404
    %vm406 = vcmask 138240
    %v407 = vsel %vm406, %v395, %v397
    %v408 = vsel %vm406, %v397, %v399
    %v409 = vsel %vm406, %v399, %v401
    %v410 = vsel %vm406, %v401, %v403
    %v411 = vsel %vm406, %v403, %v405
    %v413 = vsel %vm75, %v376, 0
    %v415 = vsel %vm34, %v407, 0
    %v417 = vsel %vm34, %v408, 0
    %v419 = vsel %vm34, %v409, 0
    %v421 = vsel %vm34, %v410, 0
    %v423 = vsel %vm34, %v411, 0
    %v425 = vsel %vm34, %v405, 0
    %427 = vmatpush.msra.mxu0 0.0
    %428 = vmatpush.msra.mxu0 0.0
    %429 = vmatpush.msra.mxu0 0.0
    %430 = vmatpush.msra.mxu0 0.0
    %431 = vmatpush.msra.mxu0 0.0
    %432 = vmatpush.msra.mxu0 0.0
    %433 = vmatpush.msra.mxu0 0.0
    %434 = vmatpush.msra.mxu0 0.0
    %435 = vmatpush.msra.mxu0 0.0
    %436 = vmatpush.msra.mxu0 0.0
    %437 = vmatpush.msra.mxu0 0.0
    %438 = vmatpush.msra.mxu0 0.0
    %439 = vmatpush.msra.mxu0 0.0
    %440 = vmatpush.msra.mxu0 0.0
    %441 = vmatpush.msra.mxu0 0.0
    %442 = vmatpush.msra.mxu0 %v415
    %443 = vmatmul.f32.gmra.mxu0 %v413
    %v444 = vpop.f32.mrf.mxu0
    %v445 = vadd.f32 0.0, %v444
    %446 = vdwg.mxu0
    %447 = vmatpush.msra.mxu0 0.0
    %448 = vmatpush.msra.mxu0 0.0
    %449 = vmatpush.msra.mxu0 0.0
    %450 = vmatpush.msra.mxu0 0.0
    %451 = vmatpush.msra.mxu0 0.0
    %452 = vmatpush.msra.mxu0 0.0
    %453 = vmatpush.msra.mxu0 0.0
    %454 = vmatpush.msra.mxu0 0.0
    %455 = vmatpush.msra.mxu0 0.0
    %456 = vmatpush.msra.mxu0 0.0
    %457 = vmatpush.msra.mxu0 0.0
    %458 = vmatpush.msra.mxu0 0.0
    %459 = vmatpush.msra.mxu0 0.0
    %460 = vmatpush.msra.mxu0 0.0
    %461 = vmatpush.msra.mxu0 0.0
    %462 = vmatpush.msra.mxu0 %v417
    %463 = vmatmul.f32.gmra.mxu0 %v413
    %v464 = vpop.f32.mrf.mxu0
    %v465 = vadd.f32 0.0, %v464
    %466 = vdwg.mxu0
    %467 = vmatpush.msra.mxu0 0.0
    %468 = vmatpush.msra.mxu0 0.0
    %469 = vmatpush.msra.mxu0 0.0
    %470 = vmatpush.msra.mxu0 0.0
    %471 = vmatpush.msra.mxu0 0.0
    %472 = vmatpush.msra.mxu0 0.0
    %473 = vmatpush.msra.mxu0 0.0
    %474 = vmatpush.msra.mxu0 0.0
    %475 = vmatpush.msra.mxu0 0.0
    %476 = vmatpush.msra.mxu0 0.0
    %477 = vmatpush.msra.mxu0 0.0
    %478 = vmatpush.msra.mxu0 0.0
    %479 = vmatpush.msra.mxu0 0.0
    %480 = vmatpush.msra.mxu0 0.0
    %481 = vmatpush.msra.mxu0 0.0
    %482 = vmatpush.msra.mxu0 %v419
    %483 = vmatmul.f32.gmra.mxu0 %v413
    %v484 = vpop.f32.mrf.mxu0
    %v485 = vadd.f32 0.0, %v484
    %486 = vdwg.mxu0
    %487 = vmatpush.msra.mxu0 0.0
    %488 = vmatpush.msra.mxu0 0.0
    %489 = vmatpush.msra.mxu0 0.0
    %490 = vmatpush.msra.mxu0 0.0
    %491 = vmatpush.msra.mxu0 0.0
    %492 = vmatpush.msra.mxu0 0.0
    %493 = vmatpush.msra.mxu0 0.0
    %494 = vmatpush.msra.mxu0 0.0
    %495 = vmatpush.msra.mxu0 0.0
    %496 = vmatpush.msra.mxu0 0.0
    %497 = vmatpush.msra.mxu0 0.0
    %498 = vmatpush.msra.mxu0 0.0
    %499 = vmatpush.msra.mxu0 0.0
    %500 = vmatpush.msra.mxu0 0.0
    %501 = vmatpush.msra.mxu0 0.0
    %502 = vmatpush.msra.mxu0 %v421
    %503 = vmatmul.f32.gmra.mxu0 %v413
    %v504 = vpop.f32.mrf.mxu0
    %v505 = vadd.f32 0.0, %v504
    %506 = vdwg.mxu0
    %507 = vmatpush.msra.mxu0 0.0
    %508 = vmatpush.msra.mxu0 0.0
    %509 = vmatpush.msra.mxu0 0.0
    %510 = vmatpush.msra.mxu0 0.0
    %511 = vmatpush.msra.mxu0 0.0
    %512 = vmatpush.msra.mxu0 0.0
    %513 = vmatpush.msra.mxu0 0.0
    %514 = vmatpush.msra.mxu0 0.0
    %515 = vmatpush.msra.mxu0 0.0
    %516 = vmatpush.msra.mxu0 0.0
    %517 = vmatpush.msra.mxu0 0.0
    %518 = vmatpush.msra.mxu0 0.0
    %519 = vmatpush.msra.mxu0 0.0
    %520 = vmatpush.msra.mxu0 0.0
    %521 = vmatpush.msra.mxu0 0.0
    %522 = vmatpush.msra.mxu0 %v423
    %523 = vmatmul.f32.gmra.mxu0 %v413
    %v524 = vpop.f32.mrf.mxu0
    %v525 = vadd.f32 0.0, %v524
    %526 = vdwg.mxu0
    %527 = vmatpush.msra.mxu0 0.0
    %528 = vmatpush.msra.mxu0 0.0
    %529 = vmatpush.msra.mxu0 0.0
    %530 = vmatpush.msra.mxu0 0.0
    %531 = vmatpush.msra.mxu0 0.0
    %532 = vmatpush.msra.mxu0 0.0
    %533 = vmatpush.msra.mxu0 0.0
    %534 = vmatpush.msra.mxu0 0.0
    %535 = vmatpush.msra.mxu0 0.0
    %536 = vmatpush.msra.mxu0 0.0
    %537 = vmatpush.msra.mxu0 0.0
    %538 = vmatpush.msra.mxu0 0.0
    %539 = vmatpush.msra.mxu0 0.0
    %540 = vmatpush.msra.mxu0 0.0
    %541 = vmatpush.msra.mxu0 0.0
    %542 = vmatpush.msra.mxu0 %v425
    %543 = vmatmul.f32.gmra.mxu0 %v413
    %v544 = vpop.f32.mrf.mxu0
    %v545 = vadd.f32 0.0, %v544
    %546 = vdwg.mxu0
    %v547 = vadd.f32 %v273, %v445
    %v548 = vadd.f32 %v293, %v465
    %v549 = vadd.f32 %v313, %v485
    %v550 = vadd.f32 %v333, %v505
    %v551 = vadd.f32 %v353, %v525
    %v552 = vadd.f32 %v373, %v545
    %s553 = scalar_lea.vmem %s1, 12
    %v554 = vld [vmem:[%s553] sm:$0xf]
    %v555 = vld [vmem:[#allocation2] sm:$0xff]
    %v556 = vld [vmem:[#allocation2 + $0x8] sm:$0xff]
    %v557 = vld [vmem:[#allocation2 + $0x10] sm:$0xff]
    %v558 = vld [vmem:[#allocation2 + $0x18] sm:$0xf]
    %563 = vst [vmem:[#allocation1] ss:$2 sm:$0xff] %v555
    %s564 = scalar_lea.vmem [#allocation1], 16
    %565 = vst [vmem:[%s564] ss:$2 sm:$0xff] %v556
    %s566 = scalar_lea.vmem [#allocation1], 32
    %567 = vst [vmem:[%s566] ss:$2 sm:$0xff] %v557
    %s568 = scalar_lea.vmem [#allocation1], 48
    %569 = vst [vmem:[%s568] ss:$2 sm:$0xff] %v558
    %v570 = vld.sshfl [vmem:[#allocation1] sm:$0xff pattern:$0x75316420]
    %v571 = vld.sshfl [vmem:[#allocation1 + $0x8] sm:$0xff pattern:$0x75316420]
    %v572 = vld.sshfl [vmem:[#allocation1 + $0x10] sm:$0xff pattern:$0x75316420]
    %v573 = vld.sshfl [vmem:[#allocation1 + $0x18] sm:$0xff pattern:$0x75316420]
    %v574 = vld.sshfl [vmem:[#allocation1 + $0x20] sm:$0xff pattern:$0x75316420]
    %v575 = vld.sshfl [vmem:[#allocation1 + $0x28] sm:$0xff pattern:$0x75316420]
    %v576 = vld.sshfl [vmem:[#allocation1 + $0x30] sm:$0xff pattern:$0x75316420]
    %577 = vrot.lane.b32.xlu0 %v570, 1
    %v578 = vpop.permute.xlu0 %577
    %579 = vrot.lane.b32.xlu0 %v571, 1
    %v580 = vpop.permute.xlu0 %579
    %581 = vrot.lane.b32.xlu0 %v572, 1
    %v582 = vpop.permute.xlu0 %581
    %583 = vrot.lane.b32.xlu0 %v573, 1
    %v584 = vpop.permute.xlu0 %583
    %585 = vrot.lane.b32.xlu0 %v574, 1
    %v586 = vpop.permute.xlu0 %585
    %587 = vrot.lane.b32.xlu0 %v575, 1
    %v588 = vpop.permute.xlu0 %587
    %589 = vrot.lane.b32.xlu0 %v576, 1
    %v590 = vpop.permute.xlu0 %589
    %vm591 = vcmask 7168
    %v592 = vsel %vm591, %v578, %v580
    %v593 = vsel %vm591, %v580, %v582
    %v594 = vsel %vm591, %v582, %v584
    %v595 = vsel %vm591, %v584, %v586
    %v596 = vsel %vm591, %v586, %v588
    %v597 = vsel %vm591, %v588, %v590
    %v599 = vsel %vm75, %v554, 0
    %v601 = vsel %vm34, %v592, 0
    %v603 = vsel %vm34, %v593, 0
    %v605 = vsel %vm34, %v594, 0
    %v607 = vsel %vm34, %v595, 0
    %v609 = vsel %vm34, %v596, 0
    %v611 = vsel %vm34, %v597, 0
    %613 = vmatpush.msra.mxu0 0.0
    %614 = vmatpush.msra.mxu0 0.0
    %615 = vmatpush.msra.mxu0 0.0
    %616 = vmatpush.msra.mxu0 0.0
    %617 = vmatpush.msra.mxu0 0.0
    %618 = vmatpush.msra.mxu0 0.0
    %619 = vmatpush.msra.mxu0 0.0
    %620 = vmatpush.msra.mxu0 0.0
    %621 = vmatpush.msra.mxu0 0.0
    %622 = vmatpush.msra.mxu0 0.0
    %623 = vmatpush.msra.mxu0 0.0
    %624 = vmatpush.msra.mxu0 0.0
    %625 = vmatpush.msra.mxu0 0.0
    %626 = vmatpush.msra.mxu0 0.0
    %627 = vmatpush.msra.mxu0 0.0
    %628 = vmatpush.msra.mxu0 %v601
    %629 = vmatmul.f32.gmra.mxu0 %v599
    %v630 = vpop.f32.mrf.mxu0
    %v631 = vadd.f32 0.0, %v630
    %632 = vdwg.mxu0
    %633 = vmatpush.msra.mxu0 0.0
    %634 = vmatpush.msra.mxu0 0.0
    %635 = vmatpush.msra.mxu0 0.0
    %636 = vmatpush.msra.mxu0 0.0
    %637 = vmatpush.msra.mxu0 0.0
    %638 = vmatpush.msra.mxu0 0.0
    %639 = vmatpush.msra.mxu0 0.0
    %640 = vmatpush.msra.mxu0 0.0
    %641 = vmatpush.msra.mxu0 0.0
    %642 = vmatpush.msra.mxu0 0.0
    %643 = vmatpush.msra.mxu0 0.0
    %644 = vmatpush.msra.mxu0 0.0
    %645 = vmatpush.msra.mxu0 0.0
    %646 = vmatpush.msra.mxu0 0.0
    %647 = vmatpush.msra.mxu0 0.0
    %648 = vmatpush.msra.mxu0 %v603
    %649 = vmatmul.f32.gmra.mxu0 %v599
    %v650 = vpop.f32.mrf.mxu0
    %v651 = vadd.f32 0.0, %v650
    %652 = vdwg.mxu0
    %653 = vmatpush.msra.mxu0 0.0
    %654 = vmatpush.msra.mxu0 0.0
    %655 = vmatpush.msra.mxu0 0.0
    %656 = vmatpush.msra.mxu0 0.0
    %657 = vmatpush.msra.mxu0 0.0
    %658 = vmatpush.msra.mxu0 0.0
    %659 = vmatpush.msra.mxu0 0.0
    %660 = vmatpush.msra.mxu0 0.0
    %661 = vmatpush.msra.mxu0 0.0
    %662 = vmatpush.msra.mxu0 0.0
    %663 = vmatpush.msra.mxu0 0.0
    %664 = vmatpush.msra.mxu0 0.0
    %665 = vmatpush.msra.mxu0 0.0
    %666 = vmatpush.msra.mxu0 0.0
    %667 = vmatpush.msra.mxu0 0.0
    %668 = vmatpush.msra.mxu0 %v605
    %669 = vmatmul.f32.gmra.mxu0 %v599
    %v670 = vpop.f32.mrf.mxu0
    %v671 = vadd.f32 0.0, %v670
    %672 = vdwg.mxu0
    %673 = vmatpush.msra.mxu0 0.0
    %674 = vmatpush.msra.mxu0 0.0
    %675 = vmatpush.msra.mxu0 0.0
    %676 = vmatpush.msra.mxu0 0.0
    %677 = vmatpush.msra.mxu0 0.0
    %678 = vmatpush.msra.mxu0 0.0
    %679 = vmatpush.msra.mxu0 0.0
    %680 = vmatpush.msra.mxu0 0.0
    %681 = vmatpush.msra.mxu0 0.0
    %682 = vmatpush.msra.mxu0 0.0
    %683 = vmatpush.msra.mxu0 0.0
    %684 = vmatpush.msra.mxu0 0.0
    %685 = vmatpush.msra.mxu0 0.0
    %686 = vmatpush.msra.mxu0 0.0
    %687 = vmatpush.msra.mxu0 0.0
    %688 = vmatpush.msra.mxu0 %v607
    %689 = vmatmul.f32.gmra.mxu0 %v599
    %v690 = vpop.f32.mrf.mxu0
    %v691 = vadd.f32 0.0, %v690
    %692 = vdwg.mxu0
    %693 = vmatpush.msra.mxu0 0.0
    %694 = vmatpush.msra.mxu0 0.0
    %695 = vmatpush.msra.mxu0 0.0
    %696 = vmatpush.msra.mxu0 0.0
    %697 = vmatpush.msra.mxu0 0.0
    %698 = vmatpush.msra.mxu0 0.0
    %699 = vmatpush.msra.mxu0 0.0
    %700 = vmatpush.msra.mxu0 0.0
    %701 = vmatpush.msra.mxu0 0.0
    %702 = vmatpush.msra.mxu0 0.0
    %703 = vmatpush.msra.mxu0 0.0
    %704 = vmatpush.msra.mxu0 0.0
    %705 = vmatpush.msra.mxu0 0.0
    %706 = vmatpush.msra.mxu0 0.0
    %707 = vmatpush.msra.mxu0 0.0
    %708 = vmatpush.msra.mxu0 %v609
    %709 = vmatmul.f32.gmra.mxu0 %v599
    %v710 = vpop.f32.mrf.mxu0
    %v711 = vadd.f32 0.0, %v710
    %712 = vdwg.mxu0
    %713 = vmatpush.msra.mxu0 0.0
    %714 = vmatpush.msra.mxu0 0.0
    %715 = vmatpush.msra.mxu0 0.0
    %716 = vmatpush.msra.mxu0 0.0
    %717 = vmatpush.msra.mxu0 0.0
    %718 = vmatpush.msra.mxu0 0.0
    %719 = vmatpush.msra.mxu0 0.0
    %720 = vmatpush.msra.mxu0 0.0
    %721 = vmatpush.msra.mxu0 0.0
    %722 = vmatpush.msra.mxu0 0.0
    %723 = vmatpush.msra.mxu0 0.0
    %724 = vmatpush.msra.mxu0 0.0
    %725 = vmatpush.msra.mxu0 0.0
    %726 = vmatpush.msra.mxu0 0.0
    %727 = vmatpush.msra.mxu0 0.0
    %728 = vmatpush.msra.mxu0 %v611
    %729 = vmatmul.f32.gmra.mxu0 %v599
    %v730 = vpop.f32.mrf.mxu0
    %v731 = vadd.f32 0.0, %v730
    %732 = vdwg.mxu0
    %v733 = vadd.f32 %v547, %v631
    %v734 = vadd.f32 %v548, %v651
    %v735 = vadd.f32 %v549, %v671
    %v736 = vadd.f32 %v550, %v691
    %v737 = vadd.f32 %v551, %v711
    %v738 = vadd.f32 %v552, %v731
    %s739 = scalar_lea.vmem %s1, 16
    %v740 = vld [vmem:[%s739] sm:$0xf]
    %v741 = vld [vmem:[#allocation2 + $0x4] sm:$0xff]
    %v742 = vld [vmem:[#allocation2 + $0xc] sm:$0xff]
    %v743 = vld [vmem:[#allocation2 + $0x14] sm:$0xff]
    %747 = vst [vmem:[#allocation1] ss:$2 sm:$0xff] %v741
    %s748 = scalar_lea.vmem [#allocation1], 16
    %749 = vst [vmem:[%s748] ss:$2 sm:$0xff] %v742
    %s750 = scalar_lea.vmem [#allocation1], 32
    %751 = vst [vmem:[%s750] ss:$2 sm:$0xff] %v743
    %v752 = vld.sshfl [vmem:[#allocation1] sm:$0xff pattern:$0x75316420]
    %v753 = vld.sshfl [vmem:[#allocation1 + $0x8] sm:$0xff pattern:$0x75316420]
    %v754 = vld.sshfl [vmem:[#allocation1 + $0x10] sm:$0xff pattern:$0x75316420]
    %v755 = vld.sshfl [vmem:[#allocation1 + $0x18] sm:$0xff pattern:$0x75316420]
    %v756 = vld.sshfl [vmem:[#allocation1 + $0x20] sm:$0xff pattern:$0x75316420]
    %v757 = vld.sshfl [vmem:[#allocation1 + $0x28] sm:$0xff pattern:$0x75316420]
    %v759 = vsel %vm75, %v740, 0
    %v761 = vsel %vm34, %v752, 0
    %v763 = vsel %vm34, %v753, 0
    %v765 = vsel %vm34, %v754, 0
    %v767 = vsel %vm34, %v755, 0
    %v769 = vsel %vm34, %v756, 0
    %v771 = vsel %vm34, %v757, 0
    %773 = vmatpush.msra.mxu0 0.0
    %774 = vmatpush.msra.mxu0 0.0
    %775 = vmatpush.msra.mxu0 0.0
    %776 = vmatpush.msra.mxu0 0.0
    %777 = vmatpush.msra.mxu0 0.0
    %778 = vmatpush.msra.mxu0 0.0
    %779 = vmatpush.msra.mxu0 0.0
    %780 = vmatpush.msra.mxu0 0.0
    %781 = vmatpush.msra.mxu0 0.0
    %782 = vmatpush.msra.mxu0 0.0
    %783 = vmatpush.msra.mxu0 0.0
    %784 = vmatpush.msra.mxu0 0.0
    %785 = vmatpush.msra.mxu0 0.0
    %786 = vmatpush.msra.mxu0 0.0
    %787 = vmatpush.msra.mxu0 0.0
    %788 = vmatpush.msra.mxu0 %v761
    %789 = vmatmul.f32.gmra.mxu0 %v759
    %v790 = vpop.f32.mrf.mxu0
    %v791 = vadd.f32 0.0, %v790
    %792 = vdwg.mxu0
    %793 = vmatpush.msra.mxu0 0.0
    %794 = vmatpush.msra.mxu0 0.0
    %795 = vmatpush.msra.mxu0 0.0
    %796 = vmatpush.msra.mxu0 0.0
    %797 = vmatpush.msra.mxu0 0.0
    %798 = vmatpush.msra.mxu0 0.0
    %799 = vmatpush.msra.mxu0 0.0
    %800 = vmatpush.msra.mxu0 0.0
    %801 = vmatpush.msra.mxu0 0.0
    %802 = vmatpush.msra.mxu0 0.0
    %803 = vmatpush.msra.mxu0 0.0
    %804 = vmatpush.msra.mxu0 0.0
    %805 = vmatpush.msra.mxu0 0.0
    %806 = vmatpush.msra.mxu0 0.0
    %807 = vmatpush.msra.mxu0 0.0
    %808 = vmatpush.msra.mxu0 %v763
    %809 = vmatmul.f32.gmra.mxu0 %v759
    %v810 = vpop.f32.mrf.mxu0
    %v811 = vadd.f32 0.0, %v810
    %812 = vdwg.mxu0
    %813 = vmatpush.msra.mxu0 0.0
    %814 = vmatpush.msra.mxu0 0.0
    %815 = vmatpush.msra.mxu0 0.0
    %816 = vmatpush.msra.mxu0 0.0
    %817 = vmatpush.msra.mxu0 0.0
    %818 = vmatpush.msra.mxu0 0.0
    %819 = vmatpush.msra.mxu0 0.0
    %820 = vmatpush.msra.mxu0 0.0
    %821 = vmatpush.msra.mxu0 0.0
    %822 = vmatpush.msra.mxu0 0.0
    %823 = vmatpush.msra.mxu0 0.0
    %824 = vmatpush.msra.mxu0 0.0
    %825 = vmatpush.msra.mxu0 0.0
    %826 = vmatpush.msra.mxu0 0.0
    %827 = vmatpush.msra.mxu0 0.0
    %828 = vmatpush.msra.mxu0 %v765
    %829 = vmatmul.f32.gmra.mxu0 %v759
    %v830 = vpop.f32.mrf.mxu0
    %v831 = vadd.f32 0.0, %v830
    %832 = vdwg.mxu0
    %833 = vmatpush.msra.mxu0 0.0
    %834 = vmatpush.msra.mxu0 0.0
    %835 = vmatpush.msra.mxu0 0.0
    %836 = vmatpush.msra.mxu0 0.0
    %837 = vmatpush.msra.mxu0 0.0
    %838 = vmatpush.msra.mxu0 0.0
    %839 = vmatpush.msra.mxu0 0.0
    %840 = vmatpush.msra.mxu0 0.0
    %841 = vmatpush.msra.mxu0 0.0
    %842 = vmatpush.msra.mxu0 0.0
    %843 = vmatpush.msra.mxu0 0.0
    %844 = vmatpush.msra.mxu0 0.0
    %845 = vmatpush.msra.mxu0 0.0
    %846 = vmatpush.msra.mxu0 0.0
    %847 = vmatpush.msra.mxu0 0.0
    %848 = vmatpush.msra.mxu0 %v767
    %849 = vmatmul.f32.gmra.mxu0 %v759
    %v850 = vpop.f32.mrf.mxu0
    %v851 = vadd.f32 0.0, %v850
    %852 = vdwg.mxu0
    %853 = vmatpush.msra.mxu0 0.0
    %854 = vmatpush.msra.mxu0 0.0
    %855 = vmatpush.msra.mxu0 0.0
    %856 = vmatpush.msra.mxu0 0.0
    %857 = vmatpush.msra.mxu0 0.0
    %858 = vmatpush.msra.mxu0 0.0
    %859 = vmatpush.msra.mxu0 0.0
    %860 = vmatpush.msra.mxu0 0.0
    %861 = vmatpush.msra.mxu0 0.0
    %862 = vmatpush.msra.mxu0 0.0
    %863 = vmatpush.msra.mxu0 0.0
    %864 = vmatpush.msra.mxu0 0.0
    %865 = vmatpush.msra.mxu0 0.0
    %866 = vmatpush.msra.mxu0 0.0
    %867 = vmatpush.msra.mxu0 0.0
    %868 = vmatpush.msra.mxu0 %v769
    %869 = vmatmul.f32.gmra.mxu0 %v759
    %v870 = vpop.f32.mrf.mxu0
    %v871 = vadd.f32 0.0, %v870
    %872 = vdwg.mxu0
    %873 = vmatpush.msra.mxu0 0.0
    %874 = vmatpush.msra.mxu0 0.0
    %875 = vmatpush.msra.mxu0 0.0
    %876 = vmatpush.msra.mxu0 0.0
    %877 = vmatpush.msra.mxu0 0.0
    %878 = vmatpush.msra.mxu0 0.0
    %879 = vmatpush.msra.mxu0 0.0
    %880 = vmatpush.msra.mxu0 0.0
    %881 = vmatpush.msra.mxu0 0.0
    %882 = vmatpush.msra.mxu0 0.0
    %883 = vmatpush.msra.mxu0 0.0
    %884 = vmatpush.msra.mxu0 0.0
    %885 = vmatpush.msra.mxu0 0.0
    %886 = vmatpush.msra.mxu0 0.0
    %887 = vmatpush.msra.mxu0 0.0
    %888 = vmatpush.msra.mxu0 %v771
    %889 = vmatmul.f32.gmra.mxu0 %v759
    %v890 = vpop.f32.mrf.mxu0
    %v891 = vadd.f32 0.0, %v890
    %892 = vdwg.mxu0
    %v893 = vadd.f32 %v733, %v791
    %v894 = vadd.f32 %v734, %v811
    %v895 = vadd.f32 %v735, %v831
    %v896 = vadd.f32 %v736, %v851
    %v897 = vadd.f32 %v737, %v871
    %v898 = vadd.f32 %v738, %v891
    %s899 = scalar_lea.vmem %s1, 20
    %v900 = vld [vmem:[%s899] sm:$0xf]
    %v901 = vld [vmem:[#allocation2 + $0x4] sm:$0xff]
    %v902 = vld [vmem:[#allocation2 + $0xc] sm:$0xff]
    %v903 = vld [vmem:[#allocation2 + $0x14] sm:$0xff]
    %907 = vst [vmem:[#allocation1] ss:$2 sm:$0xff] %v901
    %s908 = scalar_lea.vmem [#allocation1], 16
    %909 = vst [vmem:[%s908] ss:$2 sm:$0xff] %v902
    %s910 = scalar_lea.vmem [#allocation1], 32
    %911 = vst [vmem:[%s910] ss:$2 sm:$0xff] %v903
    %v912 = vld.sshfl [vmem:[#allocation1] sm:$0xff pattern:$0x75316420]
    %v913 = vld.sshfl [vmem:[#allocation1 + $0x8] sm:$0xff pattern:$0x75316420]
    %v914 = vld.sshfl [vmem:[#allocation1 + $0x10] sm:$0xff pattern:$0x75316420]
    %v915 = vld.sshfl [vmem:[#allocation1 + $0x18] sm:$0xff pattern:$0x75316420]
    %v916 = vld.sshfl [vmem:[#allocation1 + $0x20] sm:$0xff pattern:$0x75316420]
    %v917 = vld.sshfl [vmem:[#allocation1 + $0x28] sm:$0xff pattern:$0x75316420]
    %918 = vrot.lane.b32.xlu0 %v912, 127
    %v919 = vpop.permute.xlu0 %918
    %920 = vrot.lane.b32.xlu0 %v913, 127
    %v921 = vpop.permute.xlu0 %920
    %922 = vrot.lane.b32.xlu0 %v914, 127
    %v923 = vpop.permute.xlu0 %922
    %924 = vrot.lane.b32.xlu0 %v915, 127
    %v925 = vpop.permute.xlu0 %924
    %926 = vrot.lane.b32.xlu0 %v916, 127
    %v927 = vpop.permute.xlu0 %926
    %928 = vrot.lane.b32.xlu0 %v917, 127
    %v929 = vpop.permute.xlu0 %928
    %vm930 = vcmask 1039360
    %v931 = vsel %vm930, %v919, %v921
    %v932 = vsel %vm930, %v921, %v923
    %v933 = vsel %vm930, %v923, %v925
    %v934 = vsel %vm930, %v925, %v927
    %v935 = vsel %vm930, %v927, %v929
    %v937 = vsel %vm75, %v900, 0
    %v939 = vsel %vm34, %v931, 0
    %v941 = vsel %vm34, %v932, 0
    %v943 = vsel %vm34, %v933, 0
    %v945 = vsel %vm34, %v934, 0
    %v947 = vsel %vm34, %v935, 0
    %v949 = vsel %vm34, %v929, 0
    %951 = vmatpush.msra.mxu0 0.0
    %952 = vmatpush.msra.mxu0 0.0
    %953 = vmatpush.msra.mxu0 0.0
    %954 = vmatpush.msra.mxu0 0.0
    %955 = vmatpush.msra.mxu0 0.0
    %956 = vmatpush.msra.mxu0 0.0
    %957 = vmatpush.msra.mxu0 0.0
    %958 = vmatpush.msra.mxu0 0.0
    %959 = vmatpush.msra.mxu0 0.0
    %960 = vmatpush.msra.mxu0 0.0
    %961 = vmatpush.msra.mxu0 0.0
    %962 = vmatpush.msra.mxu0 0.0
    %963 = vmatpush.msra.mxu0 0.0
    %964 = vmatpush.msra.mxu0 0.0
    %965 = vmatpush.msra.mxu0 0.0
    %966 = vmatpush.msra.mxu0 %v939
    %967 = vmatmul.f32.gmra.mxu0 %v937
    %v968 = vpop.f32.mrf.mxu0
    %v969 = vadd.f32 0.0, %v968
    %970 = vdwg.mxu0
    %971 = vmatpush.msra.mxu0 0.0
    %972 = vmatpush.msra.mxu0 0.0
    %973 = vmatpush.msra.mxu0 0.0
    %974 = vmatpush.msra.mxu0 0.0
    %975 = vmatpush.msra.mxu0 0.0
    %976 = vmatpush.msra.mxu0 0.0
    %977 = vmatpush.msra.mxu0 0.0
    %978 = vmatpush.msra.mxu0 0.0
    %979 = vmatpush.msra.mxu0 0.0
    %980 = vmatpush.msra.mxu0 0.0
    %981 = vmatpush.msra.mxu0 0.0
    %982 = vmatpush.msra.mxu0 0.0
    %983 = vmatpush.msra.mxu0 0.0
    %984 = vmatpush.msra.mxu0 0.0
    %985 = vmatpush.msra.mxu0 0.0
    %986 = vmatpush.msra.mxu0 %v941
    %987 = vmatmul.f32.gmra.mxu0 %v937
    %v988 = vpop.f32.mrf.mxu0
    %v989 = vadd.f32 0.0, %v988
    %990 = vdwg.mxu0
    %991 = vmatpush.msra.mxu0 0.0
    %992 = vmatpush.msra.mxu0 0.0
    %993 = vmatpush.msra.mxu0 0.0
    %994 = vmatpush.msra.mxu0 0.0
    %995 = vmatpush.msra.mxu0 0.0
    %996 = vmatpush.msra.mxu0 0.0
    %997 = vmatpush.msra.mxu0 0.0
    %998 = vmatpush.msra.mxu0 0.0
    %999 = vmatpush.msra.mxu0 0.0
    %1000 = vmatpush.msra.mxu0 0.0
    %1001 = vmatpush.msra.mxu0 0.0
    %1002 = vmatpush.msra.mxu0 0.0
    %1003 = vmatpush.msra.mxu0 0.0
    %1004 = vmatpush.msra.mxu0 0.0
    %1005 = vmatpush.msra.mxu0 0.0
    %1006 = vmatpush.msra.mxu0 %v943
    %1007 = vmatmul.f32.gmra.mxu0 %v937
    %v1008 = vpop.f32.mrf.mxu0
    %v1009 = vadd.f32 0.0, %v1008
    %1010 = vdwg.mxu0
    %1011 = vmatpush.msra.mxu0 0.0
    %1012 = vmatpush.msra.mxu0 0.0
    %1013 = vmatpush.msra.mxu0 0.0
    %1014 = vmatpush.msra.mxu0 0.0
    %1015 = vmatpush.msra.mxu0 0.0
    %1016 = vmatpush.msra.mxu0 0.0
    %1017 = vmatpush.msra.mxu0 0.0
    %1018 = vmatpush.msra.mxu0 0.0
    %1019 = vmatpush.msra.mxu0 0.0
    %1020 = vmatpush.msra.mxu0 0.0
    %1021 = vmatpush.msra.mxu0 0.0
    %1022 = vmatpush.msra.mxu0 0.0
    %1023 = vmatpush.msra.mxu0 0.0
    %1024 = vmatpush.msra.mxu0 0.0
    %1025 = vmatpush.msra.mxu0 0.0
    %1026 = vmatpush.msra.mxu0 %v945
    %1027 = vmatmul.f32.gmra.mxu0 %v937
    %v1028 = vpop.f32.mrf.mxu0
    %v1029 = vadd.f32 0.0, %v1028
    %1030 = vdwg.mxu0
    %1031 = vmatpush.msra.mxu0 0.0
    %1032 = vmatpush.msra.mxu0 0.0
    %1033 = vmatpush.msra.mxu0 0.0
    %1034 = vmatpush.msra.mxu0 0.0
    %1035 = vmatpush.msra.mxu0 0.0
    %1036 = vmatpush.msra.mxu0 0.0
    %1037 = vmatpush.msra.mxu0 0.0
    %1038 = vmatpush.msra.mxu0 0.0
    %1039 = vmatpush.msra.mxu0 0.0
    %1040 = vmatpush.msra.mxu0 0.0
    %1041 = vmatpush.msra.mxu0 0.0
    %1042 = vmatpush.msra.mxu0 0.0
    %1043 = vmatpush.msra.mxu0 0.0
    %1044 = vmatpush.msra.mxu0 0.0
    %1045 = vmatpush.msra.mxu0 0.0
    %1046 = vmatpush.msra.mxu0 %v947
    %1047 = vmatmul.f32.gmra.mxu0 %v937
    %v1048 = vpop.f32.mrf.mxu0
    %v1049 = vadd.f32 0.0, %v1048
    %1050 = vdwg.mxu0
    %1051 = vmatpush.msra.mxu0 0.0
    %1052 = vmatpush.msra.mxu0 0.0
    %1053 = vmatpush.msra.mxu0 0.0
    %1054 = vmatpush.msra.mxu0 0.0
    %1055 = vmatpush.msra.mxu0 0.0
    %1056 = vmatpush.msra.mxu0 0.0
    %1057 = vmatpush.msra.mxu0 0.0
    %1058 = vmatpush.msra.mxu0 0.0
    %1059 = vmatpush.msra.mxu0 0.0
    %1060 = vmatpush.msra.mxu0 0.0
    %1061 = vmatpush.msra.mxu0 0.0
    %1062 = vmatpush.msra.mxu0 0.0
    %1063 = vmatpush.msra.mxu0 0.0
    %1064 = vmatpush.msra.mxu0 0.0
    %1065 = vmatpush.msra.mxu0 0.0
    %1066 = vmatpush.msra.mxu0 %v949
    %1067 = vmatmul.f32.gmra.mxu0 %v937
    %v1068 = vpop.f32.mrf.mxu0
    %v1069 = vadd.f32 0.0, %v1068
    %1070 = vdwg.mxu0
    %v1071 = vadd.f32 %v893, %v969
    %v1072 = vadd.f32 %v894, %v989
    %v1073 = vadd.f32 %v895, %v1009
    %v1074 = vadd.f32 %v896, %v1029
    %v1075 = vadd.f32 %v897, %v1049
    %v1076 = vadd.f32 %v898, %v1069
    %s1077 = scalar_lea.vmem %s1, 24
    %v1078 = vld [vmem:[%s1077] sm:$0xf]
    %v1079 = vld [vmem:[#allocation2 + $0x4] sm:$0xff]
    %v1080 = vld [vmem:[#allocation2 + $0xc] sm:$0xff]
    %v1081 = vld [vmem:[#allocation2 + $0x14] sm:$0xff]
    %1085 = vst [vmem:[#allocation1] ss:$2 sm:$0xff] %v1079
    %s1086 = scalar_lea.vmem [#allocation1], 16
    %1087 = vst [vmem:[%s1086] ss:$2 sm:$0xff] %v1080
    %s1088 = scalar_lea.vmem [#allocation1], 32
    %1089 = vst [vmem:[%s1088] ss:$2 sm:$0xff] %v1081
    %v1090 = vld.sshfl [vmem:[#allocation1] sm:$0xff pattern:$0x75316420]
    %v1091 = vld.sshfl [vmem:[#allocation1 + $0x8] sm:$0xff pattern:$0x75316420]
    %v1092 = vld.sshfl [vmem:[#allocation1 + $0x10] sm:$0xff pattern:$0x75316420]
    %v1093 = vld.sshfl [vmem:[#allocation1 + $0x18] sm:$0xff pattern:$0x75316420]
    %v1094 = vld.sshfl [vmem:[#allocation1 + $0x20] sm:$0xff pattern:$0x75316420]
    %v1095 = vld.sshfl [vmem:[#allocation1 + $0x28] sm:$0xff pattern:$0x75316420]
    %1096 = vrot.lane.b32.xlu0 %v1090, 111
    %v1097 = vpop.permute.xlu0 %1096
    %1098 = vrot.lane.b32.xlu0 %v1091, 111
    %v1099 = vpop.permute.xlu0 %1098
    %1100 = vrot.lane.b32.xlu0 %v1092, 111
    %v1101 = vpop.permute.xlu0 %1100
    %1102 = vrot.lane.b32.xlu0 %v1093, 111
    %v1103 = vpop.permute.xlu0 %1102
    %1104 = vrot.lane.b32.xlu0 %v1094, 111
    %v1105 = vpop.permute.xlu0 %1104
    %1106 = vrot.lane.b32.xlu0 %v1095, 111
    %v1107 = vpop.permute.xlu0 %1106
    %vm1108 = vcmask 908288
    %v1109 = vsel %vm1108, %v1097, %v1099
    %v1110 = vsel %vm1108, %v1099, %v1101
    %v1111 = vsel %vm1108, %v1101, %v1103
    %v1112 = vsel %vm1108, %v1103, %v1105
    %v1113 = vsel %vm1108, %v1105, %v1107
    %v1115 = vsel %vm75, %v1078, 0
    %v1117 = vsel %vm34, %v1109, 0
    %v1119 = vsel %vm34, %v1110, 0
    %v1121 = vsel %vm34, %v1111, 0
    %v1123 = vsel %vm34, %v1112, 0
    %v1125 = vsel %vm34, %v1113, 0
    %v1127 = vsel %vm34, %v1107, 0
    %1129 = vmatpush.msra.mxu0 0.0
    %1130 = vmatpush.msra.mxu0 0.0
    %1131 = vmatpush.msra.mxu0 0.0
    %1132 = vmatpush.msra.mxu0 0.0
    %1133 = vmatpush.msra.mxu0 0.0
    %1134 = vmatpush.msra.mxu0 0.0
    %1135 = vmatpush.msra.mxu0 0.0
    %1136 = vmatpush.msra.mxu0 0.0
    %1137 = vmatpush.msra.mxu0 0.0
    %1138 = vmatpush.msra.mxu0 0.0
    %1139 = vmatpush.msra.mxu0 0.0
    %1140 = vmatpush.msra.mxu0 0.0
    %1141 = vmatpush.msra.mxu0 0.0
    %1142 = vmatpush.msra.mxu0 0.0
    %1143 = vmatpush.msra.mxu0 0.0
    %1144 = vmatpush.msra.mxu0 %v1117
    %1145 = vmatmul.f32.gmra.mxu0 %v1115
    %v1146 = vpop.f32.mrf.mxu0
    %v1147 = vadd.f32 0.0, %v1146
    %1148 = vdwg.mxu0
    %1149 = vmatpush.msra.mxu0 0.0
    %1150 = vmatpush.msra.mxu0 0.0
    %1151 = vmatpush.msra.mxu0 0.0
    %1152 = vmatpush.msra.mxu0 0.0
    %1153 = vmatpush.msra.mxu0 0.0
    %1154 = vmatpush.msra.mxu0 0.0
    %1155 = vmatpush.msra.mxu0 0.0
    %1156 = vmatpush.msra.mxu0 0.0
    %1157 = vmatpush.msra.mxu0 0.0
    %1158 = vmatpush.msra.mxu0 0.0
    %1159 = vmatpush.msra.mxu0 0.0
    %1160 = vmatpush.msra.mxu0 0.0
    %1161 = vmatpush.msra.mxu0 0.0
    %1162 = vmatpush.msra.mxu0 0.0
    %1163 = vmatpush.msra.mxu0 0.0
    %1164 = vmatpush.msra.mxu0 %v1119
    %1165 = vmatmul.f32.gmra.mxu0 %v1115
    %v1166 = vpop.f32.mrf.mxu0
    %v1167 = vadd.f32 0.0, %v1166
    %1168 = vdwg.mxu0
    %1169 = vmatpush.msra.mxu0 0.0
    %1170 = vmatpush.msra.mxu0 0.0
    %1171 = vmatpush.msra.mxu0 0.0
    %1172 = vmatpush.msra.mxu0 0.0
    %1173 = vmatpush.msra.mxu0 0.0
    %1174 = vmatpush.msra.mxu0 0.0
    %1175 = vmatpush.msra.mxu0 0.0
    %1176 = vmatpush.msra.mxu0 0.0
    %1177 = vmatpush.msra.mxu0 0.0
    %1178 = vmatpush.msra.mxu0 0.0
    %1179 = vmatpush.msra.mxu0 0.0
    %1180 = vmatpush.msra.mxu0 0.0
    %1181 = vmatpush.msra.mxu0 0.0
    %1182 = vmatpush.msra.mxu0 0.0
    %1183 = vmatpush.msra.mxu0 0.0
    %1184 = vmatpush.msra.mxu0 %v1121
    %1185 = vmatmul.f32.gmra.mxu0 %v1115
    %v1186 = vpop.f32.mrf.mxu0
    %v1187 = vadd.f32 0.0, %v1186
    %1188 = vdwg.mxu0
    %1189 = vmatpush.msra.mxu0 0.0
    %1190 = vmatpush.msra.mxu0 0.0
    %1191 = vmatpush.msra.mxu0 0.0
    %1192 = vmatpush.msra.mxu0 0.0
    %1193 = vmatpush.msra.mxu0 0.0
    %1194 = vmatpush.msra.mxu0 0.0
    %1195 = vmatpush.msra.mxu0 0.0
    %1196 = vmatpush.msra.mxu0 0.0
    %1197 = vmatpush.msra.mxu0 0.0
    %1198 = vmatpush.msra.mxu0 0.0
    %1199 = vmatpush.msra.mxu0 0.0
    %1200 = vmatpush.msra.mxu0 0.0
    %1201 = vmatpush.msra.mxu0 0.0
    %1202 = vmatpush.msra.mxu0 0.0
    %1203 = vmatpush.msra.mxu0 0.0
    %1204 = vmatpush.msra.mxu0 %v1123
    %1205 = vmatmul.f32.gmra.mxu0 %v1115
    %v1206 = vpop.f32.mrf.mxu0
    %v1207 = vadd.f32 0.0, %v1206
    %1208 = vdwg.mxu0
    %1209 = vmatpush.msra.mxu0 0.0
    %1210 = vmatpush.msra.mxu0 0.0
    %1211 = vmatpush.msra.mxu0 0.0
    %1212 = vmatpush.msra.mxu0 0.0
    %1213 = vmatpush.msra.mxu0 0.0
    %1214 = vmatpush.msra.mxu0 0.0
    %1215 = vmatpush.msra.mxu0 0.0
    %1216 = vmatpush.msra.mxu0 0.0
    %1217 = vmatpush.msra.mxu0 0.0
    %1218 = vmatpush.msra.mxu0 0.0
    %1219 = vmatpush.msra.mxu0 0.0
    %1220 = vmatpush.msra.mxu0 0.0
    %1221 = vmatpush.msra.mxu0 0.0
    %1222 = vmatpush.msra.mxu0 0.0
    %1223 = vmatpush.msra.mxu0 0.0
    %1224 = vmatpush.msra.mxu0 %v1125
    %1225 = vmatmul.f32.gmra.mxu0 %v1115
    %v1226 = vpop.f32.mrf.mxu0
    %v1227 = vadd.f32 0.0, %v1226
    %1228 = vdwg.mxu0
    %1229 = vmatpush.msra.mxu0 0.0
    %1230 = vmatpush.msra.mxu0 0.0
    %1231 = vmatpush.msra.mxu0 0.0
    %1232 = vmatpush.msra.mxu0 0.0
    %1233 = vmatpush.msra.mxu0 0.0
    %1234 = vmatpush.msra.mxu0 0.0
    %1235 = vmatpush.msra.mxu0 0.0
    %1236 = vmatpush.msra.mxu0 0.0
    %1237 = vmatpush.msra.mxu0 0.0
    %1238 = vmatpush.msra.mxu0 0.0
    %1239 = vmatpush.msra.mxu0 0.0
    %1240 = vmatpush.msra.mxu0 0.0
    %1241 = vmatpush.msra.mxu0 0.0
    %1242 = vmatpush.msra.mxu0 0.0
    %1243 = vmatpush.msra.mxu0 0.0
    %1244 = vmatpush.msra.mxu0 %v1127
    %1245 = vmatmul.f32.gmra.mxu0 %v1115
    %v1246 = vpop.f32.mrf.mxu0
    %v1247 = vadd.f32 0.0, %v1246
    %1248 = vdwg.mxu0
    %v1249 = vadd.f32 %v1071, %v1147
    %v1250 = vadd.f32 %v1072, %v1167
    %v1251 = vadd.f32 %v1073, %v1187
    %v1252 = vadd.f32 %v1074, %v1207
    %v1253 = vadd.f32 %v1075, %v1227
    %v1254 = vadd.f32 %v1076, %v1247
    %s1255 = scalar_lea.vmem %s1, 28
    %v1256 = vld [vmem:[%s1255] sm:$0xf]
    %v1257 = vld [vmem:[#allocation2 + $0x4] sm:$0xff]
    %v1258 = vld [vmem:[#allocation2 + $0xc] sm:$0xff]
    %v1259 = vld [vmem:[#allocation2 + $0x14] sm:$0xff]
    %1263 = vst [vmem:[#allocation1] ss:$2 sm:$0xff] %v1257
    %s1264 = scalar_lea.vmem [#allocation1], 16
    %1265 = vst [vmem:[%s1264] ss:$2 sm:$0xff] %v1258
    %s1266 = scalar_lea.vmem [#allocation1], 32
    %1267 = vst [vmem:[%s1266] ss:$2 sm:$0xff] %v1259
    %v1268 = vld.sshfl [vmem:[#allocation1] sm:$0xff pattern:$0x75316420]
    %v1269 = vld.sshfl [vmem:[#allocation1 + $0x8] sm:$0xff pattern:$0x75316420]
    %v1270 = vld.sshfl [vmem:[#allocation1 + $0x10] sm:$0xff pattern:$0x75316420]
    %v1271 = vld.sshfl [vmem:[#allocation1 + $0x18] sm:$0xff pattern:$0x75316420]
    %v1272 = vld.sshfl [vmem:[#allocation1 + $0x20] sm:$0xff pattern:$0x75316420]
    %v1273 = vld.sshfl [vmem:[#allocation1 + $0x28] sm:$0xff pattern:$0x75316420]
    %1274 = vrot.lane.b32.xlu0 %v1268, 110
    %v1275 = vpop.permute.xlu0 %1274
    %1276 = vrot.lane.b32.xlu0 %v1269, 110
    %v1277 = vpop.permute.xlu0 %1276
    %1278 = vrot.lane.b32.xlu0 %v1270, 110
    %v1279 = vpop.permute.xlu0 %1278
    %1280 = vrot.lane.b32.xlu0 %v1271, 110
    %v1281 = vpop.permute.xlu0 %1280
    %1282 = vrot.lane.b32.xlu0 %v1272, 110
    %v1283 = vpop.permute.xlu0 %1282
    %1284 = vrot.lane.b32.xlu0 %v1273, 110
    %v1285 = vpop.permute.xlu0 %1284
    %vm1286 = vcmask 900096
    %v1287 = vsel %vm1286, %v1275, %v1277
    %v1288 = vsel %vm1286, %v1277, %v1279
    %v1289 = vsel %vm1286, %v1279, %v1281
    %v1290 = vsel %vm1286, %v1281, %v1283
    %v1291 = vsel %vm1286, %v1283, %v1285
    %v1293 = vsel %vm75, %v1256, 0
    %v1295 = vsel %vm34, %v1287, 0
    %v1297 = vsel %vm34, %v1288, 0
    %v1299 = vsel %vm34, %v1289, 0
    %v1301 = vsel %vm34, %v1290, 0
    %v1303 = vsel %vm34, %v1291, 0
    %v1305 = vsel %vm34, %v1285, 0
    %1307 = vmatpush.msra.mxu0 0.0
    %1308 = vmatpush.msra.mxu0 0.0
    %1309 = vmatpush.msra.mxu0 0.0
    %1310 = vmatpush.msra.mxu0 0.0
    %1311 = vmatpush.msra.mxu0 0.0
    %1312 = vmatpush.msra.mxu0 0.0
    %1313 = vmatpush.msra.mxu0 0.0
    %1314 = vmatpush.msra.mxu0 0.0
    %1315 = vmatpush.msra.mxu0 0.0
    %1316 = vmatpush.msra.mxu0 0.0
    %1317 = vmatpush.msra.mxu0 0.0
    %1318 = vmatpush.msra.mxu0 0.0
    %1319 = vmatpush.msra.mxu0 0.0
    %1320 = vmatpush.msra.mxu0 0.0
    %1321 = vmatpush.msra.mxu0 0.0
    %1322 = vmatpush.msra.mxu0 %v1295
    %1323 = vmatmul.f32.gmra.mxu0 %v1293
    %v1324 = vpop.f32.mrf.mxu0
    %v1325 = vadd.f32 0.0, %v1324
    %1326 = vdwg.mxu0
    %1327 = vmatpush.msra.mxu0 0.0
    %1328 = vmatpush.msra.mxu0 0.0
    %1329 = vmatpush.msra.mxu0 0.0
    %1330 = vmatpush.msra.mxu0 0.0
    %1331 = vmatpush.msra.mxu0 0.0
    %1332 = vmatpush.msra.mxu0 0.0
    %1333 = vmatpush.msra.mxu0 0.0
    %1334 = vmatpush.msra.mxu0 0.0
    %1335 = vmatpush.msra.mxu0 0.0
    %1336 = vmatpush.msra.mxu0 0.0
    %1337 = vmatpush.msra.mxu0 0.0
    %1338 = vmatpush.msra.mxu0 0.0
    %1339 = vmatpush.msra.mxu0 0.0
    %1340 = vmatpush.msra.mxu0 0.0
    %1341 = vmatpush.msra.mxu0 0.0
    %1342 = vmatpush.msra.mxu0 %v1297
    %1343 = vmatmul.f32.gmra.mxu0 %v1293
    %v1344 = vpop.f32.mrf.mxu0
    %v1345 = vadd.f32 0.0, %v1344
    %1346 = vdwg.mxu0
    %1347 = vmatpush.msra.mxu0 0.0
    %1348 = vmatpush.msra.mxu0 0.0
    %1349 = vmatpush.msra.mxu0 0.0
    %1350 = vmatpush.msra.mxu0 0.0
    %1351 = vmatpush.msra.mxu0 0.0
    %1352 = vmatpush.msra.mxu0 0.0
    %1353 = vmatpush.msra.mxu0 0.0
    %1354 = vmatpush.msra.mxu0 0.0
    %1355 = vmatpush.msra.mxu0 0.0
    %1356 = vmatpush.msra.mxu0 0.0
    %1357 = vmatpush.msra.mxu0 0.0
    %1358 = vmatpush.msra.mxu0 0.0
    %1359 = vmatpush.msra.mxu0 0.0
    %1360 = vmatpush.msra.mxu0 0.0
    %1361 = vmatpush.msra.mxu0 0.0
    %1362 = vmatpush.msra.mxu0 %v1299
    %1363 = vmatmul.f32.gmra.mxu0 %v1293
    %v1364 = vpop.f32.mrf.mxu0
    %v1365 = vadd.f32 0.0, %v1364
    %1366 = vdwg.mxu0
    %1367 = vmatpush.msra.mxu0 0.0
    %1368 = vmatpush.msra.mxu0 0.0
    %1369 = vmatpush.msra.mxu0 0.0
    %1370 = vmatpush.msra.mxu0 0.0
    %1371 = vmatpush.msra.mxu0 0.0
    %1372 = vmatpush.msra.mxu0 0.0
    %1373 = vmatpush.msra.mxu0 0.0
    %1374 = vmatpush.msra.mxu0 0.0
    %1375 = vmatpush.msra.mxu0 0.0
    %1376 = vmatpush.msra.mxu0 0.0
    %1377 = vmatpush.msra.mxu0 0.0
    %1378 = vmatpush.msra.mxu0 0.0
    %1379 = vmatpush.msra.mxu0 0.0
    %1380 = vmatpush.msra.mxu0 0.0
    %1381 = vmatpush.msra.mxu0 0.0
    %1382 = vmatpush.msra.mxu0 %v1301
    %1383 = vmatmul.f32.gmra.mxu0 %v1293
    %v1384 = vpop.f32.mrf.mxu0
    %v1385 = vadd.f32 0.0, %v1384
    %1386 = vdwg.mxu0
    %1387 = vmatpush.msra.mxu0 0.0
    %1388 = vmatpush.msra.mxu0 0.0
    %1389 = vmatpush.msra.mxu0 0.0
    %1390 = vmatpush.msra.mxu0 0.0
    %1391 = vmatpush.msra.mxu0 0.0
    %1392 = vmatpush.msra.mxu0 0.0
    %1393 = vmatpush.msra.mxu0 0.0
    %1394 = vmatpush.msra.mxu0 0.0
    %1395 = vmatpush.msra.mxu0 0.0
    %1396 = vmatpush.msra.mxu0 0.0
    %1397 = vmatpush.msra.mxu0 0.0
    %1398 = vmatpush.msra.mxu0 0.0
    %1399 = vmatpush.msra.mxu0 0.0
    %1400 = vmatpush.msra.mxu0 0.0
    %1401 = vmatpush.msra.mxu0 0.0
    %1402 = vmatpush.msra.mxu0 %v1303
    %1403 = vmatmul.f32.gmra.mxu0 %v1293
    %v1404 = vpop.f32.mrf.mxu0
    %v1405 = vadd.f32 0.0, %v1404
    %1406 = vdwg.mxu0
    %1407 = vmatpush.msra.mxu0 0.0
    %1408 = vmatpush.msra.mxu0 0.0
    %1409 = vmatpush.msra.mxu0 0.0
    %1410 = vmatpush.msra.mxu0 0.0
    %1411 = vmatpush.msra.mxu0 0.0
    %1412 = vmatpush.msra.mxu0 0.0
    %1413 = vmatpush.msra.mxu0 0.0
    %1414 = vmatpush.msra.mxu0 0.0
    %1415 = vmatpush.msra.mxu0 0.0
    %1416 = vmatpush.msra.mxu0 0.0
    %1417 = vmatpush.msra.mxu0 0.0
    %1418 = vmatpush.msra.mxu0 0.0
    %1419 = vmatpush.msra.mxu0 0.0
    %1420 = vmatpush.msra.mxu0 0.0
    %1421 = vmatpush.msra.mxu0 0.0
    %1422 = vmatpush.msra.mxu0 %v1305
    %1423 = vmatmul.f32.gmra.mxu0 %v1293
    %v1424 = vpop.f32.mrf.mxu0
    %v1425 = vadd.f32 0.0, %v1424
    %1426 = vdwg.mxu0
    %v1427 = vadd.f32 %v1249, %v1325
    %v1428 = vadd.f32 %v1250, %v1345
    %v1429 = vadd.f32 %v1251, %v1365
    %v1430 = vadd.f32 %v1252, %v1385
    %v1431 = vadd.f32 %v1253, %v1405
    %v1432 = vadd.f32 %v1254, %v1425
    %s1433 = scalar_lea.vmem %s1, 32
    %v1434 = vld [vmem:[%s1433] sm:$0xf]
    %v1435 = vld [vmem:[#allocation2 + $0x4] sm:$0xff]
    %v1436 = vld [vmem:[#allocation2 + $0xc] sm:$0xff]
    %v1437 = vld [vmem:[#allocation2 + $0x14] sm:$0xff]
    %1441 = vst [vmem:[#allocation1] ss:$2 sm:$0xff] %v1435
    %s1442 = scalar_lea.vmem [#allocation1], 16
    %1443 = vst [vmem:[%s1442] ss:$2 sm:$0xff] %v1436
    %s1444 = scalar_lea.vmem [#allocation1], 32
    %1445 = vst [vmem:[%s1444] ss:$2 sm:$0xff] %v1437
    %v1446 = vld.sshfl [vmem:[#allocation1] sm:$0xff pattern:$0x75316420]
    %v1447 = vld.sshfl [vmem:[#allocation1 + $0x8] sm:$0xff pattern:$0x75316420]
    %v1448 = vld.sshfl [vmem:[#allocation1 + $0x10] sm:$0xff pattern:$0x75316420]
    %v1449 = vld.sshfl [vmem:[#allocation1 + $0x18] sm:$0xff pattern:$0x75316420]
    %v1450 = vld.sshfl [vmem:[#allocation1 + $0x20] sm:$0xff pattern:$0x75316420]
    %v1451 = vld.sshfl [vmem:[#allocation1 + $0x28] sm:$0xff pattern:$0x75316420]
    %1452 = vrot.lane.b32.xlu0 %v1446, 109
    %v1453 = vpop.permute.xlu0 %1452
    %1454 = vrot.lane.b32.xlu0 %v1447, 109
    %v1455 = vpop.permute.xlu0 %1454
    %1456 = vrot.lane.b32.xlu0 %v1448, 109
    %v1457 = vpop.permute.xlu0 %1456
    %1458 = vrot.lane.b32.xlu0 %v1449, 109
    %v1459 = vpop.permute.xlu0 %1458
    %1460 = vrot.lane.b32.xlu0 %v1450, 109
    %v1461 = vpop.permute.xlu0 %1460
    %1462 = vrot.lane.b32.xlu0 %v1451, 109
    %v1463 = vpop.permute.xlu0 %1462
    %vm1464 = vcmask 891904
    %v1465 = vsel %vm1464, %v1453, %v1455
    %v1466 = vsel %vm1464, %v1455, %v1457
    %v1467 = vsel %vm1464, %v1457, %v1459
    %v1468 = vsel %vm1464, %v1459, %v1461
    %v1469 = vsel %vm1464, %v1461, %v1463
    %v1471 = vsel %vm75, %v1434, 0
    %v1473 = vsel %vm34, %v1465, 0
    %v1475 = vsel %vm34, %v1466, 0
    %v1477 = vsel %vm34, %v1467, 0
    %v1479 = vsel %vm34, %v1468, 0
    %v1481 = vsel %vm34, %v1469, 0
    %v1483 = vsel %vm34, %v1463, 0
    %1485 = vmatpush.msra.mxu0 0.0
    %1486 = vmatpush.msra.mxu0 0.0
    %1487 = vmatpush.msra.mxu0 0.0
    %1488 = vmatpush.msra.mxu0 0.0
    %1489 = vmatpush.msra.mxu0 0.0
    %1490 = vmatpush.msra.mxu0 0.0
    %1491 = vmatpush.msra.mxu0 0.0
    %1492 = vmatpush.msra.mxu0 0.0
    %1493 = vmatpush.msra.mxu0 0.0
    %1494 = vmatpush.msra.mxu0 0.0
    %1495 = vmatpush.msra.mxu0 0.0
    %1496 = vmatpush.msra.mxu0 0.0
    %1497 = vmatpush.msra.mxu0 0.0
    %1498 = vmatpush.msra.mxu0 0.0
    %1499 = vmatpush.msra.mxu0 0.0
    %1500 = vmatpush.msra.mxu0 %v1473
    %1501 = vmatmul.f32.gmra.mxu0 %v1471
    %v1502 = vpop.f32.mrf.mxu0
    %v1503 = vadd.f32 0.0, %v1502
    %1504 = vdwg.mxu0
    %1505 = vmatpush.msra.mxu0 0.0
    %1506 = vmatpush.msra.mxu0 0.0
    %1507 = vmatpush.msra.mxu0 0.0
    %1508 = vmatpush.msra.mxu0 0.0
    %1509 = vmatpush.msra.mxu0 0.0
    %1510 = vmatpush.msra.mxu0 0.0
    %1511 = vmatpush.msra.mxu0 0.0
    %1512 = vmatpush.msra.mxu0 0.0
    %1513 = vmatpush.msra.mxu0 0.0
    %1514 = vmatpush.msra.mxu0 0.0
    %1515 = vmatpush.msra.mxu0 0.0
    %1516 = vmatpush.msra.mxu0 0.0
    %1517 = vmatpush.msra.mxu0 0.0
    %1518 = vmatpush.msra.mxu0 0.0
    %1519 = vmatpush.msra.mxu0 0.0
    %1520 = vmatpush.msra.mxu0 %v1475
    %1521 = vmatmul.f32.gmra.mxu0 %v1471
    %v1522 = vpop.f32.mrf.mxu0
    %v1523 = vadd.f32 0.0, %v1522
    %1524 = vdwg.mxu0
    %1525 = vmatpush.msra.mxu0 0.0
    %1526 = vmatpush.msra.mxu0 0.0
    %1527 = vmatpush.msra.mxu0 0.0
    %1528 = vmatpush.msra.mxu0 0.0
    %1529 = vmatpush.msra.mxu0 0.0
    %1530 = vmatpush.msra.mxu0 0.0
    %1531 = vmatpush.msra.mxu0 0.0
    %1532 = vmatpush.msra.mxu0 0.0
    %1533 = vmatpush.msra.mxu0 0.0
    %1534 = vmatpush.msra.mxu0 0.0
    %1535 = vmatpush.msra.mxu0 0.0
    %1536 = vmatpush.msra.mxu0 0.0
    %1537 = vmatpush.msra.mxu0 0.0
    %1538 = vmatpush.msra.mxu0 0.0
    %1539 = vmatpush.msra.mxu0 0.0
    %1540 = vmatpush.msra.mxu0 %v1477
    %1541 = vmatmul.f32.gmra.mxu0 %v1471
    %v1542 = vpop.f32.mrf.mxu0
    %v1543 = vadd.f32 0.0, %v1542
    %1544 = vdwg.mxu0
    %1545 = vmatpush.msra.mxu0 0.0
    %1546 = vmatpush.msra.mxu0 0.0
    %1547 = vmatpush.msra.mxu0 0.0
    %1548 = vmatpush.msra.mxu0 0.0
    %1549 = vmatpush.msra.mxu0 0.0
    %1550 = vmatpush.msra.mxu0 0.0
    %1551 = vmatpush.msra.mxu0 0.0
    %1552 = vmatpush.msra.mxu0 0.0
    %1553 = vmatpush.msra.mxu0 0.0
    %1554 = vmatpush.msra.mxu0 0.0
    %1555 = vmatpush.msra.mxu0 0.0
    %1556 = vmatpush.msra.mxu0 0.0
    %1557 = vmatpush.msra.mxu0 0.0
    %1558 = vmatpush.msra.mxu0 0.0
    %1559 = vmatpush.msra.mxu0 0.0
    %1560 = vmatpush.msra.mxu0 %v1479
    %1561 = vmatmul.f32.gmra.mxu0 %v1471
    %v1562 = vpop.f32.mrf.mxu0
    %v1563 = vadd.f32 0.0, %v1562
    %1564 = vdwg.mxu0
    %1565 = vmatpush.msra.mxu0 0.0
    %1566 = vmatpush.msra.mxu0 0.0
    %1567 = vmatpush.msra.mxu0 0.0
    %1568 = vmatpush.msra.mxu0 0.0
    %1569 = vmatpush.msra.mxu0 0.0
    %1570 = vmatpush.msra.mxu0 0.0
    %1571 = vmatpush.msra.mxu0 0.0
    %1572 = vmatpush.msra.mxu0 0.0
    %1573 = vmatpush.msra.mxu0 0.0
    %1574 = vmatpush.msra.mxu0 0.0
    %1575 = vmatpush.msra.mxu0 0.0
    %1576 = vmatpush.msra.mxu0 0.0
    %1577 = vmatpush.msra.mxu0 0.0
    %1578 = vmatpush.msra.mxu0 0.0
    %1579 = vmatpush.msra.mxu0 0.0
    %1580 = vmatpush.msra.mxu0 %v1481
    %1581 = vmatmul.f32.gmra.mxu0 %v1471
    %v1582 = vpop.f32.mrf.mxu0
    %v1583 = vadd.f32 0.0, %v1582
    %1584 = vdwg.mxu0
    %1585 = vmatpush.msra.mxu0 0.0
    %1586 = vmatpush.msra.mxu0 0.0
    %1587 = vmatpush.msra.mxu0 0.0
    %1588 = vmatpush.msra.mxu0 0.0
    %1589 = vmatpush.msra.mxu0 0.0
    %1590 = vmatpush.msra.mxu0 0.0
    %1591 = vmatpush.msra.mxu0 0.0
    %1592 = vmatpush.msra.mxu0 0.0
    %1593 = vmatpush.msra.mxu0 0.0
    %1594 = vmatpush.msra.mxu0 0.0
    %1595 = vmatpush.msra.mxu0 0.0
    %1596 = vmatpush.msra.mxu0 0.0
    %1597 = vmatpush.msra.mxu0 0.0
    %1598 = vmatpush.msra.mxu0 0.0
    %1599 = vmatpush.msra.mxu0 0.0
    %1600 = vmatpush.msra.mxu0 %v1483
    %1601 = vmatmul.f32.gmra.mxu0 %v1471
    %v1602 = vpop.f32.mrf.mxu0
    %v1603 = vadd.f32 0.0, %v1602
    %1604 = vdwg.mxu0
    %v1605 = vadd.f32 %v1427, %v1503
    %v1606 = vadd.f32 %v1428, %v1523
    %v1607 = vadd.f32 %v1429, %v1543
    %v1608 = vadd.f32 %v1430, %v1563
    %v1609 = vadd.f32 %v1431, %v1583
    %v1610 = vadd.f32 %v1432, %v1603
    %v1612 = vperm.slane %v23, 0
    %v1613 = vperm.slane %v23, 1
    %v1614 = vperm.slane %v23, 2
    %v1615 = vperm.slane %v23, 3
    %v1616 = vperm.slane %v23, 4
    %v1617 = vperm.slane %v23, 5
    %v1624 = vmul.f32 %v1605, %v1612
    %v1625 = vmul.f32 %v1606, %v1613
    %v1626 = vmul.f32 %v1607, %v1614
    %v1627 = vmul.f32 %v1608, %v1615
    %v1628 = vmul.f32 %v1609, %v1616
    %v1629 = vmul.f32 %v1610, %v1617
    %v1630 = vsel %vm34, %v1624, 0.0
    %v1631 = vsel %vm34, %v1625, 0.0
    %v1632 = vadd.f32 %v1630, %v1631
    %v1633 = vsel %vm34, %v1626, 0.0
    %v1634 = vadd.f32 %v1632, %v1633
    %v1635 = vsel %vm34, %v1627, 0.0
    %v1636 = vadd.f32 %v1634, %v1635
    %v1637 = vsel %vm34, %v1628, 0.0
    %v1638 = vadd.f32 %v1636, %v1637
    %vm1639 = vcmask 60416
    %v1640 = vsel %vm1639, %v1629, 0.0
    %v1641 = vadd.f32 %v1638, %v1640
    %1642 = vadd.xlane.f32.xlu0 %v1641
    %v1643 = vpop.xlane.xlu0 %1642
    %v1644 = vmul.f32 %v1643, 0.001953125
    %v1645 = vmul.f32 %v1624, %v1624
    %v1646 = vmul.f32 %v1625, %v1625
    %v1647 = vmul.f32 %v1626, %v1626
    %v1648 = vmul.f32 %v1627, %v1627
    %v1649 = vmul.f32 %v1628, %v1628
    %v1650 = vmul.f32 %v1629, %v1629
    %v1651 = vsel %vm34, %v1645, 0.0
    %v1652 = vsel %vm34, %v1646, 0.0
    %v1653 = vadd.f32 %v1651, %v1652
    %v1654 = vsel %vm34, %v1647, 0.0
    %v1655 = vadd.f32 %v1653, %v1654
    %v1656 = vsel %vm34, %v1648, 0.0
    %v1657 = vadd.f32 %v1655, %v1656
    %v1658 = vsel %vm34, %v1649, 0.0
    %v1659 = vadd.f32 %v1657, %v1658
    %v1660 = vsel %vm1639, %v1650, 0.0
    %v1661 = vadd.f32 %v1659, %v1660
    %1662 = vadd.xlane.f32.xlu0 %v1661
    %v1663 = vpop.xlane.xlu0 %1662
    %v1664 = vmul.f32 %v1663, 0.001953125
    %v1665 = vmul.f32 %v1644, %v1644
    %v1666 = vsub.f32 %v1664, %v1665
    %v1667 = vadd.f32 %v1666, 1e-05
    %v1668 = vrsqrt.pop %v1667
    %v1669 = vmul.f32 %v1668, %v1667
    %v1670 = vmul.f32 %v1669, %v1668
    %v1671 = vmul.f32 0.5, %v1670
    %v1672 = vsub.f32 1.5, %v1671
    %v1673 = vmul.f32 %v1668, %v1672
    %vm1674 = vweird.f32 %v1667
    %vm1675 = vweird.f32 %v1668
    %vm1676 = vmor %vm1674, %vm1675
    %v1677 = vsel %vm1676, %v1668, %v1673
    %v1678 = vmul.f32 %v21, %v1677
    %v1679 = vmul.f32 %v1644, %v1678
    %v1680 = vsub.f32 %v22, %v1679
    %1682 = vset.pattern.permute.xlu0 0
    %1683 = vperm.xlu0 %1682, %v1678
    %v1684 = vpop.permute.xlu0 %1683
    %v1686 = vmul.f32 %v1624, %v1684
    %v1687 = vmul.f32 %v1625, %v1684
    %v1688 = vmul.f32 %v1626, %v1684
    %v1689 = vmul.f32 %v1627, %v1684
    %v1690 = vmul.f32 %v1628, %v1684
    %v1691 = vmul.f32 %v1629, %v1684
    %1693 = vset.pattern.permute.xlu0 0
    %1694 = vperm.xlu0 %1693, %v1680
    %v1695 = vpop.permute.xlu0 %1694
    %v1697 = vadd.f32 %v1686, %v1695
    %v1698 = vadd.f32 %v1687, %v1695
    %v1699 = vadd.f32 %v1688, %v1695
    %v1700 = vadd.f32 %v1689, %v1695
    %v1701 = vadd.f32 %v1690, %v1695
    %v1702 = vadd.f32 %v1691, %v1695
    %v1703 = vmax.f32 %v1697, 0.0
    %v1704 = vmax.f32 %v1698, 0.0
    %v1705 = vmax.f32 %v1699, 0.0
    %v1706 = vmax.f32 %v1700, 0.0
    %v1707 = vmax.f32 %v1701, 0.0
    %v1708 = vmax.f32 %v1702, 0.0
    %v1709 = vmul.f32 %v1703, %v1612
    %v1710 = vmul.f32 %v1704, %v1613
    %v1711 = vmul.f32 %v1705, %v1614
    %v1712 = vmul.f32 %v1706, %v1615
    %v1713 = vmul.f32 %v1707, %v1616
    %v1714 = vmul.f32 %v1708, %v1617
    %v1721 = vrot.slane %v1710, 4
    %v1722 = vrot.slane %v1712, 4
    %v1723 = vrot.slane %v1714, 4
    %v1724 = vsel %vm34, %v1709, %v1721
    %v1725 = vsel %vm34, %v1711, %v1722
    %v1726 = vsel %vm34, %v1713, %v1723
    %v1730 = vadd.f32 %v24, %v1724
    %v1731 = vadd.f32 %v25, %v1725
    %v1732 = vadd.f32 %v26, %v1726
    %1733 = vst [vmem:[#allocation2 + $0x4] sm:$0xff] %v1730
    %1734 = vst [vmem:[#allocation2 + $0xc] sm:$0xff] %v1731
    %1735 = vst.msk [vmem:[#allocation2 + $0x14] sm:$0xff] %vm35, %v1732
    %v1736 = vld [vmem:[%s1] sm:$0xf]
    %v1737 = vld [vmem:[#allocation2] sm:$0xff]
    %v1738 = vld [vmem:[#allocation2 + $0x8] sm:$0xff]
    %v1739 = vld [vmem:[#allocation2 + $0x10] sm:$0xff]
    %v1740 = vld [vmem:[%s41] sm:$0xf]
    %1744 = vst [vmem:[#allocation1] ss:$2 sm:$0xff] %v1737
    %s1745 = scalar_lea.vmem [#allocation1], 16
    %1746 = vst [vmem:[%s1745] ss:$2 sm:$0xff] %v1738
    %s1747 = scalar_lea.vmem [#allocation1], 32
    %1748 = vst [vmem:[%s1747] ss:$2 sm:$0xff] %v1739
    %v1749 = vld.sshfl [vmem:[#allocation1] sm:$0xff pattern:$0x75316420]
    %v1750 = vld.sshfl [vmem:[#allocation1 + $0x8] sm:$0xff pattern:$0x75316420]
    %v1751 = vld.sshfl [vmem:[#allocation1 + $0x10] sm:$0xff pattern:$0x75316420]
    %v1752 = vld.sshfl [vmem:[#allocation1 + $0x18] sm:$0xff pattern:$0x75316420]
    %v1753 = vld.sshfl [vmem:[#allocation1 + $0x20] sm:$0xff pattern:$0x75316420]
    %v1754 = vld.sshfl [vmem:[#allocation1 + $0x28] sm:$0xff pattern:$0x75316420]
    %1755 = vrot.lane.b32.xlu0 %v1749, 18
    %v1756 = vpop.permute.xlu0 %1755
    %1757 = vrot.lane.b32.xlu0 %v1750, 18
    %v1758 = vpop.permute.xlu0 %1757
    %1759 = vrot.lane.b32.xlu0 %v1751, 18
    %v1760 = vpop.permute.xlu0 %1759
    %1761 = vrot.lane.b32.xlu0 %v1752, 18
    %v1762 = vpop.permute.xlu0 %1761
    %1763 = vrot.lane.b32.xlu0 %v1753, 18
    %v1764 = vpop.permute.xlu0 %1763
    %1765 = vrot.lane.b32.xlu0 %v1754, 18
    %v1766 = vpop.permute.xlu0 %1765
    %v1767 = vsel %vm69, %v1756, %v1758
    %v1768 = vsel %vm69, %v1758, %v1760
    %v1769 = vsel %vm69, %v1760, %v1762
    %v1770 = vsel %vm69, %v1762, %v1764
    %v1771 = vsel %vm69, %v1764, %v1766
    %v1773 = vsel %vm75, %v1740, 0
    %v1775 = vsel %vm34, %v1767, 0
    %v1777 = vsel %vm34, %v1768, 0
    %v1779 = vsel %vm34, %v1769, 0
    %v1781 = vsel %vm34, %v1770, 0
    %v1783 = vsel %vm34, %v1771, 0
    %v1785 = vsel %vm34, %v1766, 0
    %1787 = vmatpush.msra.mxu0 0.0
    %1788 = vmatpush.msra.mxu0 0.0
    %1789 = vmatpush.msra.mxu0 0.0
    %1790 = vmatpush.msra.mxu0 0.0
    %1791 = vmatpush.msra.mxu0 0.0
    %1792 = vmatpush.msra.mxu0 0.0
    %1793 = vmatpush.msra.mxu0 0.0
    %1794 = vmatpush.msra.mxu0 0.0
    %1795 = vmatpush.msra.mxu0 0.0
    %1796 = vmatpush.msra.mxu0 0.0
    %1797 = vmatpush.msra.mxu0 0.0
    %1798 = vmatpush.msra.mxu0 0.0
    %1799 = vmatpush.msra.mxu0 0.0
    %1800 = vmatpush.msra.mxu0 0.0
    %1801 = vmatpush.msra.mxu0 0.0
    %1802 = vmatpush.msra.mxu0 %v1775
    %1803 = vmatmul.f32.gmra.mxu0 %v1773
    %v1804 = vpop.f32.mrf.mxu0
    %v1805 = vadd.f32 0.0, %v1804
    %1806 = vdwg.mxu0
    %1807 = vmatpush.msra.mxu0 0.0
    %1808 = vmatpush.msra.mxu0 0.0
    %1809 = vmatpush.msra.mxu0 0.0
    %1810 = vmatpush.msra.mxu0 0.0
    %1811 = vmatpush.msra.mxu0 0.0
    %1812 = vmatpush.msra.mxu0 0.0
    %1813 = vmatpush.msra.mxu0 0.0
    %1814 = vmatpush.msra.mxu0 0.0
    %1815 = vmatpush.msra.mxu0 0.0
    %1816 = vmatpush.msra.mxu0 0.0
    %1817 = vmatpush.msra.mxu0 0.0
    %1818 = vmatpush.msra.mxu0 0.0
    %1819 = vmatpush.msra.mxu0 0.0
    %1820 = vmatpush.msra.mxu0 0.0
    %1821 = vmatpush.msra.mxu0 0.0
    %1822 = vmatpush.msra.mxu0 %v1777
    %1823 = vmatmul.f32.gmra.mxu0 %v1773
    %v1824 = vpop.f32.mrf.mxu0
    %v1825 = vadd.f32 0.0, %v1824
    %1826 = vdwg.mxu0
    %1827 = vmatpush.msra.mxu0 0.0
    %1828 = vmatpush.msra.mxu0 0.0
    %1829 = vmatpush.msra.mxu0 0.0
    %1830 = vmatpush.msra.mxu0 0.0
    %1831 = vmatpush.msra.mxu0 0.0
    %1832 = vmatpush.msra.mxu0 0.0
    %1833 = vmatpush.msra.mxu0 0.0
    %1834 = vmatpush.msra.mxu0 0.0
    %1835 = vmatpush.msra.mxu0 0.0
    %1836 = vmatpush.msra.mxu0 0.0
    %1837 = vmatpush.msra.mxu0 0.0
    %1838 = vmatpush.msra.mxu0 0.0
    %1839 = vmatpush.msra.mxu0 0.0
    %1840 = vmatpush.msra.mxu0 0.0
    %1841 = vmatpush.msra.mxu0 0.0
    %1842 = vmatpush.msra.mxu0 %v1779
    %1843 = vmatmul.f32.gmra.mxu0 %v1773
    %v1844 = vpop.f32.mrf.mxu0
    %v1845 = vadd.f32 0.0, %v1844
    %1846 = vdwg.mxu0
    %1847 = vmatpush.msra.mxu0 0.0
    %1848 = vmatpush.msra.mxu0 0.0
    %1849 = vmatpush.msra.mxu0 0.0
    %1850 = vmatpush.msra.mxu0 0.0
    %1851 = vmatpush.msra.mxu0 0.0
    %1852 = vmatpush.msra.mxu0 0.0
    %1853 = vmatpush.msra.mxu0 0.0
    %1854 = vmatpush.msra.mxu0 0.0
    %1855 = vmatpush.msra.mxu0 0.0
    %1856 = vmatpush.msra.mxu0 0.0
    %1857 = vmatpush.msra.mxu0 0.0
    %1858 = vmatpush.msra.mxu0 0.0
    %1859 = vmatpush.msra.mxu0 0.0
    %1860 = vmatpush.msra.mxu0 0.0
    %1861 = vmatpush.msra.mxu0 0.0
    %1862 = vmatpush.msra.mxu0 %v1781
    %1863 = vmatmul.f32.gmra.mxu0 %v1773
    %v1864 = vpop.f32.mrf.mxu0
    %v1865 = vadd.f32 0.0, %v1864
    %1866 = vdwg.mxu0
    %1867 = vmatpush.msra.mxu0 0.0
    %1868 = vmatpush.msra.mxu0 0.0
    %1869 = vmatpush.msra.mxu0 0.0
    %1870 = vmatpush.msra.mxu0 0.0
    %1871 = vmatpush.msra.mxu0 0.0
    %1872 = vmatpush.msra.mxu0 0.0
    %1873 = vmatpush.msra.mxu0 0.0
    %1874 = vmatpush.msra.mxu0 0.0
    %1875 = vmatpush.msra.mxu0 0.0
    %1876 = vmatpush.msra.mxu0 0.0
    %1877 = vmatpush.msra.mxu0 0.0
    %1878 = vmatpush.msra.mxu0 0.0
    %1879 = vmatpush.msra.mxu0 0.0
    %1880 = vmatpush.msra.mxu0 0.0
    %1881 = vmatpush.msra.mxu0 0.0
    %1882 = vmatpush.msra.mxu0 %v1783
    %1883 = vmatmul.f32.gmra.mxu0 %v1773
    %v1884 = vpop.f32.mrf.mxu0
    %v1885 = vadd.f32 0.0, %v1884
    %1886 = vdwg.mxu0
    %1887 = vmatpush.msra.mxu0 0.0
    %1888 = vmatpush.msra.mxu0 0.0
    %1889 = vmatpush.msra.mxu0 0.0
    %1890 = vmatpush.msra.mxu0 0.0
    %1891 = vmatpush.msra.mxu0 0.0
    %1892 = vmatpush.msra.mxu0 0.0
    %1893 = vmatpush.msra.mxu0 0.0
    %1894 = vmatpush.msra.mxu0 0.0
    %1895 = vmatpush.msra.mxu0 0.0
    %1896 = vmatpush.msra.mxu0 0.0
    %1897 = vmatpush.msra.mxu0 0.0
    %1898 = vmatpush.msra.mxu0 0.0
    %1899 = vmatpush.msra.mxu0 0.0
    %1900 = vmatpush.msra.mxu0 0.0
    %1901 = vmatpush.msra.mxu0 0.0
    %1902 = vmatpush.msra.mxu0 %v1785
    %1903 = vmatmul.f32.gmra.mxu0 %v1773
    %v1904 = vpop.f32.mrf.mxu0
    %v1905 = vadd.f32 0.0, %v1904
    %1906 = vdwg.mxu0
    %1907 = vst [vmem:[#allocation1] ss:$2 sm:$0xff] %v1737
    %s1908 = scalar_lea.vmem [#allocation1], 16
    %1909 = vst [vmem:[%s1908] ss:$2 sm:$0xff] %v1738
    %s1910 = scalar_lea.vmem [#allocation1], 32
    %1911 = vst [vmem:[%s1910] ss:$2 sm:$0xff] %v1739
    %v1912 = vld.sshfl [vmem:[#allocation1] sm:$0xff pattern:$0x75316420]
    %v1913 = vld.sshfl [vmem:[#allocation1 + $0x8] sm:$0xff pattern:$0x75316420]
    %v1914 = vld.sshfl [vmem:[#allocation1 + $0x10] sm:$0xff pattern:$0x75316420]
    %v1915 = vld.sshfl [vmem:[#allocation1 + $0x18] sm:$0xff pattern:$0x75316420]
    %v1916 = vld.sshfl [vmem:[#allocation1 + $0x20] sm:$0xff pattern:$0x75316420]
    %v1917 = vld.sshfl [vmem:[#allocation1 + $0x28] sm:$0xff pattern:$0x75316420]
    %1918 = vrot.lane.b32.xlu0 %v1912, 19
    %v1919 = vpop.permute.xlu0 %1918
    %1920 = vrot.lane.b32.xlu0 %v1913, 19
    %v1921 = vpop.permute.xlu0 %1920
    %1922 = vrot.lane.b32.xlu0 %v1914, 19
    %v1923 = vpop.permute.xlu0 %1922
    %1924 = vrot.lane.b32.xlu0 %v1915, 19
    %v1925 = vpop.permute.xlu0 %1924
    %1926 = vrot.lane.b32.xlu0 %v1916, 19
    %v1927 = vpop.permute.xlu0 %1926
    %1928 = vrot.lane.b32.xlu0 %v1917, 19
    %v1929 = vpop.permute.xlu0 %1928
    %v1930 = vsel %vm234, %v1919, %v1921
    %v1931 = vsel %vm234, %v1921, %v1923
    %v1932 = vsel %vm234, %v1923, %v1925
    %v1933 = vsel %vm234, %v1925, %v1927
    %v1934 = vsel %vm234, %v1927, %v1929
    %v1936 = vsel %vm75, %v1736, 0
    %v1938 = vsel %vm34, %v1930, 0
    %v1940 = vsel %vm34, %v1931, 0
    %v1942 = vsel %vm34, %v1932, 0
    %v1944 = vsel %vm34, %v1933, 0
    %v1946 = vsel %vm34, %v1934, 0
    %v1948 = vsel %vm34, %v1929, 0
    %1950 = vmatpush.msra.mxu0 0.0
    %1951 = vmatpush.msra.mxu0 0.0
    %1952 = vmatpush.msra.mxu0 0.0
    %1953 = vmatpush.msra.mxu0 0.0
    %1954 = vmatpush.msra.mxu0 0.0
    %1955 = vmatpush.msra.mxu0 0.0
    %1956 = vmatpush.msra.mxu0 0.0
    %1957 = vmatpush.msra.mxu0 0.0
    %1958 = vmatpush.msra.mxu0 0.0
    %1959 = vmatpush.msra.mxu0 0.0
    %1960 = vmatpush.msra.mxu0 0.0
    %1961 = vmatpush.msra.mxu0 0.0
    %1962 = vmatpush.msra.mxu0 0.0
    %1963 = vmatpush.msra.mxu0 0.0
    %1964 = vmatpush.msra.mxu0 0.0
    %1965 = vmatpush.msra.mxu0 %v1938
    %1966 = vmatmul.f32.gmra.mxu0 %v1936
    %v1967 = vpop.f32.mrf.mxu0
    %v1968 = vadd.f32 %v1805, %v1967
    %1969 = vdwg.mxu0
    %1970 = vmatpush.msra.mxu0 0.0
    %1971 = vmatpush.msra.mxu0 0.0
    %1972 = vmatpush.msra.mxu0 0.0
    %1973 = vmatpush.msra.mxu0 0.0
    %1974 = vmatpush.msra.mxu0 0.0
    %1975 = vmatpush.msra.mxu0 0.0
    %1976 = vmatpush.msra.mxu0 0.0
    %1977 = vmatpush.msra.mxu0 0.0
    %1978 = vmatpush.msra.mxu0 0.0
    %1979 = vmatpush.msra.mxu0 0.0
    %1980 = vmatpush.msra.mxu0 0.0
    %1981 = vmatpush.msra.mxu0 0.0
    %1982 = vmatpush.msra.mxu0 0.0
    %1983 = vmatpush.msra.mxu0 0.0
    %1984 = vmatpush.msra.mxu0 0.0
    %1985 = vmatpush.msra.mxu0 %v1940
    %1986 = vmatmul.f32.gmra.mxu0 %v1936
    %v1987 = vpop.f32.mrf.mxu0
    %v1988 = vadd.f32 %v1825, %v1987
    %1989 = vdwg.mxu0
    %1990 = vmatpush.msra.mxu0 0.0
    %1991 = vmatpush.msra.mxu0 0.0
    %1992 = vmatpush.msra.mxu0 0.0
    %1993 = vmatpush.msra.mxu0 0.0
    %1994 = vmatpush.msra.mxu0 0.0
    %1995 = vmatpush.msra.mxu0 0.0
    %1996 = vmatpush.msra.mxu0 0.0
    %1997 = vmatpush.msra.mxu0 0.0
    %1998 = vmatpush.msra.mxu0 0.0
    %1999 = vmatpush.msra.mxu0 0.0
    %2000 = vmatpush.msra.mxu0 0.0
    %2001 = vmatpush.msra.mxu0 0.0
    %2002 = vmatpush.msra.mxu0 0.0
    %2003 = vmatpush.msra.mxu0 0.0
    %2004 = vmatpush.msra.mxu0 0.0
    %2005 = vmatpush.msra.mxu0 %v1942
    %2006 = vmatmul.f32.gmra.mxu0 %v1936
    %v2007 = vpop.f32.mrf.mxu0
    %v2008 = vadd.f32 %v1845, %v2007
    %2009 = vdwg.mxu0
    %2010 = vmatpush.msra.mxu0 0.0
    %2011 = vmatpush.msra.mxu0 0.0
    %2012 = vmatpush.msra.mxu0 0.0
    %2013 = vmatpush.msra.mxu0 0.0
    %2014 = vmatpush.msra.mxu0 0.0
    %2015 = vmatpush.msra.mxu0 0.0
    %2016 = vmatpush.msra.mxu0 0.0
    %2017 = vmatpush.msra.mxu0 0.0
    %2018 = vmatpush.msra.mxu0 0.0
    %2019 = vmatpush.msra.mxu0 0.0
    %2020 = vmatpush.msra.mxu0 0.0
    %2021 = vmatpush.msra.mxu0 0.0
    %2022 = vmatpush.msra.mxu0 0.0
    %2023 = vmatpush.msra.mxu0 0.0
    %2024 = vmatpush.msra.mxu0 0.0
    %2025 = vmatpush.msra.mxu0 %v1944
    %2026 = vmatmul.f32.gmra.mxu0 %v1936
    %v2027 = vpop.f32.mrf.mxu0
    %v2028 = vadd.f32 %v1865, %v2027
    %2029 = vdwg.mxu0
    %2030 = vmatpush.msra.mxu0 0.0
    %2031 = vmatpush.msra.mxu0 0.0
    %2032 = vmatpush.msra.mxu0 0.0
    %2033 = vmatpush.msra.mxu0 0.0
    %2034 = vmatpush.msra.mxu0 0.0
    %2035 = vmatpush.msra.mxu0 0.0
    %2036 = vmatpush.msra.mxu0 0.0
    %2037 = vmatpush.msra.mxu0 0.0
    %2038 = vmatpush.msra.mxu0 0.0
    %2039 = vmatpush.msra.mxu0 0.0
    %2040 = vmatpush.msra.mxu0 0.0
    %2041 = vmatpush.msra.mxu0 0.0
    %2042 = vmatpush.msra.mxu0 0.0
    %2043 = vmatpush.msra.mxu0 0.0
    %2044 = vmatpush.msra.mxu0 0.0
    %2045 = vmatpush.msra.mxu0 %v1946
    %2046 = vmatmul.f32.gmra.mxu0 %v1936
    %v2047 = vpop.f32.mrf.mxu0
    %v2048 = vadd.f32 %v1885, %v2047
    %2049 = vdwg.mxu0
    %2050 = vmatpush.msra.mxu0 0.0
    %2051 = vmatpush.msra.mxu0 0.0
    %2052 = vmatpush.msra.mxu0 0.0
    %2053 = vmatpush.msra.mxu0 0.0
    %2054 = vmatpush.msra.mxu0 0.0
    %2055 = vmatpush.msra.mxu0 0.0
    %2056 = vmatpush.msra.mxu0 0.0
    %2057 = vmatpush.msra.mxu0 0.0
    %2058 = vmatpush.msra.mxu0 0.0
    %2059 = vmatpush.msra.mxu0 0.0
    %2060 = vmatpush.msra.mxu0 0.0
    %2061 = vmatpush.msra.mxu0 0.0
    %2062 = vmatpush.msra.mxu0 0.0
    %2063 = vmatpush.msra.mxu0 0.0
    %2064 = vmatpush.msra.mxu0 0.0
    %2065 = vmatpush.msra.mxu0 %v1948
    %2066 = vmatmul.f32.gmra.mxu0 %v1936
    %v2067 = vpop.f32.mrf.mxu0
    %v2068 = vadd.f32 %v1905, %v2067
    %2069 = vdwg.mxu0
    %v2070 = vld [vmem:[%s375] sm:$0xf]
    %v2071 = vld [vmem:[#allocation2] sm:$0xff]
    %v2072 = vld [vmem:[#allocation2 + $0x8] sm:$0xff]
    %v2073 = vld [vmem:[#allocation2 + $0x10] sm:$0xff]
    %2077 = vst [vmem:[#allocation1] ss:$2 sm:$0xff] %v2071
    %s2078 = scalar_lea.vmem [#allocation1], 16
    %2079 = vst [vmem:[%s2078] ss:$2 sm:$0xff] %v2072
    %s2080 = scalar_lea.vmem [#allocation1], 32
    %2081 = vst [vmem:[%s2080] ss:$2 sm:$0xff] %v2073
    %v2082 = vld.sshfl [vmem:[#allocation1] sm:$0xff pattern:$0x75316420]
    %v2083 = vld.sshfl [vmem:[#allocation1 + $0x8] sm:$0xff pattern:$0x75316420]
    %v2084 = vld.sshfl [vmem:[#allocation1 + $0x10] sm:$0xff pattern:$0x75316420]
    %v2085 = vld.sshfl [vmem:[#allocation1 + $0x18] sm:$0xff pattern:$0x75316420]
    %v2086 = vld.sshfl [vmem:[#allocation1 + $0x20] sm:$0xff pattern:$0x75316420]
    %v2087 = vld.sshfl [vmem:[#allocation1 + $0x28] sm:$0xff pattern:$0x75316420]
    %2088 = vrot.lane.b32.xlu0 %v2082, 17
    %v2089 = vpop.permute.xlu0 %2088
    %2090 = vrot.lane.b32.xlu0 %v2083, 17
    %v2091 = vpop.permute.xlu0 %2090
    %2092 = vrot.lane.b32.xlu0 %v2084, 17
    %v2093 = vpop.permute.xlu0 %2092
    %2094 = vrot.lane.b32.xlu0 %v2085, 17
    %v2095 = vpop.permute.xlu0 %2094
    %2096 = vrot.lane.b32.xlu0 %v2086, 17
    %v2097 = vpop.permute.xlu0 %2096
    %2098 = vrot.lane.b32.xlu0 %v2087, 17
    %v2099 = vpop.permute.xlu0 %2098
    %v2100 = vsel %vm406, %v2089, %v2091
    %v2101 = vsel %vm406, %v2091, %v2093
    %v2102 = vsel %vm406, %v2093, %v2095
    %v2103 = vsel %vm406, %v2095, %v2097
    %v2104 = vsel %vm406, %v2097, %v2099
    %v2106 = vsel %vm75, %v2070, 0
    %v2108 = vsel %vm34, %v2100, 0
    %v2110 = vsel %vm34, %v2101, 0
    %v2112 = vsel %vm34, %v2102, 0
    %v2114 = vsel %vm34, %v2103, 0
    %v2116 = vsel %vm34, %v2104, 0
    %v2118 = vsel %vm34, %v2099, 0
    %2120 = vmatpush.msra.mxu0 0.0
    %2121 = vmatpush.msra.mxu0 0.0
    %2122 = vmatpush.msra.mxu0 0.0
    %2123 = vmatpush.msra.mxu0 0.0
    %2124 = vmatpush.msra.mxu0 0.0
    %2125 = vmatpush.msra.mxu0 0.0
    %2126 = vmatpush.msra.mxu0 0.0
    %2127 = vmatpush.msra.mxu0 0.0
    %2128 = vmatpush.msra.mxu0 0.0
    %2129 = vmatpush.msra.mxu0 0.0
    %2130 = vmatpush.msra.mxu0 0.0
    %2131 = vmatpush.msra.mxu0 0.0
    %2132 = vmatpush.msra.mxu0 0.0
    %2133 = vmatpush.msra.mxu0 0.0
    %2134 = vmatpush.msra.mxu0 0.0
    %2135 = vmatpush.msra.mxu0 %v2108
    %2136 = vmatmul.f32.gmra.mxu0 %v2106
    %v2137 = vpop.f32.mrf.mxu0
    %v2138 = vadd.f32 0.0, %v2137
    %2139 = vdwg.mxu0
    %2140 = vmatpush.msra.mxu0 0.0
    %2141 = vmatpush.msra.mxu0 0.0
    %2142 = vmatpush.msra.mxu0 0.0
    %2143 = vmatpush.msra.mxu0 0.0
    %2144 = vmatpush.msra.mxu0 0.0
    %2145 = vmatpush.msra.mxu0 0.0
    %2146 = vmatpush.msra.mxu0 0.0
    %2147 = vmatpush.msra.mxu0 0.0
    %2148 = vmatpush.msra.mxu0 0.0
    %2149 = vmatpush.msra.mxu0 0.0
    %2150 = vmatpush.msra.mxu0 0.0
    %2151 = vmatpush.msra.mxu0 0.0
    %2152 = vmatpush.msra.mxu0 0.0
    %2153 = vmatpush.msra.mxu0 0.0
    %2154 = vmatpush.msra.mxu0 0.0
    %2155 = vmatpush.msra.mxu0 %v2110
    %2156 = vmatmul.f32.gmra.mxu0 %v2106
    %v2157 = vpop.f32.mrf.mxu0
    %v2158 = vadd.f32 0.0, %v2157
    %2159 = vdwg.mxu0
    %2160 = vmatpush.msra.mxu0 0.0
    %2161 = vmatpush.msra.mxu0 0.0
    %2162 = vmatpush.msra.mxu0 0.0
    %2163 = vmatpush.msra.mxu0 0.0
    %2164 = vmatpush.msra.mxu0 0.0
    %2165 = vmatpush.msra.mxu0 0.0
    %2166 = vmatpush.msra.mxu0 0.0
    %2167 = vmatpush.msra.mxu0 0.0
    %2168 = vmatpush.msra.mxu0 0.0
    %2169 = vmatpush.msra.mxu0 0.0
    %2170 = vmatpush.msra.mxu0 0.0
    %2171 = vmatpush.msra.mxu0 0.0
    %2172 = vmatpush.msra.mxu0 0.0
    %2173 = vmatpush.msra.mxu0 0.0
    %2174 = vmatpush.msra.mxu0 0.0
    %2175 = vmatpush.msra.mxu0 %v2112
    %2176 = vmatmul.f32.gmra.mxu0 %v2106
    %v2177 = vpop.f32.mrf.mxu0
    %v2178 = vadd.f32 0.0, %v2177
    %2179 = vdwg.mxu0
    %2180 = vmatpush.msra.mxu0 0.0
    %2181 = vmatpush.msra.mxu0 0.0
    %2182 = vmatpush.msra.mxu0 0.0
    %2183 = vmatpush.msra.mxu0 0.0
    %2184 = vmatpush.msra.mxu0 0.0
    %2185 = vmatpush.msra.mxu0 0.0
    %2186 = vmatpush.msra.mxu0 0.0
    %2187 = vmatpush.msra.mxu0 0.0
    %2188 = vmatpush.msra.mxu0 0.0
    %2189 = vmatpush.msra.mxu0 0.0
    %2190 = vmatpush.msra.mxu0 0.0
    %2191 = vmatpush.msra.mxu0 0.0
    %2192 = vmatpush.msra.mxu0 0.0
    %2193 = vmatpush.msra.mxu0 0.0
    %2194 = vmatpush.msra.mxu0 0.0
    %2195 = vmatpush.msra.mxu0 %v2114
    %2196 = vmatmul.f32.gmra.mxu0 %v2106
    %v2197 = vpop.f32.mrf.mxu0
    %v2198 = vadd.f32 0.0, %v2197
    %2199 = vdwg.mxu0
    %2200 = vmatpush.msra.mxu0 0.0
    %2201 = vmatpush.msra.mxu0 0.0
    %2202 = vmatpush.msra.mxu0 0.0
    %2203 = vmatpush.msra.mxu0 0.0
    %2204 = vmatpush.msra.mxu0 0.0
    %2205 = vmatpush.msra.mxu0 0.0
    %2206 = vmatpush.msra.mxu0 0.0
    %2207 = vmatpush.msra.mxu0 0.0
    %2208 = vmatpush.msra.mxu0 0.0
    %2209 = vmatpush.msra.mxu0 0.0
    %2210 = vmatpush.msra.mxu0 0.0
    %2211 = vmatpush.msra.mxu0 0.0
    %2212 = vmatpush.msra.mxu0 0.0
    %2213 = vmatpush.msra.mxu0 0.0
    %2214 = vmatpush.msra.mxu0 0.0
    %2215 = vmatpush.msra.mxu0 %v2116
    %2216 = vmatmul.f32.gmra.mxu0 %v2106
    %v2217 = vpop.f32.mrf.mxu0
    %v2218 = vadd.f32 0.0, %v2217
    %2219 = vdwg.mxu0
    %2220 = vmatpush.msra.mxu0 0.0
    %2221 = vmatpush.msra.mxu0 0.0
    %2222 = vmatpush.msra.mxu0 0.0
    %2223 = vmatpush.msra.mxu0 0.0
    %2224 = vmatpush.msra.mxu0 0.0
    %2225 = vmatpush.msra.mxu0 0.0
    %2226 = vmatpush.msra.mxu0 0.0
    %2227 = vmatpush.msra.mxu0 0.0
    %2228 = vmatpush.msra.mxu0 0.0
    %2229 = vmatpush.msra.mxu0 0.0
    %2230 = vmatpush.msra.mxu0 0.0
    %2231 = vmatpush.msra.mxu0 0.0
    %2232 = vmatpush.msra.mxu0 0.0
    %2233 = vmatpush.msra.mxu0 0.0
    %2234 = vmatpush.msra.mxu0 0.0
    %2235 = vmatpush.msra.mxu0 %v2118
    %2236 = vmatmul.f32.gmra.mxu0 %v2106
    %v2237 = vpop.f32.mrf.mxu0
    %v2238 = vadd.f32 0.0, %v2237
    %2239 = vdwg.mxu0
    %v2240 = vadd.f32 %v1968, %v2138
    %v2241 = vadd.f32 %v1988, %v2158
    %v2242 = vadd.f32 %v2008, %v2178
    %v2243 = vadd.f32 %v2028, %v2198
    %v2244 = vadd.f32 %v2048, %v2218
    %v2245 = vadd.f32 %v2068, %v2238
    %v2246 = vld [vmem:[%s553] sm:$0xf]
    %v2247 = vld [vmem:[#allocation2] sm:$0xff]
    %v2248 = vld [vmem:[#allocation2 + $0x8] sm:$0xff]
    %v2249 = vld [vmem:[#allocation2 + $0x10] sm:$0xff]
    %v2250 = vld [vmem:[#allocation2 + $0x18] sm:$0xf]
    %2255 = vst [vmem:[#allocation1] ss:$2 sm:$0xff] %v2247
    %s2256 = scalar_lea.vmem [#allocation1], 16
    %2257 = vst [vmem:[%s2256] ss:$2 sm:$0xff] %v2248
    %s2258 = scalar_lea.vmem [#allocation1], 32
    %2259 = vst [vmem:[%s2258] ss:$2 sm:$0xff] %v2249
    %s2260 = scalar_lea.vmem [#allocation1], 48
    %2261 = vst [vmem:[%s2260] ss:$2 sm:$0xff] %v2250
    %v2262 = vld.sshfl [vmem:[#allocation1] sm:$0xff pattern:$0x75316420]
    %v2263 = vld.sshfl [vmem:[#allocation1 + $0x8] sm:$0xff pattern:$0x75316420]
    %v2264 = vld.sshfl [vmem:[#allocation1 + $0x10] sm:$0xff pattern:$0x75316420]
    %v2265 = vld.sshfl [vmem:[#allocation1 + $0x18] sm:$0xff pattern:$0x75316420]
    %v2266 = vld.sshfl [vmem:[#allocation1 + $0x20] sm:$0xff pattern:$0x75316420]
    %v2267 = vld.sshfl [vmem:[#allocation1 + $0x28] sm:$0xff pattern:$0x75316420]
    %v2268 = vld.sshfl [vmem:[#allocation1 + $0x30] sm:$0xff pattern:$0x75316420]
    %2269 = vrot.lane.b32.xlu0 %v2262, 1
    %v2270 = vpop.permute.xlu0 %2269
    %2271 = vrot.lane.b32.xlu0 %v2263, 1
    %v2272 = vpop.permute.xlu0 %2271
    %2273 = vrot.lane.b32.xlu0 %v2264, 1
    %v2274 = vpop.permute.xlu0 %2273
    %2275 = vrot.lane.b32.xlu0 %v2265, 1
    %v2276 = vpop.permute.xlu0 %2275
    %2277 = vrot.lane.b32.xlu0 %v2266, 1
    %v2278 = vpop.permute.xlu0 %2277
    %2279 = vrot.lane.b32.xlu0 %v2267, 1
    %v2280 = vpop.permute.xlu0 %2279
    %2281 = vrot.lane.b32.xlu0 %v2268, 1
    %v2282 = vpop.permute.xlu0 %2281
    %v2283 = vsel %vm591, %v2270, %v2272
    %v2284 = vsel %vm591, %v2272, %v2274
    %v2285 = vsel %vm591, %v2274, %v2276
    %v2286 = vsel %vm591, %v2276, %v2278
    %v2287 = vsel %vm591, %v2278, %v2280
    %v2288 = vsel %vm591, %v2280, %v2282
    %v2290 = vsel %vm75, %v2246, 0
    %v2292 = vsel %vm34, %v2283, 0
    %v2294 = vsel %vm34, %v2284, 0
    %v2296 = vsel %vm34, %v2285, 0
    %v2298 = vsel %vm34, %v2286, 0
    %v2300 = vsel %vm34, %v2287, 0
    %v2302 = vsel %vm34, %v2288, 0
    %2304 = vmatpush.msra.mxu0 0.0
    %2305 = vmatpush.msra.mxu0 0.0
    %2306 = vmatpush.msra.mxu0 0.0
    %2307 = vmatpush.msra.mxu0 0.0
    %2308 = vmatpush.msra.mxu0 0.0
    %2309 = vmatpush.msra.mxu0 0.0
    %2310 = vmatpush.msra.mxu0 0.0
    %2311 = vmatpush.msra.mxu0 0.0
    %2312 = vmatpush.msra.mxu0 0.0
    %2313 = vmatpush.msra.mxu0 0.0
    %2314 = vmatpush.msra.mxu0 0.0
    %2315 = vmatpush.msra.mxu0 0.0
    %2316 = vmatpush.msra.mxu0 0.0
    %2317 = vmatpush.msra.mxu0 0.0
    %2318 = vmatpush.msra.mxu0 0.0
    %2319 = vmatpush.msra.mxu0 %v2292
    %2320 = vmatmul.f32.gmra.mxu0 %v2290
    %v2321 = vpop.f32.mrf.mxu0
    %v2322 = vadd.f32 0.0, %v2321
    %2323 = vdwg.mxu0
    %2324 = vmatpush.msra.mxu0 0.0
    %2325 = vmatpush.msra.mxu0 0.0
    %2326 = vmatpush.msra.mxu0 0.0
    %2327 = vmatpush.msra.mxu0 0.0
    %2328 = vmatpush.msra.mxu0 0.0
    %2329 = vmatpush.msra.mxu0 0.0
    %2330 = vmatpush.msra.mxu0 0.0
    %2331 = vmatpush.msra.mxu0 0.0
    %2332 = vmatpush.msra.mxu0 0.0
    %2333 = vmatpush.msra.mxu0 0.0
    %2334 = vmatpush.msra.mxu0 0.0
    %2335 = vmatpush.msra.mxu0 0.0
    %2336 = vmatpush.msra.mxu0 0.0
    %2337 = vmatpush.msra.mxu0 0.0
    %2338 = vmatpush.msra.mxu0 0.0
    %2339 = vmatpush.msra.mxu0 %v2294
    %2340 = vmatmul.f32.gmra.mxu0 %v2290
    %v2341 = vpop.f32.mrf.mxu0
    %v2342 = vadd.f32 0.0, %v2341
    %2343 = vdwg.mxu0
    %2344 = vmatpush.msra.mxu0 0.0
    %2345 = vmatpush.msra.mxu0 0.0
    %2346 = vmatpush.msra.mxu0 0.0
    %2347 = vmatpush.msra.mxu0 0.0
    %2348 = vmatpush.msra.mxu0 0.0
    %2349 = vmatpush.msra.mxu0 0.0
    %2350 = vmatpush.msra.mxu0 0.0
    %2351 = vmatpush.msra.mxu0 0.0
    %2352 = vmatpush.msra.mxu0 0.0
    %2353 = vmatpush.msra.mxu0 0.0
    %2354 = vmatpush.msra.mxu0 0.0
    %2355 = vmatpush.msra.mxu0 0.0
    %2356 = vmatpush.msra.mxu0 0.0
    %2357 = vmatpush.msra.mxu0 0.0
    %2358 = vmatpush.msra.mxu0 0.0
    %2359 = vmatpush.msra.mxu0 %v2296
    %2360 = vmatmul.f32.gmra.mxu0 %v2290
    %v2361 = vpop.f32.mrf.mxu0
    %v2362 = vadd.f32 0.0, %v2361
    %2363 = vdwg.mxu0
    %2364 = vmatpush.msra.mxu0 0.0
    %2365 = vmatpush.msra.mxu0 0.0
    %2366 = vmatpush.msra.mxu0 0.0
    %2367 = vmatpush.msra.mxu0 0.0
    %2368 = vmatpush.msra.mxu0 0.0
    %2369 = vmatpush.msra.mxu0 0.0
    %2370 = vmatpush.msra.mxu0 0.0
    %2371 = vmatpush.msra.mxu0 0.0
    %2372 = vmatpush.msra.mxu0 0.0
    %2373 = vmatpush.msra.mxu0 0.0
    %2374 = vmatpush.msra.mxu0 0.0
    %2375 = vmatpush.msra.mxu0 0.0
    %2376 = vmatpush.msra.mxu0 0.0
    %2377 = vmatpush.msra.mxu0 0.0
    %2378 = vmatpush.msra.mxu0 0.0
    %2379 = vmatpush.msra.mxu0 %v2298
    %2380 = vmatmul.f32.gmra.mxu0 %v2290
    %v2381 = vpop.f32.mrf.mxu0
    %v2382 = vadd.f32 0.0, %v2381
    %2383 = vdwg.mxu0
    %2384 = vmatpush.msra.mxu0 0.0
    %2385 = vmatpush.msra.mxu0 0.0
    %2386 = vmatpush.msra.mxu0 0.0
    %2387 = vmatpush.msra.mxu0 0.0
    %2388 = vmatpush.msra.mxu0 0.0
    %2389 = vmatpush.msra.mxu0 0.0
    %2390 = vmatpush.msra.mxu0 0.0
    %2391 = vmatpush.msra.mxu0 0.0
    %2392 = vmatpush.msra.mxu0 0.0
    %2393 = vmatpush.msra.mxu0 0.0
    %2394 = vmatpush.msra.mxu0 0.0
    %2395 = vmatpush.msra.mxu0 0.0
    %2396 = vmatpush.msra.mxu0 0.0
    %2397 = vmatpush.msra.mxu0 0.0
    %2398 = vmatpush.msra.mxu0 0.0
    %2399 = vmatpush.msra.mxu0 %v2300
    %2400 = vmatmul.f32.gmra.mxu0 %v2290
    %v2401 = vpop.f32.mrf.mxu0
    %v2402 = vadd.f32 0.0, %v2401
    %2403 = vdwg.mxu0
    %2404 = vmatpush.msra.mxu0 0.0
    %2405 = vmatpush.msra.mxu0 0.0
    %2406 = vmatpush.msra.mxu0 0.0
    %2407 = vmatpush.msra.mxu0 0.0
    %2408 = vmatpush.msra.mxu0 0.0
    %2409 = vmatpush.msra.mxu0 0.0
    %2410 = vmatpush.msra.mxu0 0.0
    %2411 = vmatpush.msra.mxu0 0.0
    %2412 = vmatpush.msra.mxu0 0.0
    %2413 = vmatpush.msra.mxu0 0.0
    %2414 = vmatpush.msra.mxu0 0.0
    %2415 = vmatpush.msra.mxu0 0.0
    %2416 = vmatpush.msra.mxu0 0.0
    %2417 = vmatpush.msra.mxu0 0.0
    %2418 = vmatpush.msra.mxu0 0.0
    %2419 = vmatpush.msra.mxu0 %v2302
    %2420 = vmatmul.f32.gmra.mxu0 %v2290
    %v2421 = vpop.f32.mrf.mxu0
    %v2422 = vadd.f32 0.0, %v2421
    %2423 = vdwg.mxu0
    %v2424 = vadd.f32 %v2240, %v2322
    %v2425 = vadd.f32 %v2241, %v2342
    %v2426 = vadd.f32 %v2242, %v2362
    %v2427 = vadd.f32 %v2243, %v2382
    %v2428 = vadd.f32 %v2244, %v2402
    %v2429 = vadd.f32 %v2245, %v2422
    %v2430 = vld [vmem:[%s739] sm:$0xf]
    %v2431 = vld [vmem:[#allocation2 + $0x4] sm:$0xff]
    %v2432 = vld [vmem:[#allocation2 + $0xc] sm:$0xff]
    %v2433 = vld [vmem:[#allocation2 + $0x14] sm:$0xff]
    %2437 = vst [vmem:[#allocation1] ss:$2 sm:$0xff] %v2431
    %s2438 = scalar_lea.vmem [#allocation1], 16
    %2439 = vst [vmem:[%s2438] ss:$2 sm:$0xff] %v2432
    %s2440 = scalar_lea.vmem [#allocation1], 32
    %2441 = vst [vmem:[%s2440] ss:$2 sm:$0xff] %v2433
    %v2442 = vld.sshfl [vmem:[#allocation1] sm:$0xff pattern:$0x75316420]
    %v2443 = vld.sshfl [vmem:[#allocation1 + $0x8] sm:$0xff pattern:$0x75316420]
    %v2444 = vld.sshfl [vmem:[#allocation1 + $0x10] sm:$0xff pattern:$0x75316420]
    %v2445 = vld.sshfl [vmem:[#allocation1 + $0x18] sm:$0xff pattern:$0x75316420]
    %v2446 = vld.sshfl [vmem:[#allocation1 + $0x20] sm:$0xff pattern:$0x75316420]
    %v2447 = vld.sshfl [vmem:[#allocation1 + $0x28] sm:$0xff pattern:$0x75316420]
    %v2449 = vsel %vm75, %v2430, 0
    %v2451 = vsel %vm34, %v2442, 0
    %v2453 = vsel %vm34, %v2443, 0
    %v2455 = vsel %vm34, %v2444, 0
    %v2457 = vsel %vm34, %v2445, 0
    %v2459 = vsel %vm34, %v2446, 0
    %v2461 = vsel %vm34, %v2447, 0
    %2463 = vmatpush.msra.mxu0 0.0
    %2464 = vmatpush.msra.mxu0 0.0
    %2465 = vmatpush.msra.mxu0 0.0
    %2466 = vmatpush.msra.mxu0 0.0
    %2467 = vmatpush.msra.mxu0 0.0
    %2468 = vmatpush.msra.mxu0 0.0
    %2469 = vmatpush.msra.mxu0 0.0
    %2470 = vmatpush.msra.mxu0 0.0
    %2471 = vmatpush.msra.mxu0 0.0
    %2472 = vmatpush.msra.mxu0 0.0
    %2473 = vmatpush.msra.mxu0 0.0
    %2474 = vmatpush.msra.mxu0 0.0
    %2475 = vmatpush.msra.mxu0 0.0
    %2476 = vmatpush.msra.mxu0 0.0
    %2477 = vmatpush.msra.mxu0 0.0
    %2478 = vmatpush.msra.mxu0 %v2451
    %2479 = vmatmul.f32.gmra.mxu0 %v2449
    %v2480 = vpop.f32.mrf.mxu0
    %v2481 = vadd.f32 0.0, %v2480
    %2482 = vdwg.mxu0
    %2483 = vmatpush.msra.mxu0 0.0
    %2484 = vmatpush.msra.mxu0 0.0
    %2485 = vmatpush.msra.mxu0 0.0
    %2486 = vmatpush.msra.mxu0 0.0
    %2487 = vmatpush.msra.mxu0 0.0
    %2488 = vmatpush.msra.mxu0 0.0
    %2489 = vmatpush.msra.mxu0 0.0
    %2490 = vmatpush.msra.mxu0 0.0
    %2491 = vmatpush.msra.mxu0 0.0
    %2492 = vmatpush.msra.mxu0 0.0
    %2493 = vmatpush.msra.mxu0 0.0
    %2494 = vmatpush.msra.mxu0 0.0
    %2495 = vmatpush.msra.mxu0 0.0
    %2496 = vmatpush.msra.mxu0 0.0
    %2497 = vmatpush.msra.mxu0 0.0
    %2498 = vmatpush.msra.mxu0 %v2453
    %2499 = vmatmul.f32.gmra.mxu0 %v2449
    %v2500 = vpop.f32.mrf.mxu0
    %v2501 = vadd.f32 0.0, %v2500
    %2502 = vdwg.mxu0
    %2503 = vmatpush.msra.mxu0 0.0
    %2504 = vmatpush.msra.mxu0 0.0
    %2505 = vmatpush.msra.mxu0 0.0
    %2506 = vmatpush.msra.mxu0 0.0
    %2507 = vmatpush.msra.mxu0 0.0
    %2508 = vmatpush.msra.mxu0 0.0
    %2509 = vmatpush.msra.mxu0 0.0
    %2510 = vmatpush.msra.mxu0 0.0
    %2511 = vmatpush.msra.mxu0 0.0
    %2512 = vmatpush.msra.mxu0 0.0
    %2513 = vmatpush.msra.mxu0 0.0
    %2514 = vmatpush.msra.mxu0 0.0
    %2515 = vmatpush.msra.mxu0 0.0
    %2516 = vmatpush.msra.mxu0 0.0
    %2517 = vmatpush.msra.mxu0 0.0
    %2518 = vmatpush.msra.mxu0 %v2455
    %2519 = vmatmul.f32.gmra.mxu0 %v2449
    %v2520 = vpop.f32.mrf.mxu0
    %v2521 = vadd.f32 0.0, %v2520
    %2522 = vdwg.mxu0
    %2523 = vmatpush.msra.mxu0 0.0
    %2524 = vmatpush.msra.mxu0 0.0
    %2525 = vmatpush.msra.mxu0 0.0
    %2526 = vmatpush.msra.mxu0 0.0
    %2527 = vmatpush.msra.mxu0 0.0
    %2528 = vmatpush.msra.mxu0 0.0
    %2529 = vmatpush.msra.mxu0 0.0
    %2530 = vmatpush.msra.mxu0 0.0
    %2531 = vmatpush.msra.mxu0 0.0
    %2532 = vmatpush.msra.mxu0 0.0
    %2533 = vmatpush.msra.mxu0 0.0
    %2534 = vmatpush.msra.mxu0 0.0
    %2535 = vmatpush.msra.mxu0 0.0
    %2536 = vmatpush.msra.mxu0 0.0
    %2537 = vmatpush.msra.mxu0 0.0
    %2538 = vmatpush.msra.mxu0 %v2457
    %2539 = vmatmul.f32.gmra.mxu0 %v2449
    %v2540 = vpop.f32.mrf.mxu0
    %v2541 = vadd.f32 0.0, %v2540
    %2542 = vdwg.mxu0
    %2543 = vmatpush.msra.mxu0 0.0
    %2544 = vmatpush.msra.mxu0 0.0
    %2545 = vmatpush.msra.mxu0 0.0
    %2546 = vmatpush.msra.mxu0 0.0
    %2547 = vmatpush.msra.mxu0 0.0
    %2548 = vmatpush.msra.mxu0 0.0
    %2549 = vmatpush.msra.mxu0 0.0
    %2550 = vmatpush.msra.mxu0 0.0
    %2551 = vmatpush.msra.mxu0 0.0
    %2552 = vmatpush.msra.mxu0 0.0
    %2553 = vmatpush.msra.mxu0 0.0
    %2554 = vmatpush.msra.mxu0 0.0
    %2555 = vmatpush.msra.mxu0 0.0
    %2556 = vmatpush.msra.mxu0 0.0
    %2557 = vmatpush.msra.mxu0 0.0
    %2558 = vmatpush.msra.mxu0 %v2459
    %2559 = vmatmul.f32.gmra.mxu0 %v2449
    %v2560 = vpop.f32.mrf.mxu0
    %v2561 = vadd.f32 0.0, %v2560
    %2562 = vdwg.mxu0
    %2563 = vmatpush.msra.mxu0 0.0
    %2564 = vmatpush.msra.mxu0 0.0
    %2565 = vmatpush.msra.mxu0 0.0
    %2566 = vmatpush.msra.mxu0 0.0
    %2567 = vmatpush.msra.mxu0 0.0
    %2568 = vmatpush.msra.mxu0 0.0
    %2569 = vmatpush.msra.mxu0 0.0
    %2570 = vmatpush.msra.mxu0 0.0
    %2571 = vmatpush.msra.mxu0 0.0
    %2572 = vmatpush.msra.mxu0 0.0
    %2573 = vmatpush.msra.mxu0 0.0
    %2574 = vmatpush.msra.mxu0 0.0
    %2575 = vmatpush.msra.mxu0 0.0
    %2576 = vmatpush.msra.mxu0 0.0
    %2577 = vmatpush.msra.mxu0 0.0
    %2578 = vmatpush.msra.mxu0 %v2461
    %2579 = vmatmul.f32.gmra.mxu0 %v2449
    %v2580 = vpop.f32.mrf.mxu0
    %v2581 = vadd.f32 0.0, %v2580
    %2582 = vdwg.mxu0
    %v2583 = vadd.f32 %v2424, %v2481
    %v2584 = vadd.f32 %v2425, %v2501
    %v2585 = vadd.f32 %v2426, %v2521
    %v2586 = vadd.f32 %v2427, %v2541
    %v2587 = vadd.f32 %v2428, %v2561
    %v2588 = vadd.f32 %v2429, %v2581
    %v2589 = vld [vmem:[%s899] sm:$0xf]
    %v2590 = vld [vmem:[#allocation2 + $0x4] sm:$0xff]
    %v2591 = vld [vmem:[#allocation2 + $0xc] sm:$0xff]
    %v2592 = vld [vmem:[#allocation2 + $0x14] sm:$0xff]
    %2596 = vst [vmem:[#allocation1] ss:$2 sm:$0xff] %v2590
    %s2597 = scalar_lea.vmem [#allocation1], 16
    %2598 = vst [vmem:[%s2597] ss:$2 sm:$0xff] %v2591
    %s2599 = scalar_lea.vmem [#allocation1], 32
    %2600 = vst [vmem:[%s2599] ss:$2 sm:$0xff] %v2592
    %v2601 = vld.sshfl [vmem:[#allocation1] sm:$0xff pattern:$0x75316420]
    %v2602 = vld.sshfl [vmem:[#allocation1 + $0x8] sm:$0xff pattern:$0x75316420]
    %v2603 = vld.sshfl [vmem:[#allocation1 + $0x10] sm:$0xff pattern:$0x75316420]
    %v2604 = vld.sshfl [vmem:[#allocation1 + $0x18] sm:$0xff pattern:$0x75316420]
    %v2605 = vld.sshfl [vmem:[#allocation1 + $0x20] sm:$0xff pattern:$0x75316420]
    %v2606 = vld.sshfl [vmem:[#allocation1 + $0x28] sm:$0xff pattern:$0x75316420]
    %2607 = vrot.lane.b32.xlu0 %v2601, 127
    %v2608 = vpop.permute.xlu0 %2607
    %2609 = vrot.lane.b32.xlu0 %v2602, 127
    %v2610 = vpop.permute.xlu0 %2609
    %2611 = vrot.lane.b32.xlu0 %v2603, 127
    %v2612 = vpop.permute.xlu0 %2611
    %2613 = vrot.lane.b32.xlu0 %v2604, 127
    %v2614 = vpop.permute.xlu0 %2613
    %2615 = vrot.lane.b32.xlu0 %v2605, 127
    %v2616 = vpop.permute.xlu0 %2615
    %2617 = vrot.lane.b32.xlu0 %v2606, 127
    %v2618 = vpop.permute.xlu0 %2617
    %v2619 = vsel %vm930, %v2608, %v2610
    %v2620 = vsel %vm930, %v2610, %v2612
    %v2621 = vsel %vm930, %v2612, %v2614
    %v2622 = vsel %vm930, %v2614, %v2616
    %v2623 = vsel %vm930, %v2616, %v2618
    %v2625 = vsel %vm75, %v2589, 0
    %v2627 = vsel %vm34, %v2619, 0
    %v2629 = vsel %vm34, %v2620, 0
    %v2631 = vsel %vm34, %v2621, 0
    %v2633 = vsel %vm34, %v2622, 0
    %v2635 = vsel %vm34, %v2623, 0
    %v2637 = vsel %vm34, %v2618, 0
    %2639 = vmatpush.msra.mxu0 0.0
    %2640 = vmatpush.msra.mxu0 0.0
    %2641 = vmatpush.msra.mxu0 0.0
    %2642 = vmatpush.msra.mxu0 0.0
    %2643 = vmatpush.msra.mxu0 0.0
    %2644 = vmatpush.msra.mxu0 0.0
    %2645 = vmatpush.msra.mxu0 0.0
    %2646 = vmatpush.msra.mxu0 0.0
    %2647 = vmatpush.msra.mxu0 0.0
    %2648 = vmatpush.msra.mxu0 0.0
    %2649 = vmatpush.msra.mxu0 0.0
    %2650 = vmatpush.msra.mxu0 0.0
    %2651 = vmatpush.msra.mxu0 0.0
    %2652 = vmatpush.msra.mxu0 0.0
    %2653 = vmatpush.msra.mxu0 0.0
    %2654 = vmatpush.msra.mxu0 %v2627
    %2655 = vmatmul.f32.gmra.mxu0 %v2625
    %v2656 = vpop.f32.mrf.mxu0
    %v2657 = vadd.f32 0.0, %v2656
    %2658 = vdwg.mxu0
    %2659 = vmatpush.msra.mxu0 0.0
    %2660 = vmatpush.msra.mxu0 0.0
    %2661 = vmatpush.msra.mxu0 0.0
    %2662 = vmatpush.msra.mxu0 0.0
    %2663 = vmatpush.msra.mxu0 0.0
    %2664 = vmatpush.msra.mxu0 0.0
    %2665 = vmatpush.msra.mxu0 0.0
    %2666 = vmatpush.msra.mxu0 0.0
    %2667 = vmatpush.msra.mxu0 0.0
    %2668 = vmatpush.msra.mxu0 0.0
    %2669 = vmatpush.msra.mxu0 0.0
    %2670 = vmatpush.msra.mxu0 0.0
    %2671 = vmatpush.msra.mxu0 0.0
    %2672 = vmatpush.msra.mxu0 0.0
    %2673 = vmatpush.msra.mxu0 0.0
    %2674 = vmatpush.msra.mxu0 %v2629
    %2675 = vmatmul.f32.gmra.mxu0 %v2625
    %v2676 = vpop.f32.mrf.mxu0
    %v2677 = vadd.f32 0.0, %v2676
    %2678 = vdwg.mxu0
    %2679 = vmatpush.msra.mxu0 0.0
    %2680 = vmatpush.msra.mxu0 0.0
    %2681 = vmatpush.msra.mxu0 0.0
    %2682 = vmatpush.msra.mxu0 0.0
    %2683 = vmatpush.msra.mxu0 0.0
    %2684 = vmatpush.msra.mxu0 0.0
    %2685 = vmatpush.msra.mxu0 0.0
    %2686 = vmatpush.msra.mxu0 0.0
    %2687 = vmatpush.msra.mxu0 0.0
    %2688 = vmatpush.msra.mxu0 0.0
    %2689 = vmatpush.msra.mxu0 0.0
    %2690 = vmatpush.msra.mxu0 0.0
    %2691 = vmatpush.msra.mxu0 0.0
    %2692 = vmatpush.msra.mxu0 0.0
    %2693 = vmatpush.msra.mxu0 0.0
    %2694 = vmatpush.msra.mxu0 %v2631
    %2695 = vmatmul.f32.gmra.mxu0 %v2625
    %v2696 = vpop.f32.mrf.mxu0
    %v2697 = vadd.f32 0.0, %v2696
    %2698 = vdwg.mxu0
    %2699 = vmatpush.msra.mxu0 0.0
    %2700 = vmatpush.msra.mxu0 0.0
    %2701 = vmatpush.msra.mxu0 0.0
    %2702 = vmatpush.msra.mxu0 0.0
    %2703 = vmatpush.msra.mxu0 0.0
    %2704 = vmatpush.msra.mxu0 0.0
    %2705 = vmatpush.msra.mxu0 0.0
    %2706 = vmatpush.msra.mxu0 0.0
    %2707 = vmatpush.msra.mxu0 0.0
    %2708 = vmatpush.msra.mxu0 0.0
    %2709 = vmatpush.msra.mxu0 0.0
    %2710 = vmatpush.msra.mxu0 0.0
    %2711 = vmatpush.msra.mxu0 0.0
    %2712 = vmatpush.msra.mxu0 0.0
    %2713 = vmatpush.msra.mxu0 0.0
    %2714 = vmatpush.msra.mxu0 %v2633
    %2715 = vmatmul.f32.gmra.mxu0 %v2625
    %v2716 = vpop.f32.mrf.mxu0
    %v2717 = vadd.f32 0.0, %v2716
    %2718 = vdwg.mxu0
    %2719 = vmatpush.msra.mxu0 0.0
    %2720 = vmatpush.msra.mxu0 0.0
    %2721 = vmatpush.msra.mxu0 0.0
    %2722 = vmatpush.msra.mxu0 0.0
    %2723 = vmatpush.msra.mxu0 0.0
    %2724 = vmatpush.msra.mxu0 0.0
    %2725 = vmatpush.msra.mxu0 0.0
    %2726 = vmatpush.msra.mxu0 0.0
    %2727 = vmatpush.msra.mxu0 0.0
    %2728 = vmatpush.msra.mxu0 0.0
    %2729 = vmatpush.msra.mxu0 0.0
    %2730 = vmatpush.msra.mxu0 0.0
    %2731 = vmatpush.msra.mxu0 0.0
    %2732 = vmatpush.msra.mxu0 0.0
    %2733 = vmatpush.msra.mxu0 0.0
    %2734 = vmatpush.msra.mxu0 %v2635
    %2735 = vmatmul.f32.gmra.mxu0 %v2625
    %v2736 = vpop.f32.mrf.mxu0
    %v2737 = vadd.f32 0.0, %v2736
    %2738 = vdwg.mxu0
    %2739 = vmatpush.msra.mxu0 0.0
    %2740 = vmatpush.msra.mxu0 0.0
    %2741 = vmatpush.msra.mxu0 0.0
    %2742 = vmatpush.msra.mxu0 0.0
    %2743 = vmatpush.msra.mxu0 0.0
    %2744 = vmatpush.msra.mxu0 0.0
    %2745 = vmatpush.msra.mxu0 0.0
    %2746 = vmatpush.msra.mxu0 0.0
    %2747 = vmatpush.msra.mxu0 0.0
    %2748 = vmatpush.msra.mxu0 0.0
    %2749 = vmatpush.msra.mxu0 0.0
    %2750 = vmatpush.msra.mxu0 0.0
    %2751 = vmatpush.msra.mxu0 0.0
    %2752 = vmatpush.msra.mxu0 0.0
    %2753 = vmatpush.msra.mxu0 0.0
    %2754 = vmatpush.msra.mxu0 %v2637
    %2755 = vmatmul.f32.gmra.mxu0 %v2625
    %v2756 = vpop.f32.mrf.mxu0
    %v2757 = vadd.f32 0.0, %v2756
    %2758 = vdwg.mxu0
    %v2759 = vadd.f32 %v2583, %v2657
    %v2760 = vadd.f32 %v2584, %v2677
    %v2761 = vadd.f32 %v2585, %v2697
    %v2762 = vadd.f32 %v2586, %v2717
    %v2763 = vadd.f32 %v2587, %v2737
    %v2764 = vadd.f32 %v2588, %v2757
    %v2765 = vld [vmem:[%s1077] sm:$0xf]
    %v2766 = vld [vmem:[#allocation2 + $0x4] sm:$0xff]
    %v2767 = vld [vmem:[#allocation2 + $0xc] sm:$0xff]
    %v2768 = vld [vmem:[#allocation2 + $0x14] sm:$0xff]
    %2772 = vst [vmem:[#allocation1] ss:$2 sm:$0xff] %v2766
    %s2773 = scalar_lea.vmem [#allocation1], 16
    %2774 = vst [vmem:[%s2773] ss:$2 sm:$0xff] %v2767
    %s2775 = scalar_lea.vmem [#allocation1], 32
    %2776 = vst [vmem:[%s2775] ss:$2 sm:$0xff] %v2768
    %v2777 = vld.sshfl [vmem:[#allocation1] sm:$0xff pattern:$0x75316420]
    %v2778 = vld.sshfl [vmem:[#allocation1 + $0x8] sm:$0xff pattern:$0x75316420]
    %v2779 = vld.sshfl [vmem:[#allocation1 + $0x10] sm:$0xff pattern:$0x75316420]
    %v2780 = vld.sshfl [vmem:[#allocation1 + $0x18] sm:$0xff pattern:$0x75316420]
    %v2781 = vld.sshfl [vmem:[#allocation1 + $0x20] sm:$0xff pattern:$0x75316420]
    %v2782 = vld.sshfl [vmem:[#allocation1 + $0x28] sm:$0xff pattern:$0x75316420]
    %2783 = vrot.lane.b32.xlu0 %v2777, 111
    %v2784 = vpop.permute.xlu0 %2783
    %2785 = vrot.lane.b32.xlu0 %v2778, 111
    %v2786 = vpop.permute.xlu0 %2785
    %2787 = vrot.lane.b32.xlu0 %v2779, 111
    %v2788 = vpop.permute.xlu0 %2787
    %2789 = vrot.lane.b32.xlu0 %v2780, 111
    %v2790 = vpop.permute.xlu0 %2789
    %2791 = vrot.lane.b32.xlu0 %v2781, 111
    %v2792 = vpop.permute.xlu0 %2791
    %2793 = vrot.lane.b32.xlu0 %v2782, 111
    %v2794 = vpop.permute.xlu0 %2793
    %v2795 = vsel %vm1108, %v2784, %v2786
    %v2796 = vsel %vm1108, %v2786, %v2788
    %v2797 = vsel %vm1108, %v2788, %v2790
    %v2798 = vsel %vm1108, %v2790, %v2792
    %v2799 = vsel %vm1108, %v2792, %v2794
    %v2801 = vsel %vm75, %v2765, 0
    %v2803 = vsel %vm34, %v2795, 0
    %v2805 = vsel %vm34, %v2796, 0
    %v2807 = vsel %vm34, %v2797, 0
    %v2809 = vsel %vm34, %v2798, 0
    %v2811 = vsel %vm34, %v2799, 0
    %v2813 = vsel %vm34, %v2794, 0
    %2815 = vmatpush.msra.mxu0 0.0
    %2816 = vmatpush.msra.mxu0 0.0
    %2817 = vmatpush.msra.mxu0 0.0
    %2818 = vmatpush.msra.mxu0 0.0
    %2819 = vmatpush.msra.mxu0 0.0
    %2820 = vmatpush.msra.mxu0 0.0
    %2821 = vmatpush.msra.mxu0 0.0
    %2822 = vmatpush.msra.mxu0 0.0
    %2823 = vmatpush.msra.mxu0 0.0
    %2824 = vmatpush.msra.mxu0 0.0
    %2825 = vmatpush.msra.mxu0 0.0
    %2826 = vmatpush.msra.mxu0 0.0
    %2827 = vmatpush.msra.mxu0 0.0
    %2828 = vmatpush.msra.mxu0 0.0
    %2829 = vmatpush.msra.mxu0 0.0
    %2830 = vmatpush.msra.mxu0 %v2803
    %2831 = vmatmul.f32.gmra.mxu0 %v2801
    %v2832 = vpop.f32.mrf.mxu0
    %v2833 = vadd.f32 0.0, %v2832
    %2834 = vdwg.mxu0
    %2835 = vmatpush.msra.mxu0 0.0
    %2836 = vmatpush.msra.mxu0 0.0
    %2837 = vmatpush.msra.mxu0 0.0
    %2838 = vmatpush.msra.mxu0 0.0
    %2839 = vmatpush.msra.mxu0 0.0
    %2840 = vmatpush.msra.mxu0 0.0
    %2841 = vmatpush.msra.mxu0 0.0
    %2842 = vmatpush.msra.mxu0 0.0
    %2843 = vmatpush.msra.mxu0 0.0
    %2844 = vmatpush.msra.mxu0 0.0
    %2845 = vmatpush.msra.mxu0 0.0
    %2846 = vmatpush.msra.mxu0 0.0
    %2847 = vmatpush.msra.mxu0 0.0
    %2848 = vmatpush.msra.mxu0 0.0
    %2849 = vmatpush.msra.mxu0 0.0
    %2850 = vmatpush.msra.mxu0 %v2805
    %2851 = vmatmul.f32.gmra.mxu0 %v2801
    %v2852 = vpop.f32.mrf.mxu0
    %v2853 = vadd.f32 0.0, %v2852
    %2854 = vdwg.mxu0
    %2855 = vmatpush.msra.mxu0 0.0
    %2856 = vmatpush.msra.mxu0 0.0
    %2857 = vmatpush.msra.mxu0 0.0
    %2858 = vmatpush.msra.mxu0 0.0
    %2859 = vmatpush.msra.mxu0 0.0
    %2860 = vmatpush.msra.mxu0 0.0
    %2861 = vmatpush.msra.mxu0 0.0
    %2862 = vmatpush.msra.mxu0 0.0
    %2863 = vmatpush.msra.mxu0 0.0
    %2864 = vmatpush.msra.mxu0 0.0
    %2865 = vmatpush.msra.mxu0 0.0
    %2866 = vmatpush.msra.mxu0 0.0
    %2867 = vmatpush.msra.mxu0 0.0
    %2868 = vmatpush.msra.mxu0 0.0
    %2869 = vmatpush.msra.mxu0 0.0
    %2870 = vmatpush.msra.mxu0 %v2807
    %2871 = vmatmul.f32.gmra.mxu0 %v2801
    %v2872 = vpop.f32.mrf.mxu0
    %v2873 = vadd.f32 0.0, %v2872
    %2874 = vdwg.mxu0
    %2875 = vmatpush.msra.mxu0 0.0
    %2876 = vmatpush.msra.mxu0 0.0
    %2877 = vmatpush.msra.mxu0 0.0
    %2878 = vmatpush.msra.mxu0 0.0
    %2879 = vmatpush.msra.mxu0 0.0
    %2880 = vmatpush.msra.mxu0 0.0
    %2881 = vmatpush.msra.mxu0 0.0
    %2882 = vmatpush.msra.mxu0 0.0
    %2883 = vmatpush.msra.mxu0 0.0
    %2884 = vmatpush.msra.mxu0 0.0
    %2885 = vmatpush.msra.mxu0 0.0
    %2886 = vmatpush.msra.mxu0 0.0
    %2887 = vmatpush.msra.mxu0 0.0
    %2888 = vmatpush.msra.mxu0 0.0
    %2889 = vmatpush.msra.mxu0 0.0
    %2890 = vmatpush.msra.mxu0 %v2809
    %2891 = vmatmul.f32.gmra.mxu0 %v2801
    %v2892 = vpop.f32.mrf.mxu0
    %v2893 = vadd.f32 0.0, %v2892
    %2894 = vdwg.mxu0
    %2895 = vmatpush.msra.mxu0 0.0
    %2896 = vmatpush.msra.mxu0 0.0
    %2897 = vmatpush.msra.mxu0 0.0
    %2898 = vmatpush.msra.mxu0 0.0
    %2899 = vmatpush.msra.mxu0 0.0
    %2900 = vmatpush.msra.mxu0 0.0
    %2901 = vmatpush.msra.mxu0 0.0
    %2902 = vmatpush.msra.mxu0 0.0
    %2903 = vmatpush.msra.mxu0 0.0
    %2904 = vmatpush.msra.mxu0 0.0
    %2905 = vmatpush.msra.mxu0 0.0
    %2906 = vmatpush.msra.mxu0 0.0
    %2907 = vmatpush.msra.mxu0 0.0
    %2908 = vmatpush.msra.mxu0 0.0
    %2909 = vmatpush.msra.mxu0 0.0
    %2910 = vmatpush.msra.mxu0 %v2811
    %2911 = vmatmul.f32.gmra.mxu0 %v2801
    %v2912 = vpop.f32.mrf.mxu0
    %v2913 = vadd.f32 0.0, %v2912
    %2914 = vdwg.mxu0
    %2915 = vmatpush.msra.mxu0 0.0
    %2916 = vmatpush.msra.mxu0 0.0
    %2917 = vmatpush.msra.mxu0 0.0
    %2918 = vmatpush.msra.mxu0 0.0
    %2919 = vmatpush.msra.mxu0 0.0
    %2920 = vmatpush.msra.mxu0 0.0
    %2921 = vmatpush.msra.mxu0 0.0
    %2922 = vmatpush.msra.mxu0 0.0
    %2923 = vmatpush.msra.mxu0 0.0
    %2924 = vmatpush.msra.mxu0 0.0
    %2925 = vmatpush.msra.mxu0 0.0
    %2926 = vmatpush.msra.mxu0 0.0
    %2927 = vmatpush.msra.mxu0 0.0
    %2928 = vmatpush.msra.mxu0 0.0
    %2929 = vmatpush.msra.mxu0 0.0
    %2930 = vmatpush.msra.mxu0 %v2813
    %2931 = vmatmul.f32.gmra.mxu0 %v2801
    %v2932 = vpop.f32.mrf.mxu0
    %v2933 = vadd.f32 0.0, %v2932
    %2934 = vdwg.mxu0
    %v2935 = vadd.f32 %v2759, %v2833
    %v2936 = vadd.f32 %v2760, %v2853
    %v2937 = vadd.f32 %v2761, %v2873
    %v2938 = vadd.f32 %v2762, %v2893
    %v2939 = vadd.f32 %v2763, %v2913
    %v2940 = vadd.f32 %v2764, %v2933
    %v2941 = vld [vmem:[%s1255] sm:$0xf]
    %v2942 = vld [vmem:[#allocation2 + $0x4] sm:$0xff]
    %v2943 = vld [vmem:[#allocation2 + $0xc] sm:$0xff]
    %v2944 = vld [vmem:[#allocation2 + $0x14] sm:$0xff]
    %2948 = vst [vmem:[#allocation1] ss:$2 sm:$0xff] %v2942
    %s2949 = scalar_lea.vmem [#allocation1], 16
    %2950 = vst [vmem:[%s2949] ss:$2 sm:$0xff] %v2943
    %s2951 = scalar_lea.vmem [#allocation1], 32
    %2952 = vst [vmem:[%s2951] ss:$2 sm:$0xff] %v2944
    %v2953 = vld.sshfl [vmem:[#allocation1] sm:$0xff pattern:$0x75316420]
    %v2954 = vld.sshfl [vmem:[#allocation1 + $0x8] sm:$0xff pattern:$0x75316420]
    %v2955 = vld.sshfl [vmem:[#allocation1 + $0x10] sm:$0xff pattern:$0x75316420]
    %v2956 = vld.sshfl [vmem:[#allocation1 + $0x18] sm:$0xff pattern:$0x75316420]
    %v2957 = vld.sshfl [vmem:[#allocation1 + $0x20] sm:$0xff pattern:$0x75316420]
    %v2958 = vld.sshfl [vmem:[#allocation1 + $0x28] sm:$0xff pattern:$0x75316420]
    %2959 = vrot.lane.b32.xlu0 %v2953, 110
    %v2960 = vpop.permute.xlu0 %2959
    %2961 = vrot.lane.b32.xlu0 %v2954, 110
    %v2962 = vpop.permute.xlu0 %2961
    %2963 = vrot.lane.b32.xlu0 %v2955, 110
    %v2964 = vpop.permute.xlu0 %2963
    %2965 = vrot.lane.b32.xlu0 %v2956, 110
    %v2966 = vpop.permute.xlu0 %2965
    %2967 = vrot.lane.b32.xlu0 %v2957, 110
    %v2968 = vpop.permute.xlu0 %2967
    %2969 = vrot.lane.b32.xlu0 %v2958, 110
    %v2970 = vpop.permute.xlu0 %2969
    %v2971 = vsel %vm1286, %v2960, %v2962
    %v2972 = vsel %vm1286, %v2962, %v2964
    %v2973 = vsel %vm1286, %v2964, %v2966
    %v2974 = vsel %vm1286, %v2966, %v2968
    %v2975 = vsel %vm1286, %v2968, %v2970
    %v2977 = vsel %vm75, %v2941, 0
    %v2979 = vsel %vm34, %v2971, 0
    %v2981 = vsel %vm34, %v2972, 0
    %v2983 = vsel %vm34, %v2973, 0
    %v2985 = vsel %vm34, %v2974, 0
    %v2987 = vsel %vm34, %v2975, 0
    %v2989 = vsel %vm34, %v2970, 0
    %2991 = vmatpush.msra.mxu0 0.0
    %2992 = vmatpush.msra.mxu0 0.0
    %2993 = vmatpush.msra.mxu0 0.0
    %2994 = vmatpush.msra.mxu0 0.0
    %2995 = vmatpush.msra.mxu0 0.0
    %2996 = vmatpush.msra.mxu0 0.0
    %2997 = vmatpush.msra.mxu0 0.0
    %2998 = vmatpush.msra.mxu0 0.0
    %2999 = vmatpush.msra.mxu0 0.0
    %3000 = vmatpush.msra.mxu0 0.0
    %3001 = vmatpush.msra.mxu0 0.0
    %3002 = vmatpush.msra.mxu0 0.0
    %3003 = vmatpush.msra.mxu0 0.0
    %3004 = vmatpush.msra.mxu0 0.0
    %3005 = vmatpush.msra.mxu0 0.0
    %3006 = vmatpush.msra.mxu0 %v2979
    %3007 = vmatmul.f32.gmra.mxu0 %v2977
    %v3008 = vpop.f32.mrf.mxu0
    %v3009 = vadd.f32 0.0, %v3008
    %3010 = vdwg.mxu0
    %3011 = vmatpush.msra.mxu0 0.0
    %3012 = vmatpush.msra.mxu0 0.0
    %3013 = vmatpush.msra.mxu0 0.0
    %3014 = vmatpush.msra.mxu0 0.0
    %3015 = vmatpush.msra.mxu0 0.0
    %3016 = vmatpush.msra.mxu0 0.0
    %3017 = vmatpush.msra.mxu0 0.0
    %3018 = vmatpush.msra.mxu0 0.0
    %3019 = vmatpush.msra.mxu0 0.0
    %3020 = vmatpush.msra.mxu0 0.0
    %3021 = vmatpush.msra.mxu0 0.0
    %3022 = vmatpush.msra.mxu0 0.0
    %3023 = vmatpush.msra.mxu0 0.0
    %3024 = vmatpush.msra.mxu0 0.0
    %3025 = vmatpush.msra.mxu0 0.0
    %3026 = vmatpush.msra.mxu0 %v2981
    %3027 = vmatmul.f32.gmra.mxu0 %v2977
    %v3028 = vpop.f32.mrf.mxu0
    %v3029 = vadd.f32 0.0, %v3028
    %3030 = vdwg.mxu0
    %3031 = vmatpush.msra.mxu0 0.0
    %3032 = vmatpush.msra.mxu0 0.0
    %3033 = vmatpush.msra.mxu0 0.0
    %3034 = vmatpush.msra.mxu0 0.0
    %3035 = vmatpush.msra.mxu0 0.0
    %3036 = vmatpush.msra.mxu0 0.0
    %3037 = vmatpush.msra.mxu0 0.0
    %3038 = vmatpush.msra.mxu0 0.0
    %3039 = vmatpush.msra.mxu0 0.0
    %3040 = vmatpush.msra.mxu0 0.0
    %3041 = vmatpush.msra.mxu0 0.0
    %3042 = vmatpush.msra.mxu0 0.0
    %3043 = vmatpush.msra.mxu0 0.0
    %3044 = vmatpush.msra.mxu0 0.0
    %3045 = vmatpush.msra.mxu0 0.0
    %3046 = vmatpush.msra.mxu0 %v2983
    %3047 = vmatmul.f32.gmra.mxu0 %v2977
    %v3048 = vpop.f32.mrf.mxu0
    %v3049 = vadd.f32 0.0, %v3048
    %3050 = vdwg.mxu0
    %3051 = vmatpush.msra.mxu0 0.0
    %3052 = vmatpush.msra.mxu0 0.0
    %3053 = vmatpush.msra.mxu0 0.0
    %3054 = vmatpush.msra.mxu0 0.0
    %3055 = vmatpush.msra.mxu0 0.0
    %3056 = vmatpush.msra.mxu0 0.0
    %3057 = vmatpush.msra.mxu0 0.0
    %3058 = vmatpush.msra.mxu0 0.0
    %3059 = vmatpush.msra.mxu0 0.0
    %3060 = vmatpush.msra.mxu0 0.0
    %3061 = vmatpush.msra.mxu0 0.0
    %3062 = vmatpush.msra.mxu0 0.0
    %3063 = vmatpush.msra.mxu0 0.0
    %3064 = vmatpush.msra.mxu0 0.0
    %3065 = vmatpush.msra.mxu0 0.0
    %3066 = vmatpush.msra.mxu0 %v2985
    %3067 = vmatmul.f32.gmra.mxu0 %v2977
    %v3068 = vpop.f32.mrf.mxu0
    %v3069 = vadd.f32 0.0, %v3068
    %3070 = vdwg.mxu0
    %3071 = vmatpush.msra.mxu0 0.0
    %3072 = vmatpush.msra.mxu0 0.0
    %3073 = vmatpush.msra.mxu0 0.0
    %3074 = vmatpush.msra.mxu0 0.0
    %3075 = vmatpush.msra.mxu0 0.0
    %3076 = vmatpush.msra.mxu0 0.0
    %3077 = vmatpush.msra.mxu0 0.0
    %3078 = vmatpush.msra.mxu0 0.0
    %3079 = vmatpush.msra.mxu0 0.0
    %3080 = vmatpush.msra.mxu0 0.0
    %3081 = vmatpush.msra.mxu0 0.0
    %3082 = vmatpush.msra.mxu0 0.0
    %3083 = vmatpush.msra.mxu0 0.0
    %3084 = vmatpush.msra.mxu0 0.0
    %3085 = vmatpush.msra.mxu0 0.0
    %3086 = vmatpush.msra.mxu0 %v2987
    %3087 = vmatmul.f32.gmra.mxu0 %v2977
    %v3088 = vpop.f32.mrf.mxu0
    %v3089 = vadd.f32 0.0, %v3088
    %3090 = vdwg.mxu0
    %3091 = vmatpush.msra.mxu0 0.0
    %3092 = vmatpush.msra.mxu0 0.0
    %3093 = vmatpush.msra.mxu0 0.0
    %3094 = vmatpush.msra.mxu0 0.0
    %3095 = vmatpush.msra.mxu0 0.0
    %3096 = vmatpush.msra.mxu0 0.0
    %3097 = vmatpush.msra.mxu0 0.0
    %3098 = vmatpush.msra.mxu0 0.0
    %3099 = vmatpush.msra.mxu0 0.0
    %3100 = vmatpush.msra.mxu0 0.0
    %3101 = vmatpush.msra.mxu0 0.0
    %3102 = vmatpush.msra.mxu0 0.0
    %3103 = vmatpush.msra.mxu0 0.0
    %3104 = vmatpush.msra.mxu0 0.0
    %3105 = vmatpush.msra.mxu0 0.0
    %3106 = vmatpush.msra.mxu0 %v2989
    %3107 = vmatmul.f32.gmra.mxu0 %v2977
    %v3108 = vpop.f32.mrf.mxu0
    %v3109 = vadd.f32 0.0, %v3108
    %3110 = vdwg.mxu0
    %v3111 = vadd.f32 %v2935, %v3009
    %v3112 = vadd.f32 %v2936, %v3029
    %v3113 = vadd.f32 %v2937, %v3049
    %v3114 = vadd.f32 %v2938, %v3069
    %v3115 = vadd.f32 %v2939, %v3089
    %v3116 = vadd.f32 %v2940, %v3109
    %v3117 = vld [vmem:[%s1433] sm:$0xf]
    %v3118 = vld [vmem:[#allocation2 + $0x4] sm:$0xff]
    %v3119 = vld [vmem:[#allocation2 + $0xc] sm:$0xff]
    %v3120 = vld [vmem:[#allocation2 + $0x14] sm:$0xff]
    %3124 = vst [vmem:[#allocation1] ss:$2 sm:$0xff] %v3118
    %s3125 = scalar_lea.vmem [#allocation1], 16
    %3126 = vst [vmem:[%s3125] ss:$2 sm:$0xff] %v3119
    %s3127 = scalar_lea.vmem [#allocation1], 32
    %3128 = vst [vmem:[%s3127] ss:$2 sm:$0xff] %v3120
    %v3129 = vld.sshfl [vmem:[#allocation1] sm:$0xff pattern:$0x75316420]
    %v3130 = vld.sshfl [vmem:[#allocation1 + $0x8] sm:$0xff pattern:$0x75316420]
    %v3131 = vld.sshfl [vmem:[#allocation1 + $0x10] sm:$0xff pattern:$0x75316420]
    %v3132 = vld.sshfl [vmem:[#allocation1 + $0x18] sm:$0xff pattern:$0x75316420]
    %v3133 = vld.sshfl [vmem:[#allocation1 + $0x20] sm:$0xff pattern:$0x75316420]
    %v3134 = vld.sshfl [vmem:[#allocation1 + $0x28] sm:$0xff pattern:$0x75316420]
    %3135 = vrot.lane.b32.xlu0 %v3129, 109
    %v3136 = vpop.permute.xlu0 %3135
    %3137 = vrot.lane.b32.xlu0 %v3130, 109
    %v3138 = vpop.permute.xlu0 %3137
    %3139 = vrot.lane.b32.xlu0 %v3131, 109
    %v3140 = vpop.permute.xlu0 %3139
    %3141 = vrot.lane.b32.xlu0 %v3132, 109
    %v3142 = vpop.permute.xlu0 %3141
    %3143 = vrot.lane.b32.xlu0 %v3133, 109
    %v3144 = vpop.permute.xlu0 %3143
    %3145 = vrot.lane.b32.xlu0 %v3134, 109
    %v3146 = vpop.permute.xlu0 %3145
    %v3147 = vsel %vm1464, %v3136, %v3138
    %v3148 = vsel %vm1464, %v3138, %v3140
    %v3149 = vsel %vm1464, %v3140, %v3142
    %v3150 = vsel %vm1464, %v3142, %v3144
    %v3151 = vsel %vm1464, %v3144, %v3146
    %v3153 = vsel %vm75, %v3117, 0
    %v3155 = vsel %vm34, %v3147, 0
    %v3157 = vsel %vm34, %v3148, 0
    %v3159 = vsel %vm34, %v3149, 0
    %v3161 = vsel %vm34, %v3150, 0
    %v3163 = vsel %vm34, %v3151, 0
    %v3165 = vsel %vm34, %v3146, 0
    %3167 = vmatpush.msra.mxu0 0.0
    %3168 = vmatpush.msra.mxu0 0.0
    %3169 = vmatpush.msra.mxu0 0.0
    %3170 = vmatpush.msra.mxu0 0.0
    %3171 = vmatpush.msra.mxu0 0.0
    %3172 = vmatpush.msra.mxu0 0.0
    %3173 = vmatpush.msra.mxu0 0.0
    %3174 = vmatpush.msra.mxu0 0.0
    %3175 = vmatpush.msra.mxu0 0.0
    %3176 = vmatpush.msra.mxu0 0.0
    %3177 = vmatpush.msra.mxu0 0.0
    %3178 = vmatpush.msra.mxu0 0.0
    %3179 = vmatpush.msra.mxu0 0.0
    %3180 = vmatpush.msra.mxu0 0.0
    %3181 = vmatpush.msra.mxu0 0.0
    %3182 = vmatpush.msra.mxu0 %v3155
    %3183 = vmatmul.f32.gmra.mxu0 %v3153
    %v3184 = vpop.f32.mrf.mxu0
    %v3185 = vadd.f32 0.0, %v3184
    %3186 = vdwg.mxu0
    %3187 = vmatpush.msra.mxu0 0.0
    %3188 = vmatpush.msra.mxu0 0.0
    %3189 = vmatpush.msra.mxu0 0.0
    %3190 = vmatpush.msra.mxu0 0.0
    %3191 = vmatpush.msra.mxu0 0.0
    %3192 = vmatpush.msra.mxu0 0.0
    %3193 = vmatpush.msra.mxu0 0.0
    %3194 = vmatpush.msra.mxu0 0.0
    %3195 = vmatpush.msra.mxu0 0.0
    %3196 = vmatpush.msra.mxu0 0.0
    %3197 = vmatpush.msra.mxu0 0.0
    %3198 = vmatpush.msra.mxu0 0.0
    %3199 = vmatpush.msra.mxu0 0.0
    %3200 = vmatpush.msra.mxu0 0.0
    %3201 = vmatpush.msra.mxu0 0.0
    %3202 = vmatpush.msra.mxu0 %v3157
    %3203 = vmatmul.f32.gmra.mxu0 %v3153
    %v3204 = vpop.f32.mrf.mxu0
    %v3205 = vadd.f32 0.0, %v3204
    %3206 = vdwg.mxu0
    %3207 = vmatpush.msra.mxu0 0.0
    %3208 = vmatpush.msra.mxu0 0.0
    %3209 = vmatpush.msra.mxu0 0.0
    %3210 = vmatpush.msra.mxu0 0.0
    %3211 = vmatpush.msra.mxu0 0.0
    %3212 = vmatpush.msra.mxu0 0.0
    %3213 = vmatpush.msra.mxu0 0.0
    %3214 = vmatpush.msra.mxu0 0.0
    %3215 = vmatpush.msra.mxu0 0.0
    %3216 = vmatpush.msra.mxu0 0.0
    %3217 = vmatpush.msra.mxu0 0.0
    %3218 = vmatpush.msra.mxu0 0.0
    %3219 = vmatpush.msra.mxu0 0.0
    %3220 = vmatpush.msra.mxu0 0.0
    %3221 = vmatpush.msra.mxu0 0.0
    %3222 = vmatpush.msra.mxu0 %v3159
    %3223 = vmatmul.f32.gmra.mxu0 %v3153
    %v3224 = vpop.f32.mrf.mxu0
    %v3225 = vadd.f32 0.0, %v3224
    %3226 = vdwg.mxu0
    %3227 = vmatpush.msra.mxu0 0.0
    %3228 = vmatpush.msra.mxu0 0.0
    %3229 = vmatpush.msra.mxu0 0.0
    %3230 = vmatpush.msra.mxu0 0.0
    %3231 = vmatpush.msra.mxu0 0.0
    %3232 = vmatpush.msra.mxu0 0.0
    %3233 = vmatpush.msra.mxu0 0.0
    %3234 = vmatpush.msra.mxu0 0.0
    %3235 = vmatpush.msra.mxu0 0.0
    %3236 = vmatpush.msra.mxu0 0.0
    %3237 = vmatpush.msra.mxu0 0.0
    %3238 = vmatpush.msra.mxu0 0.0
    %3239 = vmatpush.msra.mxu0 0.0
    %3240 = vmatpush.msra.mxu0 0.0
    %3241 = vmatpush.msra.mxu0 0.0
    %3242 = vmatpush.msra.mxu0 %v3161
    %3243 = vmatmul.f32.gmra.mxu0 %v3153
    %v3244 = vpop.f32.mrf.mxu0
    %v3245 = vadd.f32 0.0, %v3244
    %3246 = vdwg.mxu0
    %3247 = vmatpush.msra.mxu0 0.0
    %3248 = vmatpush.msra.mxu0 0.0
    %3249 = vmatpush.msra.mxu0 0.0
    %3250 = vmatpush.msra.mxu0 0.0
    %3251 = vmatpush.msra.mxu0 0.0
    %3252 = vmatpush.msra.mxu0 0.0
    %3253 = vmatpush.msra.mxu0 0.0
    %3254 = vmatpush.msra.mxu0 0.0
    %3255 = vmatpush.msra.mxu0 0.0
    %3256 = vmatpush.msra.mxu0 0.0
    %3257 = vmatpush.msra.mxu0 0.0
    %3258 = vmatpush.msra.mxu0 0.0
    %3259 = vmatpush.msra.mxu0 0.0
    %3260 = vmatpush.msra.mxu0 0.0
    %3261 = vmatpush.msra.mxu0 0.0
    %3262 = vmatpush.msra.mxu0 %v3163
    %3263 = vmatmul.f32.gmra.mxu0 %v3153
    %v3264 = vpop.f32.mrf.mxu0
    %v3265 = vadd.f32 0.0, %v3264
    %3266 = vdwg.mxu0
    %3267 = vmatpush.msra.mxu0 0.0
    %3268 = vmatpush.msra.mxu0 0.0
    %3269 = vmatpush.msra.mxu0 0.0
    %3270 = vmatpush.msra.mxu0 0.0
    %3271 = vmatpush.msra.mxu0 0.0
    %3272 = vmatpush.msra.mxu0 0.0
    %3273 = vmatpush.msra.mxu0 0.0
    %3274 = vmatpush.msra.mxu0 0.0
    %3275 = vmatpush.msra.mxu0 0.0
    %3276 = vmatpush.msra.mxu0 0.0
    %3277 = vmatpush.msra.mxu0 0.0
    %3278 = vmatpush.msra.mxu0 0.0
    %3279 = vmatpush.msra.mxu0 0.0
    %3280 = vmatpush.msra.mxu0 0.0
    %3281 = vmatpush.msra.mxu0 0.0
    %3282 = vmatpush.msra.mxu0 %v3165
    %3283 = vmatmul.f32.gmra.mxu0 %v3153
    %v3284 = vpop.f32.mrf.mxu0
    %v3285 = vadd.f32 0.0, %v3284
    %3286 = vdwg.mxu0
    %v3287 = vadd.f32 %v3111, %v3185
    %v3288 = vadd.f32 %v3112, %v3205
    %v3289 = vadd.f32 %v3113, %v3225
    %v3290 = vadd.f32 %v3114, %v3245
    %v3291 = vadd.f32 %v3115, %v3265
    %v3292 = vadd.f32 %v3116, %v3285
    %v3293 = vmul.f32 %v3287, %v1612
    %v3294 = vmul.f32 %v3288, %v1613
    %v3295 = vmul.f32 %v3289, %v1614
    %v3296 = vmul.f32 %v3290, %v1615
    %v3297 = vmul.f32 %v3291, %v1616
    %v3298 = vmul.f32 %v3292, %v1617
    %v3299 = vsel %vm34, %v3293, 0.0
    %v3300 = vsel %vm34, %v3294, 0.0
    %v3301 = vadd.f32 %v3299, %v3300
    %v3302 = vsel %vm34, %v3295, 0.0
    %v3303 = vadd.f32 %v3301, %v3302
    %v3304 = vsel %vm34, %v3296, 0.0
    %v3305 = vadd.f32 %v3303, %v3304
    %v3306 = vsel %vm34, %v3297, 0.0
    %v3307 = vadd.f32 %v3305, %v3306
    %v3308 = vsel %vm1639, %v3298, 0.0
    %v3309 = vadd.f32 %v3307, %v3308
    %3310 = vadd.xlane.f32.xlu0 %v3309
    %v3311 = vpop.xlane.xlu0 %3310
    %v3312 = vmul.f32 %v3311, 0.001953125
    %v3313 = vmul.f32 %v3293, %v3293
    %v3314 = vmul.f32 %v3294, %v3294
    %v3315 = vmul.f32 %v3295, %v3295
    %v3316 = vmul.f32 %v3296, %v3296
    %v3317 = vmul.f32 %v3297, %v3297
    %v3318 = vmul.f32 %v3298, %v3298
    %v3319 = vsel %vm34, %v3313, 0.0
    %v3320 = vsel %vm34, %v3314, 0.0
    %v3321 = vadd.f32 %v3319, %v3320
    %v3322 = vsel %vm34, %v3315, 0.0
    %v3323 = vadd.f32 %v3321, %v3322
    %v3324 = vsel %vm34, %v3316, 0.0
    %v3325 = vadd.f32 %v3323, %v3324
    %v3326 = vsel %vm34, %v3317, 0.0
    %v3327 = vadd.f32 %v3325, %v3326
    %v3328 = vsel %vm1639, %v3318, 0.0
    %v3329 = vadd.f32 %v3327, %v3328
    %3330 = vadd.xlane.f32.xlu0 %v3329
    %v3331 = vpop.xlane.xlu0 %3330
    %v3332 = vmul.f32 %v3331, 0.001953125
    %v3333 = vmul.f32 %v3312, %v3312
    %v3334 = vsub.f32 %v3332, %v3333
    %v3335 = vadd.f32 %v3334, 1e-05
    %v3336 = vrsqrt.pop %v3335
    %v3337 = vmul.f32 %v3336, %v3335
    %v3338 = vmul.f32 %v3337, %v3336
    %v3339 = vmul.f32 0.5, %v3338
    %v3340 = vsub.f32 1.5, %v3339
    %v3341 = vmul.f32 %v3336, %v3340
    %vm3342 = vweird.f32 %v3335
    %vm3343 = vweird.f32 %v3336
    %vm3344 = vmor %vm3342, %vm3343
    %v3345 = vsel %vm3344, %v3336, %v3341
    %v3346 = vmul.f32 %v21, %v3345
    %v3347 = vmul.f32 %v3312, %v3346
    %v3348 = vsub.f32 %v22, %v3347
    %3350 = vset.pattern.permute.xlu0 0
    %3351 = vperm.xlu0 %3350, %v3346
    %v3352 = vpop.permute.xlu0 %3351
    %v3354 = vmul.f32 %v3293, %v3352
    %v3355 = vmul.f32 %v3294, %v3352
    %v3356 = vmul.f32 %v3295, %v3352
    %v3357 = vmul.f32 %v3296, %v3352
    %v3358 = vmul.f32 %v3297, %v3352
    %v3359 = vmul.f32 %v3298, %v3352
    %3361 = vset.pattern.permute.xlu0 0
    %3362 = vperm.xlu0 %3361, %v3348
    %v3363 = vpop.permute.xlu0 %3362
    %v3365 = vadd.f32 %v3354, %v3363
    %v3366 = vadd.f32 %v3355, %v3363
    %v3367 = vadd.f32 %v3356, %v3363
    %v3368 = vadd.f32 %v3357, %v3363
    %v3369 = vadd.f32 %v3358, %v3363
    %v3370 = vadd.f32 %v3359, %v3363
    %v3371 = vmax.f32 %v3365, 0.0
    %v3372 = vmax.f32 %v3366, 0.0
    %v3373 = vmax.f32 %v3367, 0.0
    %v3374 = vmax.f32 %v3368, 0.0
    %v3375 = vmax.f32 %v3369, 0.0
    %v3376 = vmax.f32 %v3370, 0.0
    %v3377 = vmul.f32 %v3371, %v1612
    %v3378 = vmul.f32 %v3372, %v1613
    %v3379 = vmul.f32 %v3373, %v1614
    %v3380 = vmul.f32 %v3374, %v1615
    %v3381 = vmul.f32 %v3375, %v1616
    %v3382 = vmul.f32 %v3376, %v1617
    %v3389 = vrot.slane %v3378, 4
    %v3390 = vrot.slane %v3380, 4
    %v3391 = vrot.slane %v3382, 4
    %v3392 = vsel %vm34, %v3377, %v3389
    %v3393 = vsel %vm34, %v3379, %v3390
    %v3394 = vsel %vm34, %v3381, %v3391
    %v3398 = vadd.f32 %v24, %v3392
    %v3399 = vadd.f32 %v25, %v3393
    %v3400 = vadd.f32 %v26, %v3394
    %3401 = vst [vmem:[#allocation2 + $0x4] sm:$0xff] %v3398
    %3402 = vst [vmem:[#allocation2 + $0xc] sm:$0xff] %v3399
    %3403 = vst.msk [vmem:[#allocation2 + $0x14] sm:$0xff] %vm35, %v3400
    %v3404 = vld [vmem:[%s1] sm:$0xf]
    %v3405 = vld [vmem:[#allocation2] sm:$0xff]
    %v3406 = vld [vmem:[#allocation2 + $0x8] sm:$0xff]
    %v3407 = vld [vmem:[#allocation2 + $0x10] sm:$0xff]
    %v3408 = vld [vmem:[%s41] sm:$0xf]
    %3412 = vst [vmem:[#allocation1] ss:$2 sm:$0xff] %v3405
    %s3413 = scalar_lea.vmem [#allocation1], 16
    %3414 = vst [vmem:[%s3413] ss:$2 sm:$0xff] %v3406
    %s3415 = scalar_lea.vmem [#allocation1], 32
    %3416 = vst [vmem:[%s3415] ss:$2 sm:$0xff] %v3407
    %v3417 = vld.sshfl [vmem:[#allocation1] sm:$0xff pattern:$0x75316420]
    %v3418 = vld.sshfl [vmem:[#allocation1 + $0x8] sm:$0xff pattern:$0x75316420]
    %v3419 = vld.sshfl [vmem:[#allocation1 + $0x10] sm:$0xff pattern:$0x75316420]
    %v3420 = vld.sshfl [vmem:[#allocation1 + $0x18] sm:$0xff pattern:$0x75316420]
    %v3421 = vld.sshfl [vmem:[#allocation1 + $0x20] sm:$0xff pattern:$0x75316420]
    %v3422 = vld.sshfl [vmem:[#allocation1 + $0x28] sm:$0xff pattern:$0x75316420]
    %3423 = vrot.lane.b32.xlu0 %v3417, 18
    %v3424 = vpop.permute.xlu0 %3423
    %3425 = vrot.lane.b32.xlu0 %v3418, 18
    %v3426 = vpop.permute.xlu0 %3425
    %3427 = vrot.lane.b32.xlu0 %v3419, 18
    %v3428 = vpop.permute.xlu0 %3427
    %3429 = vrot.lane.b32.xlu0 %v3420, 18
    %v3430 = vpop.permute.xlu0 %3429
    %3431 = vrot.lane.b32.xlu0 %v3421, 18
    %v3432 = vpop.permute.xlu0 %3431
    %3433 = vrot.lane.b32.xlu0 %v3422, 18
    %v3434 = vpop.permute.xlu0 %3433
    %v3435 = vsel %vm69, %v3424, %v3426
    %v3436 = vsel %vm69, %v3426, %v3428
    %v3437 = vsel %vm69, %v3428, %v3430
    %v3438 = vsel %vm69, %v3430, %v3432
    %v3439 = vsel %vm69, %v3432, %v3434
    %v3441 = vsel %vm75, %v3408, 0
    %v3443 = vsel %vm34, %v3435, 0
    %v3445 = vsel %vm34, %v3436, 0
    %v3447 = vsel %vm34, %v3437, 0
    %v3449 = vsel %vm34, %v3438, 0
    %v3451 = vsel %vm34, %v3439, 0
    %v3453 = vsel %vm34, %v3434, 0
    %3455 = vmatpush.msra.mxu0 0.0
    %3456 = vmatpush.msra.mxu0 0.0
    %3457 = vmatpush.msra.mxu0 0.0
    %3458 = vmatpush.msra.mxu0 0.0
    %3459 = vmatpush.msra.mxu0 0.0
    %3460 = vmatpush.msra.mxu0 0.0
    %3461 = vmatpush.msra.mxu0 0.0
    %3462 = vmatpush.msra.mxu0 0.0
    %3463 = vmatpush.msra.mxu0 0.0
    %3464 = vmatpush.msra.mxu0 0.0
    %3465 = vmatpush.msra.mxu0 0.0
    %3466 = vmatpush.msra.mxu0 0.0
    %3467 = vmatpush.msra.mxu0 0.0
    %3468 = vmatpush.msra.mxu0 0.0
    %3469 = vmatpush.msra.mxu0 0.0
    %3470 = vmatpush.msra.mxu0 %v3443
    %3471 = vmatmul.f32.gmra.mxu0 %v3441
    %v3472 = vpop.f32.mrf.mxu0
    %v3473 = vadd.f32 0.0, %v3472
    %3474 = vdwg.mxu0
    %3475 = vmatpush.msra.mxu0 0.0
    %3476 = vmatpush.msra.mxu0 0.0
    %3477 = vmatpush.msra.mxu0 0.0
    %3478 = vmatpush.msra.mxu0 0.0
    %3479 = vmatpush.msra.mxu0 0.0
    %3480 = vmatpush.msra.mxu0 0.0
    %3481 = vmatpush.msra.mxu0 0.0
    %3482 = vmatpush.msra.mxu0 0.0
    %3483 = vmatpush.msra.mxu0 0.0
    %3484 = vmatpush.msra.mxu0 0.0
    %3485 = vmatpush.msra.mxu0 0.0
    %3486 = vmatpush.msra.mxu0 0.0
    %3487 = vmatpush.msra.mxu0 0.0
    %3488 = vmatpush.msra.mxu0 0.0
    %3489 = vmatpush.msra.mxu0 0.0
    %3490 = vmatpush.msra.mxu0 %v3445
    %3491 = vmatmul.f32.gmra.mxu0 %v3441
    %v3492 = vpop.f32.mrf.mxu0
    %v3493 = vadd.f32 0.0, %v3492
    %3494 = vdwg.mxu0
    %3495 = vmatpush.msra.mxu0 0.0
    %3496 = vmatpush.msra.mxu0 0.0
    %3497 = vmatpush.msra.mxu0 0.0
    %3498 = vmatpush.msra.mxu0 0.0
    %3499 = vmatpush.msra.mxu0 0.0
    %3500 = vmatpush.msra.mxu0 0.0
    %3501 = vmatpush.msra.mxu0 0.0
    %3502 = vmatpush.msra.mxu0 0.0
    %3503 = vmatpush.msra.mxu0 0.0
    %3504 = vmatpush.msra.mxu0 0.0
    %3505 = vmatpush.msra.mxu0 0.0
    %3506 = vmatpush.msra.mxu0 0.0
    %3507 = vmatpush.msra.mxu0 0.0
    %3508 = vmatpush.msra.mxu0 0.0
    %3509 = vmatpush.msra.mxu0 0.0
    %3510 = vmatpush.msra.mxu0 %v3447
    %3511 = vmatmul.f32.gmra.mxu0 %v3441
    %v3512 = vpop.f32.mrf.mxu0
    %v3513 = vadd.f32 0.0, %v3512
    %3514 = vdwg.mxu0
    %3515 = vmatpush.msra.mxu0 0.0
    %3516 = vmatpush.msra.mxu0 0.0
    %3517 = vmatpush.msra.mxu0 0.0
    %3518 = vmatpush.msra.mxu0 0.0
    %3519 = vmatpush.msra.mxu0 0.0
    %3520 = vmatpush.msra.mxu0 0.0
    %3521 = vmatpush.msra.mxu0 0.0
    %3522 = vmatpush.msra.mxu0 0.0
    %3523 = vmatpush.msra.mxu0 0.0
    %3524 = vmatpush.msra.mxu0 0.0
    %3525 = vmatpush.msra.mxu0 0.0
    %3526 = vmatpush.msra.mxu0 0.0
    %3527 = vmatpush.msra.mxu0 0.0
    %3528 = vmatpush.msra.mxu0 0.0
    %3529 = vmatpush.msra.mxu0 0.0
    %3530 = vmatpush.msra.mxu0 %v3449
    %3531 = vmatmul.f32.gmra.mxu0 %v3441
    %v3532 = vpop.f32.mrf.mxu0
    %v3533 = vadd.f32 0.0, %v3532
    %3534 = vdwg.mxu0
    %3535 = vmatpush.msra.mxu0 0.0
    %3536 = vmatpush.msra.mxu0 0.0
    %3537 = vmatpush.msra.mxu0 0.0
    %3538 = vmatpush.msra.mxu0 0.0
    %3539 = vmatpush.msra.mxu0 0.0
    %3540 = vmatpush.msra.mxu0 0.0
    %3541 = vmatpush.msra.mxu0 0.0
    %3542 = vmatpush.msra.mxu0 0.0
    %3543 = vmatpush.msra.mxu0 0.0
    %3544 = vmatpush.msra.mxu0 0.0
    %3545 = vmatpush.msra.mxu0 0.0
    %3546 = vmatpush.msra.mxu0 0.0
    %3547 = vmatpush.msra.mxu0 0.0
    %3548 = vmatpush.msra.mxu0 0.0
    %3549 = vmatpush.msra.mxu0 0.0
    %3550 = vmatpush.msra.mxu0 %v3451
    %3551 = vmatmul.f32.gmra.mxu0 %v3441
    %v3552 = vpop.f32.mrf.mxu0
    %v3553 = vadd.f32 0.0, %v3552
    %3554 = vdwg.mxu0
    %3555 = vmatpush.msra.mxu0 0.0
    %3556 = vmatpush.msra.mxu0 0.0
    %3557 = vmatpush.msra.mxu0 0.0
    %3558 = vmatpush.msra.mxu0 0.0
    %3559 = vmatpush.msra.mxu0 0.0
    %3560 = vmatpush.msra.mxu0 0.0
    %3561 = vmatpush.msra.mxu0 0.0
    %3562 = vmatpush.msra.mxu0 0.0
    %3563 = vmatpush.msra.mxu0 0.0
    %3564 = vmatpush.msra.mxu0 0.0
    %3565 = vmatpush.msra.mxu0 0.0
    %3566 = vmatpush.msra.mxu0 0.0
    %3567 = vmatpush.msra.mxu0 0.0
    %3568 = vmatpush.msra.mxu0 0.0
    %3569 = vmatpush.msra.mxu0 0.0
    %3570 = vmatpush.msra.mxu0 %v3453
    %3571 = vmatmul.f32.gmra.mxu0 %v3441
    %v3572 = vpop.f32.mrf.mxu0
    %v3573 = vadd.f32 0.0, %v3572
    %3574 = vdwg.mxu0
    %3575 = vst [vmem:[#allocation1] ss:$2 sm:$0xff] %v3405
    %s3576 = scalar_lea.vmem [#allocation1], 16
    %3577 = vst [vmem:[%s3576] ss:$2 sm:$0xff] %v3406
    %s3578 = scalar_lea.vmem [#allocation1], 32
    %3579 = vst [vmem:[%s3578] ss:$2 sm:$0xff] %v3407
    %v3580 = vld.sshfl [vmem:[#allocation1] sm:$0xff pattern:$0x75316420]
    %v3581 = vld.sshfl [vmem:[#allocation1 + $0x8] sm:$0xff pattern:$0x75316420]
    %v3582 = vld.sshfl [vmem:[#allocation1 + $0x10] sm:$0xff pattern:$0x75316420]
    %v3583 = vld.sshfl [vmem:[#allocation1 + $0x18] sm:$0xff pattern:$0x75316420]
    %v3584 = vld.sshfl [vmem:[#allocation1 + $0x20] sm:$0xff pattern:$0x75316420]
    %v3585 = vld.sshfl [vmem:[#allocation1 + $0x28] sm:$0xff pattern:$0x75316420]
    %3586 = vrot.lane.b32.xlu0 %v3580, 19
    %v3587 = vpop.permute.xlu0 %3586
    %3588 = vrot.lane.b32.xlu0 %v3581, 19
    %v3589 = vpop.permute.xlu0 %3588
    %3590 = vrot.lane.b32.xlu0 %v3582, 19
    %v3591 = vpop.permute.xlu0 %3590
    %3592 = vrot.lane.b32.xlu0 %v3583, 19
    %v3593 = vpop.permute.xlu0 %3592
    %3594 = vrot.lane.b32.xlu0 %v3584, 19
    %v3595 = vpop.permute.xlu0 %3594
    %3596 = vrot.lane.b32.xlu0 %v3585, 19
    %v3597 = vpop.permute.xlu0 %3596
    %v3598 = vsel %vm234, %v3587, %v3589
    %v3599 = vsel %vm234, %v3589, %v3591
    %v3600 = vsel %vm234, %v3591, %v3593
    %v3601 = vsel %vm234, %v3593, %v3595
    %v3602 = vsel %vm234, %v3595, %v3597
    %v3604 = vsel %vm75, %v3404, 0
    %v3606 = vsel %vm34, %v3598, 0
    %v3608 = vsel %vm34, %v3599, 0
    %v3610 = vsel %vm34, %v3600, 0
    %v3612 = vsel %vm34, %v3601, 0
    %v3614 = vsel %vm34, %v3602, 0
    %v3616 = vsel %vm34, %v3597, 0
    %3618 = vmatpush.msra.mxu0 0.0
    %3619 = vmatpush.msra.mxu0 0.0
    %3620 = vmatpush.msra.mxu0 0.0
    %3621 = vmatpush.msra.mxu0 0.0
    %3622 = vmatpush.msra.mxu0 0.0
    %3623 = vmatpush.msra.mxu0 0.0
    %3624 = vmatpush.msra.mxu0 0.0
    %3625 = vmatpush.msra.mxu0 0.0
    %3626 = vmatpush.msra.mxu0 0.0
    %3627 = vmatpush.msra.mxu0 0.0
    %3628 = vmatpush.msra.mxu0 0.0
    %3629 = vmatpush.msra.mxu0 0.0
    %3630 = vmatpush.msra.mxu0 0.0
    %3631 = vmatpush.msra.mxu0 0.0
    %3632 = vmatpush.msra.mxu0 0.0
    %3633 = vmatpush.msra.mxu0 %v3606
    %3634 = vmatmul.f32.gmra.mxu0 %v3604
    %v3635 = vpop.f32.mrf.mxu0
    %v3636 = vadd.f32 %v3473, %v3635
    %3637 = vdwg.mxu0
    %3638 = vmatpush.msra.mxu0 0.0
    %3639 = vmatpush.msra.mxu0 0.0
    %3640 = vmatpush.msra.mxu0 0.0
    %3641 = vmatpush.msra.mxu0 0.0
    %3642 = vmatpush.msra.mxu0 0.0
    %3643 = vmatpush.msra.mxu0 0.0
    %3644 = vmatpush.msra.mxu0 0.0
    %3645 = vmatpush.msra.mxu0 0.0
    %3646 = vmatpush.msra.mxu0 0.0
    %3647 = vmatpush.msra.mxu0 0.0
    %3648 = vmatpush.msra.mxu0 0.0
    %3649 = vmatpush.msra.mxu0 0.0
    %3650 = vmatpush.msra.mxu0 0.0
    %3651 = vmatpush.msra.mxu0 0.0
    %3652 = vmatpush.msra.mxu0 0.0
    %3653 = vmatpush.msra.mxu0 %v3608
    %3654 = vmatmul.f32.gmra.mxu0 %v3604
    %v3655 = vpop.f32.mrf.mxu0
    %v3656 = vadd.f32 %v3493, %v3655
    %3657 = vdwg.mxu0
    %3658 = vmatpush.msra.mxu0 0.0
    %3659 = vmatpush.msra.mxu0 0.0
    %3660 = vmatpush.msra.mxu0 0.0
    %3661 = vmatpush.msra.mxu0 0.0
    %3662 = vmatpush.msra.mxu0 0.0
    %3663 = vmatpush.msra.mxu0 0.0
    %3664 = vmatpush.msra.mxu0 0.0
    %3665 = vmatpush.msra.mxu0 0.0
    %3666 = vmatpush.msra.mxu0 0.0
    %3667 = vmatpush.msra.mxu0 0.0
    %3668 = vmatpush.msra.mxu0 0.0
    %3669 = vmatpush.msra.mxu0 0.0
    %3670 = vmatpush.msra.mxu0 0.0
    %3671 = vmatpush.msra.mxu0 0.0
    %3672 = vmatpush.msra.mxu0 0.0
    %3673 = vmatpush.msra.mxu0 %v3610
    %3674 = vmatmul.f32.gmra.mxu0 %v3604
    %v3675 = vpop.f32.mrf.mxu0
    %v3676 = vadd.f32 %v3513, %v3675
    %3677 = vdwg.mxu0
    %3678 = vmatpush.msra.mxu0 0.0
    %3679 = vmatpush.msra.mxu0 0.0
    %3680 = vmatpush.msra.mxu0 0.0
    %3681 = vmatpush.msra.mxu0 0.0
    %3682 = vmatpush.msra.mxu0 0.0
    %3683 = vmatpush.msra.mxu0 0.0
    %3684 = vmatpush.msra.mxu0 0.0
    %3685 = vmatpush.msra.mxu0 0.0
    %3686 = vmatpush.msra.mxu0 0.0
    %3687 = vmatpush.msra.mxu0 0.0
    %3688 = vmatpush.msra.mxu0 0.0
    %3689 = vmatpush.msra.mxu0 0.0
    %3690 = vmatpush.msra.mxu0 0.0
    %3691 = vmatpush.msra.mxu0 0.0
    %3692 = vmatpush.msra.mxu0 0.0
    %3693 = vmatpush.msra.mxu0 %v3612
    %3694 = vmatmul.f32.gmra.mxu0 %v3604
    %v3695 = vpop.f32.mrf.mxu0
    %v3696 = vadd.f32 %v3533, %v3695
    %3697 = vdwg.mxu0
    %3698 = vmatpush.msra.mxu0 0.0
    %3699 = vmatpush.msra.mxu0 0.0
    %3700 = vmatpush.msra.mxu0 0.0
    %3701 = vmatpush.msra.mxu0 0.0
    %3702 = vmatpush.msra.mxu0 0.0
    %3703 = vmatpush.msra.mxu0 0.0
    %3704 = vmatpush.msra.mxu0 0.0
    %3705 = vmatpush.msra.mxu0 0.0
    %3706 = vmatpush.msra.mxu0 0.0
    %3707 = vmatpush.msra.mxu0 0.0
    %3708 = vmatpush.msra.mxu0 0.0
    %3709 = vmatpush.msra.mxu0 0.0
    %3710 = vmatpush.msra.mxu0 0.0
    %3711 = vmatpush.msra.mxu0 0.0
    %3712 = vmatpush.msra.mxu0 0.0
    %3713 = vmatpush.msra.mxu0 %v3614
    %3714 = vmatmul.f32.gmra.mxu0 %v3604
    %v3715 = vpop.f32.mrf.mxu0
    %v3716 = vadd.f32 %v3553, %v3715
    %3717 = vdwg.mxu0
    %3718 = vmatpush.msra.mxu0 0.0
    %3719 = vmatpush.msra.mxu0 0.0
    %3720 = vmatpush.msra.mxu0 0.0
    %3721 = vmatpush.msra.mxu0 0.0
    %3722 = vmatpush.msra.mxu0 0.0
    %3723 = vmatpush.msra.mxu0 0.0
    %3724 = vmatpush.msra.mxu0 0.0
    %3725 = vmatpush.msra.mxu0 0.0
    %3726 = vmatpush.msra.mxu0 0.0
    %3727 = vmatpush.msra.mxu0 0.0
    %3728 = vmatpush.msra.mxu0 0.0
    %3729 = vmatpush.msra.mxu0 0.0
    %3730 = vmatpush.msra.mxu0 0.0
    %3731 = vmatpush.msra.mxu0 0.0
    %3732 = vmatpush.msra.mxu0 0.0
    %3733 = vmatpush.msra.mxu0 %v3616
    %3734 = vmatmul.f32.gmra.mxu0 %v3604
    %v3735 = vpop.f32.mrf.mxu0
    %v3736 = vadd.f32 %v3573, %v3735
    %3737 = vdwg.mxu0
    %v3738 = vld [vmem:[%s375] sm:$0xf]
    %v3739 = vld [vmem:[#allocation2] sm:$0xff]
    %v3740 = vld [vmem:[#allocation2 + $0x8] sm:$0xff]
    %v3741 = vld [vmem:[#allocation2 + $0x10] sm:$0xff]
    %3745 = vst [vmem:[#allocation1] ss:$2 sm:$0xff] %v3739
    %s3746 = scalar_lea.vmem [#allocation1], 16
    %3747 = vst [vmem:[%s3746] ss:$2 sm:$0xff] %v3740
    %s3748 = scalar_lea.vmem [#allocation1], 32
    %3749 = vst [vmem:[%s3748] ss:$2 sm:$0xff] %v3741
    %v3750 = vld.sshfl [vmem:[#allocation1] sm:$0xff pattern:$0x75316420]
    %v3751 = vld.sshfl [vmem:[#allocation1 + $0x8] sm:$0xff pattern:$0x75316420]
    %v3752 = vld.sshfl [vmem:[#allocation1 + $0x10] sm:$0xff pattern:$0x75316420]
    %v3753 = vld.sshfl [vmem:[#allocation1 + $0x18] sm:$0xff pattern:$0x75316420]
    %v3754 = vld.sshfl [vmem:[#allocation1 + $0x20] sm:$0xff pattern:$0x75316420]
    %v3755 = vld.sshfl [vmem:[#allocation1 + $0x28] sm:$0xff pattern:$0x75316420]
    %3756 = vrot.lane.b32.xlu0 %v3750, 17
    %v3757 = vpop.permute.xlu0 %3756
    %3758 = vrot.lane.b32.xlu0 %v3751, 17
    %v3759 = vpop.permute.xlu0 %3758
    %3760 = vrot.lane.b32.xlu0 %v3752, 17
    %v3761 = vpop.permute.xlu0 %3760
    %3762 = vrot.lane.b32.xlu0 %v3753, 17
    %v3763 = vpop.permute.xlu0 %3762
    %3764 = vrot.lane.b32.xlu0 %v3754, 17
    %v3765 = vpop.permute.xlu0 %3764
    %3766 = vrot.lane.b32.xlu0 %v3755, 17
    %v3767 = vpop.permute.xlu0 %3766
    %v3768 = vsel %vm406, %v3757, %v3759
    %v3769 = vsel %vm406, %v3759, %v3761
    %v3770 = vsel %vm406, %v3761, %v3763
    %v3771 = vsel %vm406, %v3763, %v3765
    %v3772 = vsel %vm406, %v3765, %v3767
    %v3774 = vsel %vm75, %v3738, 0
    %v3776 = vsel %vm34, %v3768, 0
    %v3778 = vsel %vm34, %v3769, 0
    %v3780 = vsel %vm34, %v3770, 0
    %v3782 = vsel %vm34, %v3771, 0
    %v3784 = vsel %vm34, %v3772, 0
    %v3786 = vsel %vm34, %v3767, 0
    %3788 = vmatpush.msra.mxu0 0.0
    %3789 = vmatpush.msra.mxu0 0.0
    %3790 = vmatpush.msra.mxu0 0.0
    %3791 = vmatpush.msra.mxu0 0.0
    %3792 = vmatpush.msra.mxu0 0.0
    %3793 = vmatpush.msra.mxu0 0.0
    %3794 = vmatpush.msra.mxu0 0.0
    %3795 = vmatpush.msra.mxu0 0.0
    %3796 = vmatpush.msra.mxu0 0.0
    %3797 = vmatpush.msra.mxu0 0.0
    %3798 = vmatpush.msra.mxu0 0.0
    %3799 = vmatpush.msra.mxu0 0.0
    %3800 = vmatpush.msra.mxu0 0.0
    %3801 = vmatpush.msra.mxu0 0.0
    %3802 = vmatpush.msra.mxu0 0.0
    %3803 = vmatpush.msra.mxu0 %v3776
    %3804 = vmatmul.f32.gmra.mxu0 %v3774
    %v3805 = vpop.f32.mrf.mxu0
    %v3806 = vadd.f32 0.0, %v3805
    %3807 = vdwg.mxu0
    %3808 = vmatpush.msra.mxu0 0.0
    %3809 = vmatpush.msra.mxu0 0.0
    %3810 = vmatpush.msra.mxu0 0.0
    %3811 = vmatpush.msra.mxu0 0.0
    %3812 = vmatpush.msra.mxu0 0.0
    %3813 = vmatpush.msra.mxu0 0.0
    %3814 = vmatpush.msra.mxu0 0.0
    %3815 = vmatpush.msra.mxu0 0.0
    %3816 = vmatpush.msra.mxu0 0.0
    %3817 = vmatpush.msra.mxu0 0.0
    %3818 = vmatpush.msra.mxu0 0.0
    %3819 = vmatpush.msra.mxu0 0.0
    %3820 = vmatpush.msra.mxu0 0.0
    %3821 = vmatpush.msra.mxu0 0.0
    %3822 = vmatpush.msra.mxu0 0.0
    %3823 = vmatpush.msra.mxu0 %v3778
    %3824 = vmatmul.f32.gmra.mxu0 %v3774
    %v3825 = vpop.f32.mrf.mxu0
    %v3826 = vadd.f32 0.0, %v3825
    %3827 = vdwg.mxu0
    %3828 = vmatpush.msra.mxu0 0.0
    %3829 = vmatpush.msra.mxu0 0.0
    %3830 = vmatpush.msra.mxu0 0.0
    %3831 = vmatpush.msra.mxu0 0.0
    %3832 = vmatpush.msra.mxu0 0.0
    %3833 = vmatpush.msra.mxu0 0.0
    %3834 = vmatpush.msra.mxu0 0.0
    %3835 = vmatpush.msra.mxu0 0.0
    %3836 = vmatpush.msra.mxu0 0.0
    %3837 = vmatpush.msra.mxu0 0.0
    %3838 = vmatpush.msra.mxu0 0.0
    %3839 = vmatpush.msra.mxu0 0.0
    %3840 = vmatpush.msra.mxu0 0.0
    %3841 = vmatpush.msra.mxu0 0.0
    %3842 = vmatpush.msra.mxu0 0.0
    %3843 = vmatpush.msra.mxu0 %v3780
    %3844 = vmatmul.f32.gmra.mxu0 %v3774
    %v3845 = vpop.f32.mrf.mxu0
    %v3846 = vadd.f32 0.0, %v3845
    %3847 = vdwg.mxu0
    %3848 = vmatpush.msra.mxu0 0.0
    %3849 = vmatpush.msra.mxu0 0.0
    %3850 = vmatpush.msra.mxu0 0.0
    %3851 = vmatpush.msra.mxu0 0.0
    %3852 = vmatpush.msra.mxu0 0.0
    %3853 = vmatpush.msra.mxu0 0.0
    %3854 = vmatpush.msra.mxu0 0.0
    %3855 = vmatpush.msra.mxu0 0.0
    %3856 = vmatpush.msra.mxu0 0.0
    %3857 = vmatpush.msra.mxu0 0.0
    %3858 = vmatpush.msra.mxu0 0.0
    %3859 = vmatpush.msra.mxu0 0.0
    %3860 = vmatpush.msra.mxu0 0.0
    %3861 = vmatpush.msra.mxu0 0.0
    %3862 = vmatpush.msra.mxu0 0.0
    %3863 = vmatpush.msra.mxu0 %v3782
    %3864 = vmatmul.f32.gmra.mxu0 %v3774
    %v3865 = vpop.f32.mrf.mxu0
    %v3866 = vadd.f32 0.0, %v3865
    %3867 = vdwg.mxu0
    %3868 = vmatpush.msra.mxu0 0.0
    %3869 = vmatpush.msra.mxu0 0.0
    %3870 = vmatpush.msra.mxu0 0.0
    %3871 = vmatpush.msra.mxu0 0.0
    %3872 = vmatpush.msra.mxu0 0.0
    %3873 = vmatpush.msra.mxu0 0.0
    %3874 = vmatpush.msra.mxu0 0.0
    %3875 = vmatpush.msra.mxu0 0.0
    %3876 = vmatpush.msra.mxu0 0.0
    %3877 = vmatpush.msra.mxu0 0.0
    %3878 = vmatpush.msra.mxu0 0.0
    %3879 = vmatpush.msra.mxu0 0.0
    %3880 = vmatpush.msra.mxu0 0.0
    %3881 = vmatpush.msra.mxu0 0.0
    %3882 = vmatpush.msra.mxu0 0.0
    %3883 = vmatpush.msra.mxu0 %v3784
    %3884 = vmatmul.f32.gmra.mxu0 %v3774
    %v3885 = vpop.f32.mrf.mxu0
    %v3886 = vadd.f32 0.0, %v3885
    %3887 = vdwg.mxu0
    %3888 = vmatpush.msra.mxu0 0.0
    %3889 = vmatpush.msra.mxu0 0.0
    %3890 = vmatpush.msra.mxu0 0.0
    %3891 = vmatpush.msra.mxu0 0.0
    %3892 = vmatpush.msra.mxu0 0.0
    %3893 = vmatpush.msra.mxu0 0.0
    %3894 = vmatpush.msra.mxu0 0.0
    %3895 = vmatpush.msra.mxu0 0.0
    %3896 = vmatpush.msra.mxu0 0.0
    %3897 = vmatpush.msra.mxu0 0.0
    %3898 = vmatpush.msra.mxu0 0.0
    %3899 = vmatpush.msra.mxu0 0.0
    %3900 = vmatpush.msra.mxu0 0.0
    %3901 = vmatpush.msra.mxu0 0.0
    %3902 = vmatpush.msra.mxu0 0.0
    %3903 = vmatpush.msra.mxu0 %v3786
    %3904 = vmatmul.f32.gmra.mxu0 %v3774
    %v3905 = vpop.f32.mrf.mxu0
    %v3906 = vadd.f32 0.0, %v3905
    %3907 = vdwg.mxu0
    %v3908 = vadd.f32 %v3636, %v3806
    %v3909 = vadd.f32 %v3656, %v3826
    %v3910 = vadd.f32 %v3676, %v3846
    %v3911 = vadd.f32 %v3696, %v3866
    %v3912 = vadd.f32 %v3716, %v3886
    %v3913 = vadd.f32 %v3736, %v3906
    %v3914 = vld [vmem:[%s553] sm:$0xf]
    %v3915 = vld [vmem:[#allocation2] sm:$0xff]
    %v3916 = vld [vmem:[#allocation2 + $0x8] sm:$0xff]
    %v3917 = vld [vmem:[#allocation2 + $0x10] sm:$0xff]
    %v3918 = vld [vmem:[#allocation2 + $0x18] sm:$0xf]
    %3923 = vst [vmem:[#allocation1] ss:$2 sm:$0xff] %v3915
    %s3924 = scalar_lea.vmem [#allocation1], 16
    %3925 = vst [vmem:[%s3924] ss:$2 sm:$0xff] %v3916
    %s3926 = scalar_lea.vmem [#allocation1], 32
    %3927 = vst [vmem:[%s3926] ss:$2 sm:$0xff] %v3917
    %s3928 = scalar_lea.vmem [#allocation1], 48
    %3929 = vst [vmem:[%s3928] ss:$2 sm:$0xff] %v3918
    %v3930 = vld.sshfl [vmem:[#allocation1] sm:$0xff pattern:$0x75316420]
    %v3931 = vld.sshfl [vmem:[#allocation1 + $0x8] sm:$0xff pattern:$0x75316420]
    %v3932 = vld.sshfl [vmem:[#allocation1 + $0x10] sm:$0xff pattern:$0x75316420]
    %v3933 = vld.sshfl [vmem:[#allocation1 + $0x18] sm:$0xff pattern:$0x75316420]
    %v3934 = vld.sshfl [vmem:[#allocation1 + $0x20] sm:$0xff pattern:$0x75316420]
    %v3935 = vld.sshfl [vmem:[#allocation1 + $0x28] sm:$0xff pattern:$0x75316420]
    %v3936 = vld.sshfl [vmem:[#allocation1 + $0x30] sm:$0xff pattern:$0x75316420]
    %3937 = vrot.lane.b32.xlu0 %v3930, 1
    %v3938 = vpop.permute.xlu0 %3937
    %3939 = vrot.lane.b32.xlu0 %v3931, 1
    %v3940 = vpop.permute.xlu0 %3939
    %3941 = vrot.lane.b32.xlu0 %v3932, 1
    %v3942 = vpop.permute.xlu0 %3941
    %3943 = vrot.lane.b32.xlu0 %v3933, 1
    %v3944 = vpop.permute.xlu0 %3943
    %3945 = vrot.lane.b32.xlu0 %v3934, 1
    %v3946 = vpop.permute.xlu0 %3945
    %3947 = vrot.lane.b32.xlu0 %v3935, 1
    %v3948 = vpop.permute.xlu0 %3947
    %3949 = vrot.lane.b32.xlu0 %v3936, 1
    %v3950 = vpop.permute.xlu0 %3949
    %v3951 = vsel %vm591, %v3938, %v3940
    %v3952 = vsel %vm591, %v3940, %v3942
    %v3953 = vsel %vm591, %v3942, %v3944
    %v3954 = vsel %vm591, %v3944, %v3946
    %v3955 = vsel %vm591, %v3946, %v3948
    %v3956 = vsel %vm591, %v3948, %v3950
    %v3958 = vsel %vm75, %v3914, 0
    %v3960 = vsel %vm34, %v3951, 0
    %v3962 = vsel %vm34, %v3952, 0
    %v3964 = vsel %vm34, %v3953, 0
    %v3966 = vsel %vm34, %v3954, 0
    %v3968 = vsel %vm34, %v3955, 0
    %v3970 = vsel %vm34, %v3956, 0
    %3972 = vmatpush.msra.mxu0 0.0
    %3973 = vmatpush.msra.mxu0 0.0
    %3974 = vmatpush.msra.mxu0 0.0
    %3975 = vmatpush.msra.mxu0 0.0
    %3976 = vmatpush.msra.mxu0 0.0
    %3977 = vmatpush.msra.mxu0 0.0
    %3978 = vmatpush.msra.mxu0 0.0
    %3979 = vmatpush.msra.mxu0 0.0
    %3980 = vmatpush.msra.mxu0 0.0
    %3981 = vmatpush.msra.mxu0 0.0
    %3982 = vmatpush.msra.mxu0 0.0
    %3983 = vmatpush.msra.mxu0 0.0
    %3984 = vmatpush.msra.mxu0 0.0
    %3985 = vmatpush.msra.mxu0 0.0
    %3986 = vmatpush.msra.mxu0 0.0
    %3987 = vmatpush.msra.mxu0 %v3960
    %3988 = vmatmul.f32.gmra.mxu0 %v3958
    %v3989 = vpop.f32.mrf.mxu0
    %v3990 = vadd.f32 0.0, %v3989
    %3991 = vdwg.mxu0
    %3992 = vmatpush.msra.mxu0 0.0
    %3993 = vmatpush.msra.mxu0 0.0
    %3994 = vmatpush.msra.mxu0 0.0
    %3995 = vmatpush.msra.mxu0 0.0
    %3996 = vmatpush.msra.mxu0 0.0
    %3997 = vmatpush.msra.mxu0 0.0
    %3998 = vmatpush.msra.mxu0 0.0
    %3999 = vmatpush.msra.mxu0 0.0
    %4000 = vmatpush.msra.mxu0 0.0
    %4001 = vmatpush.msra.mxu0 0.0
    %4002 = vmatpush.msra.mxu0 0.0
    %4003 = vmatpush.msra.mxu0 0.0
    %4004 = vmatpush.msra.mxu0 0.0
    %4005 = vmatpush.msra.mxu0 0.0
    %4006 = vmatpush.msra.mxu0 0.0
    %4007 = vmatpush.msra.mxu0 %v3962
    %4008 = vmatmul.f32.gmra.mxu0 %v3958
    %v4009 = vpop.f32.mrf.mxu0
    %v4010 = vadd.f32 0.0, %v4009
    %4011 = vdwg.mxu0
    %4012 = vmatpush.msra.mxu0 0.0
    %4013 = vmatpush.msra.mxu0 0.0
    %4014 = vmatpush.msra.mxu0 0.0
    %4015 = vmatpush.msra.mxu0 0.0
    %4016 = vmatpush.msra.mxu0 0.0
    %4017 = vmatpush.msra.mxu0 0.0
    %4018 = vmatpush.msra.mxu0 0.0
    %4019 = vmatpush.msra.mxu0 0.0
    %4020 = vmatpush.msra.mxu0 0.0
    %4021 = vmatpush.msra.mxu0 0.0
    %4022 = vmatpush.msra.mxu0 0.0
    %4023 = vmatpush.msra.mxu0 0.0
    %4024 = vmatpush.msra.mxu0 0.0
    %4025 = vmatpush.msra.mxu0 0.0
    %4026 = vmatpush.msra.mxu0 0.0
    %4027 = vmatpush.msra.mxu0 %v3964
    %4028 = vmatmul.f32.gmra.mxu0 %v3958
    %v4029 = vpop.f32.mrf.mxu0
    %v4030 = vadd.f32 0.0, %v4029
    %4031 = vdwg.mxu0
    %4032 = vmatpush.msra.mxu0 0.0
    %4033 = vmatpush.msra.mxu0 0.0
    %4034 = vmatpush.msra.mxu0 0.0
    %4035 = vmatpush.msra.mxu0 0.0
    %4036 = vmatpush.msra.mxu0 0.0
    %4037 = vmatpush.msra.mxu0 0.0
    %4038 = vmatpush.msra.mxu0 0.0
    %4039 = vmatpush.msra.mxu0 0.0
    %4040 = vmatpush.msra.mxu0 0.0
    %4041 = vmatpush.msra.mxu0 0.0
    %4042 = vmatpush.msra.mxu0 0.0
    %4043 = vmatpush.msra.mxu0 0.0
    %4044 = vmatpush.msra.mxu0 0.0
    %4045 = vmatpush.msra.mxu0 0.0
    %4046 = vmatpush.msra.mxu0 0.0
    %4047 = vmatpush.msra.mxu0 %v3966
    %4048 = vmatmul.f32.gmra.mxu0 %v3958
    %v4049 = vpop.f32.mrf.mxu0
    %v4050 = vadd.f32 0.0, %v4049
    %4051 = vdwg.mxu0
    %4052 = vmatpush.msra.mxu0 0.0
    %4053 = vmatpush.msra.mxu0 0.0
    %4054 = vmatpush.msra.mxu0 0.0
    %4055 = vmatpush.msra.mxu0 0.0
    %4056 = vmatpush.msra.mxu0 0.0
    %4057 = vmatpush.msra.mxu0 0.0
    %4058 = vmatpush.msra.mxu0 0.0
    %4059 = vmatpush.msra.mxu0 0.0
    %4060 = vmatpush.msra.mxu0 0.0
    %4061 = vmatpush.msra.mxu0 0.0
    %4062 = vmatpush.msra.mxu0 0.0
    %4063 = vmatpush.msra.mxu0 0.0
    %4064 = vmatpush.msra.mxu0 0.0
    %4065 = vmatpush.msra.mxu0 0.0
    %4066 = vmatpush.msra.mxu0 0.0
    %4067 = vmatpush.msra.mxu0 %v3968
    %4068 = vmatmul.f32.gmra.mxu0 %v3958
    %v4069 = vpop.f32.mrf.mxu0
    %v4070 = vadd.f32 0.0, %v4069
    %4071 = vdwg.mxu0
    %4072 = vmatpush.msra.mxu0 0.0
    %4073 = vmatpush.msra.mxu0 0.0
    %4074 = vmatpush.msra.mxu0 0.0
    %4075 = vmatpush.msra.mxu0 0.0
    %4076 = vmatpush.msra.mxu0 0.0
    %4077 = vmatpush.msra.mxu0 0.0
    %4078 = vmatpush.msra.mxu0 0.0
    %4079 = vmatpush.msra.mxu0 0.0
    %4080 = vmatpush.msra.mxu0 0.0
    %4081 = vmatpush.msra.mxu0 0.0
    %4082 = vmatpush.msra.mxu0 0.0
    %4083 = vmatpush.msra.mxu0 0.0
    %4084 = vmatpush.msra.mxu0 0.0
    %4085 = vmatpush.msra.mxu0 0.0
    %4086 = vmatpush.msra.mxu0 0.0
    %4087 = vmatpush.msra.mxu0 %v3970
    %4088 = vmatmul.f32.gmra.mxu0 %v3958
    %v4089 = vpop.f32.mrf.mxu0
    %v4090 = vadd.f32 0.0, %v4089
    %4091 = vdwg.mxu0
    %v4092 = vadd.f32 %v3908, %v3990
    %v4093 = vadd.f32 %v3909, %v4010
    %v4094 = vadd.f32 %v3910, %v4030
    %v4095 = vadd.f32 %v3911, %v4050
    %v4096 = vadd.f32 %v3912, %v4070
    %v4097 = vadd.f32 %v3913, %v4090
    %v4098 = vld [vmem:[%s739] sm:$0xf]
    %v4099 = vld [vmem:[#allocation2 + $0x4] sm:$0xff]
    %v4100 = vld [vmem:[#allocation2 + $0xc] sm:$0xff]
    %v4101 = vld [vmem:[#allocation2 + $0x14] sm:$0xff]
    %4105 = vst [vmem:[#allocation1] ss:$2 sm:$0xff] %v4099
    %s4106 = scalar_lea.vmem [#allocation1], 16
    %4107 = vst [vmem:[%s4106] ss:$2 sm:$0xff] %v4100
    %s4108 = scalar_lea.vmem [#allocation1], 32
    %4109 = vst [vmem:[%s4108] ss:$2 sm:$0xff] %v4101
    %v4110 = vld.sshfl [vmem:[#allocation1] sm:$0xff pattern:$0x75316420]
    %v4111 = vld.sshfl [vmem:[#allocation1 + $0x8] sm:$0xff pattern:$0x75316420]
    %v4112 = vld.sshfl [vmem:[#allocation1 + $0x10] sm:$0xff pattern:$0x75316420]
    %v4113 = vld.sshfl [vmem:[#allocation1 + $0x18] sm:$0xff pattern:$0x75316420]
    %v4114 = vld.sshfl [vmem:[#allocation1 + $0x20] sm:$0xff pattern:$0x75316420]
    %v4115 = vld.sshfl [vmem:[#allocation1 + $0x28] sm:$0xff pattern:$0x75316420]
    %v4117 = vsel %vm75, %v4098, 0
    %v4119 = vsel %vm34, %v4110, 0
    %v4121 = vsel %vm34, %v4111, 0
    %v4123 = vsel %vm34, %v4112, 0
    %v4125 = vsel %vm34, %v4113, 0
    %v4127 = vsel %vm34, %v4114, 0
    %v4129 = vsel %vm34, %v4115, 0
    %4131 = vmatpush.msra.mxu0 0.0
    %4132 = vmatpush.msra.mxu0 0.0
    %4133 = vmatpush.msra.mxu0 0.0
    %4134 = vmatpush.msra.mxu0 0.0
    %4135 = vmatpush.msra.mxu0 0.0
    %4136 = vmatpush.msra.mxu0 0.0
    %4137 = vmatpush.msra.mxu0 0.0
    %4138 = vmatpush.msra.mxu0 0.0
    %4139 = vmatpush.msra.mxu0 0.0
    %4140 = vmatpush.msra.mxu0 0.0
    %4141 = vmatpush.msra.mxu0 0.0
    %4142 = vmatpush.msra.mxu0 0.0
    %4143 = vmatpush.msra.mxu0 0.0
    %4144 = vmatpush.msra.mxu0 0.0
    %4145 = vmatpush.msra.mxu0 0.0
    %4146 = vmatpush.msra.mxu0 %v4119
    %4147 = vmatmul.f32.gmra.mxu0 %v4117
    %v4148 = vpop.f32.mrf.mxu0
    %v4149 = vadd.f32 0.0, %v4148
    %4150 = vdwg.mxu0
    %4151 = vmatpush.msra.mxu0 0.0
    %4152 = vmatpush.msra.mxu0 0.0
    %4153 = vmatpush.msra.mxu0 0.0
    %4154 = vmatpush.msra.mxu0 0.0
    %4155 = vmatpush.msra.mxu0 0.0
    %4156 = vmatpush.msra.mxu0 0.0
    %4157 = vmatpush.msra.mxu0 0.0
    %4158 = vmatpush.msra.mxu0 0.0
    %4159 = vmatpush.msra.mxu0 0.0
    %4160 = vmatpush.msra.mxu0 0.0
    %4161 = vmatpush.msra.mxu0 0.0
    %4162 = vmatpush.msra.mxu0 0.0
    %4163 = vmatpush.msra.mxu0 0.0
    %4164 = vmatpush.msra.mxu0 0.0
    %4165 = vmatpush.msra.mxu0 0.0
    %4166 = vmatpush.msra.mxu0 %v4121
    %4167 = vmatmul.f32.gmra.mxu0 %v4117
    %v4168 = vpop.f32.mrf.mxu0
    %v4169 = vadd.f32 0.0, %v4168
    %4170 = vdwg.mxu0
    %4171 = vmatpush.msra.mxu0 0.0
    %4172 = vmatpush.msra.mxu0 0.0
    %4173 = vmatpush.msra.mxu0 0.0
    %4174 = vmatpush.msra.mxu0 0.0
    %4175 = vmatpush.msra.mxu0 0.0
    %4176 = vmatpush.msra.mxu0 0.0
    %4177 = vmatpush.msra.mxu0 0.0
    %4178 = vmatpush.msra.mxu0 0.0
    %4179 = vmatpush.msra.mxu0 0.0
    %4180 = vmatpush.msra.mxu0 0.0
    %4181 = vmatpush.msra.mxu0 0.0
    %4182 = vmatpush.msra.mxu0 0.0
    %4183 = vmatpush.msra.mxu0 0.0
    %4184 = vmatpush.msra.mxu0 0.0
    %4185 = vmatpush.msra.mxu0 0.0
    %4186 = vmatpush.msra.mxu0 %v4123
    %4187 = vmatmul.f32.gmra.mxu0 %v4117
    %v4188 = vpop.f32.mrf.mxu0
    %v4189 = vadd.f32 0.0, %v4188
    %4190 = vdwg.mxu0
    %4191 = vmatpush.msra.mxu0 0.0
    %4192 = vmatpush.msra.mxu0 0.0
    %4193 = vmatpush.msra.mxu0 0.0
    %4194 = vmatpush.msra.mxu0 0.0
    %4195 = vmatpush.msra.mxu0 0.0
    %4196 = vmatpush.msra.mxu0 0.0
    %4197 = vmatpush.msra.mxu0 0.0
    %4198 = vmatpush.msra.mxu0 0.0
    %4199 = vmatpush.msra.mxu0 0.0
    %4200 = vmatpush.msra.mxu0 0.0
    %4201 = vmatpush.msra.mxu0 0.0
    %4202 = vmatpush.msra.mxu0 0.0
    %4203 = vmatpush.msra.mxu0 0.0
    %4204 = vmatpush.msra.mxu0 0.0
    %4205 = vmatpush.msra.mxu0 0.0
    %4206 = vmatpush.msra.mxu0 %v4125
    %4207 = vmatmul.f32.gmra.mxu0 %v4117
    %v4208 = vpop.f32.mrf.mxu0
    %v4209 = vadd.f32 0.0, %v4208
    %4210 = vdwg.mxu0
    %4211 = vmatpush.msra.mxu0 0.0
    %4212 = vmatpush.msra.mxu0 0.0
    %4213 = vmatpush.msra.mxu0 0.0
    %4214 = vmatpush.msra.mxu0 0.0
    %4215 = vmatpush.msra.mxu0 0.0
    %4216 = vmatpush.msra.mxu0 0.0
    %4217 = vmatpush.msra.mxu0 0.0
    %4218 = vmatpush.msra.mxu0 0.0
    %4219 = vmatpush.msra.mxu0 0.0
    %4220 = vmatpush.msra.mxu0 0.0
    %4221 = vmatpush.msra.mxu0 0.0
    %4222 = vmatpush.msra.mxu0 0.0
    %4223 = vmatpush.msra.mxu0 0.0
    %4224 = vmatpush.msra.mxu0 0.0
    %4225 = vmatpush.msra.mxu0 0.0
    %4226 = vmatpush.msra.mxu0 %v4127
    %4227 = vmatmul.f32.gmra.mxu0 %v4117
    %v4228 = vpop.f32.mrf.mxu0
    %v4229 = vadd.f32 0.0, %v4228
    %4230 = vdwg.mxu0
    %4231 = vmatpush.msra.mxu0 0.0
    %4232 = vmatpush.msra.mxu0 0.0
    %4233 = vmatpush.msra.mxu0 0.0
    %4234 = vmatpush.msra.mxu0 0.0
    %4235 = vmatpush.msra.mxu0 0.0
    %4236 = vmatpush.msra.mxu0 0.0
    %4237 = vmatpush.msra.mxu0 0.0
    %4238 = vmatpush.msra.mxu0 0.0
    %4239 = vmatpush.msra.mxu0 0.0
    %4240 = vmatpush.msra.mxu0 0.0
    %4241 = vmatpush.msra.mxu0 0.0
    %4242 = vmatpush.msra.mxu0 0.0
    %4243 = vmatpush.msra.mxu0 0.0
    %4244 = vmatpush.msra.mxu0 0.0
    %4245 = vmatpush.msra.mxu0 0.0
    %4246 = vmatpush.msra.mxu0 %v4129
    %4247 = vmatmul.f32.gmra.mxu0 %v4117
    %v4248 = vpop.f32.mrf.mxu0
    %v4249 = vadd.f32 0.0, %v4248
    %4250 = vdwg.mxu0
    %v4251 = vadd.f32 %v4092, %v4149
    %v4252 = vadd.f32 %v4093, %v4169
    %v4253 = vadd.f32 %v4094, %v4189
    %v4254 = vadd.f32 %v4095, %v4209
    %v4255 = vadd.f32 %v4096, %v4229
    %v4256 = vadd.f32 %v4097, %v4249
    %v4257 = vld [vmem:[%s899] sm:$0xf]
    %v4258 = vld [vmem:[#allocation2 + $0x4] sm:$0xff]
    %v4259 = vld [vmem:[#allocation2 + $0xc] sm:$0xff]
    %v4260 = vld [vmem:[#allocation2 + $0x14] sm:$0xff]
    %4264 = vst [vmem:[#allocation1] ss:$2 sm:$0xff] %v4258
    %s4265 = scalar_lea.vmem [#allocation1], 16
    %4266 = vst [vmem:[%s4265] ss:$2 sm:$0xff] %v4259
    %s4267 = scalar_lea.vmem [#allocation1], 32
    %4268 = vst [vmem:[%s4267] ss:$2 sm:$0xff] %v4260
    %v4269 = vld.sshfl [vmem:[#allocation1] sm:$0xff pattern:$0x75316420]
    %v4270 = vld.sshfl [vmem:[#allocation1 + $0x8] sm:$0xff pattern:$0x75316420]
    %v4271 = vld.sshfl [vmem:[#allocation1 + $0x10] sm:$0xff pattern:$0x75316420]
    %v4272 = vld.sshfl [vmem:[#allocation1 + $0x18] sm:$0xff pattern:$0x75316420]
    %v4273 = vld.sshfl [vmem:[#allocation1 + $0x20] sm:$0xff pattern:$0x75316420]
    %v4274 = vld.sshfl [vmem:[#allocation1 + $0x28] sm:$0xff pattern:$0x75316420]
    %4275 = vrot.lane.b32.xlu0 %v4269, 127
    %v4276 = vpop.permute.xlu0 %4275
    %4277 = vrot.lane.b32.xlu0 %v4270, 127
    %v4278 = vpop.permute.xlu0 %4277
    %4279 = vrot.lane.b32.xlu0 %v4271, 127
    %v4280 = vpop.permute.xlu0 %4279
    %4281 = vrot.lane.b32.xlu0 %v4272, 127
    %v4282 = vpop.permute.xlu0 %4281
    %4283 = vrot.lane.b32.xlu0 %v4273, 127
    %v4284 = vpop.permute.xlu0 %4283
    %4285 = vrot.lane.b32.xlu0 %v4274, 127
    %v4286 = vpop.permute.xlu0 %4285
    %v4287 = vsel %vm930, %v4276, %v4278
    %v4288 = vsel %vm930, %v4278, %v4280
    %v4289 = vsel %vm930, %v4280, %v4282
    %v4290 = vsel %vm930, %v4282, %v4284
    %v4291 = vsel %vm930, %v4284, %v4286
    %v4293 = vsel %vm75, %v4257, 0
    %v4295 = vsel %vm34, %v4287, 0
    %v4297 = vsel %vm34, %v4288, 0
    %v4299 = vsel %vm34, %v4289, 0
    %v4301 = vsel %vm34, %v4290, 0
    %v4303 = vsel %vm34, %v4291, 0
    %v4305 = vsel %vm34, %v4286, 0
    %4307 = vmatpush.msra.mxu0 0.0
    %4308 = vmatpush.msra.mxu0 0.0
    %4309 = vmatpush.msra.mxu0 0.0
    %4310 = vmatpush.msra.mxu0 0.0
    %4311 = vmatpush.msra.mxu0 0.0
    %4312 = vmatpush.msra.mxu0 0.0
    %4313 = vmatpush.msra.mxu0 0.0
    %4314 = vmatpush.msra.mxu0 0.0
    %4315 = vmatpush.msra.mxu0 0.0
    %4316 = vmatpush.msra.mxu0 0.0
    %4317 = vmatpush.msra.mxu0 0.0
    %4318 = vmatpush.msra.mxu0 0.0
    %4319 = vmatpush.msra.mxu0 0.0
    %4320 = vmatpush.msra.mxu0 0.0
    %4321 = vmatpush.msra.mxu0 0.0
    %4322 = vmatpush.msra.mxu0 %v4295
    %4323 = vmatmul.f32.gmra.mxu0 %v4293
    %v4324 = vpop.f32.mrf.mxu0
    %v4325 = vadd.f32 0.0, %v4324
    %4326 = vdwg.mxu0
    %4327 = vmatpush.msra.mxu0 0.0
    %4328 = vmatpush.msra.mxu0 0.0
    %4329 = vmatpush.msra.mxu0 0.0
    %4330 = vmatpush.msra.mxu0 0.0
    %4331 = vmatpush.msra.mxu0 0.0
    %4332 = vmatpush.msra.mxu0 0.0
    %4333 = vmatpush.msra.mxu0 0.0
    %4334 = vmatpush.msra.mxu0 0.0
    %4335 = vmatpush.msra.mxu0 0.0
    %4336 = vmatpush.msra.mxu0 0.0
    %4337 = vmatpush.msra.mxu0 0.0
    %4338 = vmatpush.msra.mxu0 0.0
    %4339 = vmatpush.msra.mxu0 0.0
    %4340 = vmatpush.msra.mxu0 0.0
    %4341 = vmatpush.msra.mxu0 0.0
    %4342 = vmatpush.msra.mxu0 %v4297
    %4343 = vmatmul.f32.gmra.mxu0 %v4293
    %v4344 = vpop.f32.mrf.mxu0
    %v4345 = vadd.f32 0.0, %v4344
    %4346 = vdwg.mxu0
    %4347 = vmatpush.msra.mxu0 0.0
    %4348 = vmatpush.msra.mxu0 0.0
    %4349 = vmatpush.msra.mxu0 0.0
    %4350 = vmatpush.msra.mxu0 0.0
    %4351 = vmatpush.msra.mxu0 0.0
    %4352 = vmatpush.msra.mxu0 0.0
    %4353 = vmatpush.msra.mxu0 0.0
    %4354 = vmatpush.msra.mxu0 0.0
    %4355 = vmatpush.msra.mxu0 0.0
    %4356 = vmatpush.msra.mxu0 0.0
    %4357 = vmatpush.msra.mxu0 0.0
    %4358 = vmatpush.msra.mxu0 0.0
    %4359 = vmatpush.msra.mxu0 0.0
    %4360 = vmatpush.msra.mxu0 0.0
    %4361 = vmatpush.msra.mxu0 0.0
    %4362 = vmatpush.msra.mxu0 %v4299
    %4363 = vmatmul.f32.gmra.mxu0 %v4293
    %v4364 = vpop.f32.mrf.mxu0
    %v4365 = vadd.f32 0.0, %v4364
    %4366 = vdwg.mxu0
    %4367 = vmatpush.msra.mxu0 0.0
    %4368 = vmatpush.msra.mxu0 0.0
    %4369 = vmatpush.msra.mxu0 0.0
    %4370 = vmatpush.msra.mxu0 0.0
    %4371 = vmatpush.msra.mxu0 0.0
    %4372 = vmatpush.msra.mxu0 0.0
    %4373 = vmatpush.msra.mxu0 0.0
    %4374 = vmatpush.msra.mxu0 0.0
    %4375 = vmatpush.msra.mxu0 0.0
    %4376 = vmatpush.msra.mxu0 0.0
    %4377 = vmatpush.msra.mxu0 0.0
    %4378 = vmatpush.msra.mxu0 0.0
    %4379 = vmatpush.msra.mxu0 0.0
    %4380 = vmatpush.msra.mxu0 0.0
    %4381 = vmatpush.msra.mxu0 0.0
    %4382 = vmatpush.msra.mxu0 %v4301
    %4383 = vmatmul.f32.gmra.mxu0 %v4293
    %v4384 = vpop.f32.mrf.mxu0
    %v4385 = vadd.f32 0.0, %v4384
    %4386 = vdwg.mxu0
    %4387 = vmatpush.msra.mxu0 0.0
    %4388 = vmatpush.msra.mxu0 0.0
    %4389 = vmatpush.msra.mxu0 0.0
    %4390 = vmatpush.msra.mxu0 0.0
    %4391 = vmatpush.msra.mxu0 0.0
    %4392 = vmatpush.msra.mxu0 0.0
    %4393 = vmatpush.msra.mxu0 0.0
    %4394 = vmatpush.msra.mxu0 0.0
    %4395 = vmatpush.msra.mxu0 0.0
    %4396 = vmatpush.msra.mxu0 0.0
    %4397 = vmatpush.msra.mxu0 0.0
    %4398 = vmatpush.msra.mxu0 0.0
    %4399 = vmatpush.msra.mxu0 0.0
    %4400 = vmatpush.msra.mxu0 0.0
    %4401 = vmatpush.msra.mxu0 0.0
    %4402 = vmatpush.msra.mxu0 %v4303
    %4403 = vmatmul.f32.gmra.mxu0 %v4293
    %v4404 = vpop.f32.mrf.mxu0
    %v4405 = vadd.f32 0.0, %v4404
    %4406 = vdwg.mxu0
    %4407 = vmatpush.msra.mxu0 0.0
    %4408 = vmatpush.msra.mxu0 0.0
    %4409 = vmatpush.msra.mxu0 0.0
    %4410 = vmatpush.msra.mxu0 0.0
    %4411 = vmatpush.msra.mxu0 0.0
    %4412 = vmatpush.msra.mxu0 0.0
    %4413 = vmatpush.msra.mxu0 0.0
    %4414 = vmatpush.msra.mxu0 0.0
    %4415 = vmatpush.msra.mxu0 0.0
    %4416 = vmatpush.msra.mxu0 0.0
    %4417 = vmatpush.msra.mxu0 0.0
    %4418 = vmatpush.msra.mxu0 0.0
    %4419 = vmatpush.msra.mxu0 0.0
    %4420 = vmatpush.msra.mxu0 0.0
    %4421 = vmatpush.msra.mxu0 0.0
    %4422 = vmatpush.msra.mxu0 %v4305
    %4423 = vmatmul.f32.gmra.mxu0 %v4293
    %v4424 = vpop.f32.mrf.mxu0
    %v4425 = vadd.f32 0.0, %v4424
    %4426 = vdwg.mxu0
    %v4427 = vadd.f32 %v4251, %v4325
    %v4428 = vadd.f32 %v4252, %v4345
    %v4429 = vadd.f32 %v4253, %v4365
    %v4430 = vadd.f32 %v4254, %v4385
    %v4431 = vadd.f32 %v4255, %v4405
    %v4432 = vadd.f32 %v4256, %v4425
    %v4433 = vld [vmem:[%s1077] sm:$0xf]
    %v4434 = vld [vmem:[#allocation2 + $0x4] sm:$0xff]
    %v4435 = vld [vmem:[#allocation2 + $0xc] sm:$0xff]
    %v4436 = vld [vmem:[#allocation2 + $0x14] sm:$0xff]
    %4440 = vst [vmem:[#allocation1] ss:$2 sm:$0xff] %v4434
    %s4441 = scalar_lea.vmem [#allocation1], 16
    %4442 = vst [vmem:[%s4441] ss:$2 sm:$0xff] %v4435
    %s4443 = scalar_lea.vmem [#allocation1], 32
    %4444 = vst [vmem:[%s4443] ss:$2 sm:$0xff] %v4436
    %v4445 = vld.sshfl [vmem:[#allocation1] sm:$0xff pattern:$0x75316420]
    %v4446 = vld.sshfl [vmem:[#allocation1 + $0x8] sm:$0xff pattern:$0x75316420]
    %v4447 = vld.sshfl [vmem:[#allocation1 + $0x10] sm:$0xff pattern:$0x75316420]
    %v4448 = vld.sshfl [vmem:[#allocation1 + $0x18] sm:$0xff pattern:$0x75316420]
    %v4449 = vld.sshfl [vmem:[#allocation1 + $0x20] sm:$0xff pattern:$0x75316420]
    %v4450 = vld.sshfl [vmem:[#allocation1 + $0x28] sm:$0xff pattern:$0x75316420]
    %4451 = vrot.lane.b32.xlu0 %v4445, 111
    %v4452 = vpop.permute.xlu0 %4451
    %4453 = vrot.lane.b32.xlu0 %v4446, 111
    %v4454 = vpop.permute.xlu0 %4453
    %4455 = vrot.lane.b32.xlu0 %v4447, 111
    %v4456 = vpop.permute.xlu0 %4455
    %4457 = vrot.lane.b32.xlu0 %v4448, 111
    %v4458 = vpop.permute.xlu0 %4457
    %4459 = vrot.lane.b32.xlu0 %v4449, 111
    %v4460 = vpop.permute.xlu0 %4459
    %4461 = vrot.lane.b32.xlu0 %v4450, 111
    %v4462 = vpop.permute.xlu0 %4461
    %v4463 = vsel %vm1108, %v4452, %v4454
    %v4464 = vsel %vm1108, %v4454, %v4456
    %v4465 = vsel %vm1108, %v4456, %v4458
    %v4466 = vsel %vm1108, %v4458, %v4460
    %v4467 = vsel %vm1108, %v4460, %v4462
    %v4469 = vsel %vm75, %v4433, 0
    %v4471 = vsel %vm34, %v4463, 0
    %v4473 = vsel %vm34, %v4464, 0
    %v4475 = vsel %vm34, %v4465, 0
    %v4477 = vsel %vm34, %v4466, 0
    %v4479 = vsel %vm34, %v4467, 0
    %v4481 = vsel %vm34, %v4462, 0
    %4483 = vmatpush.msra.mxu0 0.0
    %4484 = vmatpush.msra.mxu0 0.0
    %4485 = vmatpush.msra.mxu0 0.0
    %4486 = vmatpush.msra.mxu0 0.0
    %4487 = vmatpush.msra.mxu0 0.0
    %4488 = vmatpush.msra.mxu0 0.0
    %4489 = vmatpush.msra.mxu0 0.0
    %4490 = vmatpush.msra.mxu0 0.0
    %4491 = vmatpush.msra.mxu0 0.0
    %4492 = vmatpush.msra.mxu0 0.0
    %4493 = vmatpush.msra.mxu0 0.0
    %4494 = vmatpush.msra.mxu0 0.0
    %4495 = vmatpush.msra.mxu0 0.0
    %4496 = vmatpush.msra.mxu0 0.0
    %4497 = vmatpush.msra.mxu0 0.0
    %4498 = vmatpush.msra.mxu0 %v4471
    %4499 = vmatmul.f32.gmra.mxu0 %v4469
    %v4500 = vpop.f32.mrf.mxu0
    %v4501 = vadd.f32 0.0, %v4500
    %4502 = vdwg.mxu0
    %4503 = vmatpush.msra.mxu0 0.0
    %4504 = vmatpush.msra.mxu0 0.0
    %4505 = vmatpush.msra.mxu0 0.0
    %4506 = vmatpush.msra.mxu0 0.0
    %4507 = vmatpush.msra.mxu0 0.0
    %4508 = vmatpush.msra.mxu0 0.0
    %4509 = vmatpush.msra.mxu0 0.0
    %4510 = vmatpush.msra.mxu0 0.0
    %4511 = vmatpush.msra.mxu0 0.0
    %4512 = vmatpush.msra.mxu0 0.0
    %4513 = vmatpush.msra.mxu0 0.0
    %4514 = vmatpush.msra.mxu0 0.0
    %4515 = vmatpush.msra.mxu0 0.0
    %4516 = vmatpush.msra.mxu0 0.0
    %4517 = vmatpush.msra.mxu0 0.0
    %4518 = vmatpush.msra.mxu0 %v4473
    %4519 = vmatmul.f32.gmra.mxu0 %v4469
    %v4520 = vpop.f32.mrf.mxu0
    %v4521 = vadd.f32 0.0, %v4520
    %4522 = vdwg.mxu0
    %4523 = vmatpush.msra.mxu0 0.0
    %4524 = vmatpush.msra.mxu0 0.0
    %4525 = vmatpush.msra.mxu0 0.0
    %4526 = vmatpush.msra.mxu0 0.0
    %4527 = vmatpush.msra.mxu0 0.0
    %4528 = vmatpush.msra.mxu0 0.0
    %4529 = vmatpush.msra.mxu0 0.0
    %4530 = vmatpush.msra.mxu0 0.0
    %4531 = vmatpush.msra.mxu0 0.0
    %4532 = vmatpush.msra.mxu0 0.0
    %4533 = vmatpush.msra.mxu0 0.0
    %4534 = vmatpush.msra.mxu0 0.0
    %4535 = vmatpush.msra.mxu0 0.0
    %4536 = vmatpush.msra.mxu0 0.0
    %4537 = vmatpush.msra.mxu0 0.0
    %4538 = vmatpush.msra.mxu0 %v4475
    %4539 = vmatmul.f32.gmra.mxu0 %v4469
    %v4540 = vpop.f32.mrf.mxu0
    %v4541 = vadd.f32 0.0, %v4540
    %4542 = vdwg.mxu0
    %4543 = vmatpush.msra.mxu0 0.0
    %4544 = vmatpush.msra.mxu0 0.0
    %4545 = vmatpush.msra.mxu0 0.0
    %4546 = vmatpush.msra.mxu0 0.0
    %4547 = vmatpush.msra.mxu0 0.0
    %4548 = vmatpush.msra.mxu0 0.0
    %4549 = vmatpush.msra.mxu0 0.0
    %4550 = vmatpush.msra.mxu0 0.0
    %4551 = vmatpush.msra.mxu0 0.0
    %4552 = vmatpush.msra.mxu0 0.0
    %4553 = vmatpush.msra.mxu0 0.0
    %4554 = vmatpush.msra.mxu0 0.0
    %4555 = vmatpush.msra.mxu0 0.0
    %4556 = vmatpush.msra.mxu0 0.0
    %4557 = vmatpush.msra.mxu0 0.0
    %4558 = vmatpush.msra.mxu0 %v4477
    %4559 = vmatmul.f32.gmra.mxu0 %v4469
    %v4560 = vpop.f32.mrf.mxu0
    %v4561 = vadd.f32 0.0, %v4560
    %4562 = vdwg.mxu0
    %4563 = vmatpush.msra.mxu0 0.0
    %4564 = vmatpush.msra.mxu0 0.0
    %4565 = vmatpush.msra.mxu0 0.0
    %4566 = vmatpush.msra.mxu0 0.0
    %4567 = vmatpush.msra.mxu0 0.0
    %4568 = vmatpush.msra.mxu0 0.0
    %4569 = vmatpush.msra.mxu0 0.0
    %4570 = vmatpush.msra.mxu0 0.0
    %4571 = vmatpush.msra.mxu0 0.0
    %4572 = vmatpush.msra.mxu0 0.0
    %4573 = vmatpush.msra.mxu0 0.0
    %4574 = vmatpush.msra.mxu0 0.0
    %4575 = vmatpush.msra.mxu0 0.0
    %4576 = vmatpush.msra.mxu0 0.0
    %4577 = vmatpush.msra.mxu0 0.0
    %4578 = vmatpush.msra.mxu0 %v4479
    %4579 = vmatmul.f32.gmra.mxu0 %v4469
    %v4580 = vpop.f32.mrf.mxu0
    %v4581 = vadd.f32 0.0, %v4580
    %4582 = vdwg.mxu0
    %4583 = vmatpush.msra.mxu0 0.0
    %4584 = vmatpush.msra.mxu0 0.0
    %4585 = vmatpush.msra.mxu0 0.0
    %4586 = vmatpush.msra.mxu0 0.0
    %4587 = vmatpush.msra.mxu0 0.0
    %4588 = vmatpush.msra.mxu0 0.0
    %4589 = vmatpush.msra.mxu0 0.0
    %4590 = vmatpush.msra.mxu0 0.0
    %4591 = vmatpush.msra.mxu0 0.0
    %4592 = vmatpush.msra.mxu0 0.0
    %4593 = vmatpush.msra.mxu0 0.0
    %4594 = vmatpush.msra.mxu0 0.0
    %4595 = vmatpush.msra.mxu0 0.0
    %4596 = vmatpush.msra.mxu0 0.0
    %4597 = vmatpush.msra.mxu0 0.0
    %4598 = vmatpush.msra.mxu0 %v4481
    %4599 = vmatmul.f32.gmra.mxu0 %v4469
    %v4600 = vpop.f32.mrf.mxu0
    %v4601 = vadd.f32 0.0, %v4600
    %4602 = vdwg.mxu0
    %v4603 = vadd.f32 %v4427, %v4501
    %v4604 = vadd.f32 %v4428, %v4521
    %v4605 = vadd.f32 %v4429, %v4541
    %v4606 = vadd.f32 %v4430, %v4561
    %v4607 = vadd.f32 %v4431, %v4581
    %v4608 = vadd.f32 %v4432, %v4601
    %v4609 = vld [vmem:[%s1255] sm:$0xf]
    %v4610 = vld [vmem:[#allocation2 + $0x4] sm:$0xff]
    %v4611 = vld [vmem:[#allocation2 + $0xc] sm:$0xff]
    %v4612 = vld [vmem:[#allocation2 + $0x14] sm:$0xff]
    %4616 = vst [vmem:[#allocation1] ss:$2 sm:$0xff] %v4610
    %s4617 = scalar_lea.vmem [#allocation1], 16
    %4618 = vst [vmem:[%s4617] ss:$2 sm:$0xff] %v4611
    %s4619 = scalar_lea.vmem [#allocation1], 32
    %4620 = vst [vmem:[%s4619] ss:$2 sm:$0xff] %v4612
    %v4621 = vld.sshfl [vmem:[#allocation1] sm:$0xff pattern:$0x75316420]
    %v4622 = vld.sshfl [vmem:[#allocation1 + $0x8] sm:$0xff pattern:$0x75316420]
    %v4623 = vld.sshfl [vmem:[#allocation1 + $0x10] sm:$0xff pattern:$0x75316420]
    %v4624 = vld.sshfl [vmem:[#allocation1 + $0x18] sm:$0xff pattern:$0x75316420]
    %v4625 = vld.sshfl [vmem:[#allocation1 + $0x20] sm:$0xff pattern:$0x75316420]
    %v4626 = vld.sshfl [vmem:[#allocation1 + $0x28] sm:$0xff pattern:$0x75316420]
    %4627 = vrot.lane.b32.xlu0 %v4621, 110
    %v4628 = vpop.permute.xlu0 %4627
    %4629 = vrot.lane.b32.xlu0 %v4622, 110
    %v4630 = vpop.permute.xlu0 %4629
    %4631 = vrot.lane.b32.xlu0 %v4623, 110
    %v4632 = vpop.permute.xlu0 %4631
    %4633 = vrot.lane.b32.xlu0 %v4624, 110
    %v4634 = vpop.permute.xlu0 %4633
    %4635 = vrot.lane.b32.xlu0 %v4625, 110
    %v4636 = vpop.permute.xlu0 %4635
    %4637 = vrot.lane.b32.xlu0 %v4626, 110
    %v4638 = vpop.permute.xlu0 %4637
    %v4639 = vsel %vm1286, %v4628, %v4630
    %v4640 = vsel %vm1286, %v4630, %v4632
    %v4641 = vsel %vm1286, %v4632, %v4634
    %v4642 = vsel %vm1286, %v4634, %v4636
    %v4643 = vsel %vm1286, %v4636, %v4638
    %v4645 = vsel %vm75, %v4609, 0
    %v4647 = vsel %vm34, %v4639, 0
    %v4649 = vsel %vm34, %v4640, 0
    %v4651 = vsel %vm34, %v4641, 0
    %v4653 = vsel %vm34, %v4642, 0
    %v4655 = vsel %vm34, %v4643, 0
    %v4657 = vsel %vm34, %v4638, 0
    %4659 = vmatpush.msra.mxu0 0.0
    %4660 = vmatpush.msra.mxu0 0.0
    %4661 = vmatpush.msra.mxu0 0.0
    %4662 = vmatpush.msra.mxu0 0.0
    %4663 = vmatpush.msra.mxu0 0.0
    %4664 = vmatpush.msra.mxu0 0.0
    %4665 = vmatpush.msra.mxu0 0.0
    %4666 = vmatpush.msra.mxu0 0.0
    %4667 = vmatpush.msra.mxu0 0.0
    %4668 = vmatpush.msra.mxu0 0.0
    %4669 = vmatpush.msra.mxu0 0.0
    %4670 = vmatpush.msra.mxu0 0.0
    %4671 = vmatpush.msra.mxu0 0.0
    %4672 = vmatpush.msra.mxu0 0.0
    %4673 = vmatpush.msra.mxu0 0.0
    %4674 = vmatpush.msra.mxu0 %v4647
    %4675 = vmatmul.f32.gmra.mxu0 %v4645
    %v4676 = vpop.f32.mrf.mxu0
    %v4677 = vadd.f32 0.0, %v4676
    %4678 = vdwg.mxu0
    %4679 = vmatpush.msra.mxu0 0.0
    %4680 = vmatpush.msra.mxu0 0.0
    %4681 = vmatpush.msra.mxu0 0.0
    %4682 = vmatpush.msra.mxu0 0.0
    %4683 = vmatpush.msra.mxu0 0.0
    %4684 = vmatpush.msra.mxu0 0.0
    %4685 = vmatpush.msra.mxu0 0.0
    %4686 = vmatpush.msra.mxu0 0.0
    %4687 = vmatpush.msra.mxu0 0.0
    %4688 = vmatpush.msra.mxu0 0.0
    %4689 = vmatpush.msra.mxu0 0.0
    %4690 = vmatpush.msra.mxu0 0.0
    %4691 = vmatpush.msra.mxu0 0.0
    %4692 = vmatpush.msra.mxu0 0.0
    %4693 = vmatpush.msra.mxu0 0.0
    %4694 = vmatpush.msra.mxu0 %v4649
    %4695 = vmatmul.f32.gmra.mxu0 %v4645
    %v4696 = vpop.f32.mrf.mxu0
    %v4697 = vadd.f32 0.0, %v4696
    %4698 = vdwg.mxu0
    %4699 = vmatpush.msra.mxu0 0.0
    %4700 = vmatpush.msra.mxu0 0.0
    %4701 = vmatpush.msra.mxu0 0.0
    %4702 = vmatpush.msra.mxu0 0.0
    %4703 = vmatpush.msra.mxu0 0.0
    %4704 = vmatpush.msra.mxu0 0.0
    %4705 = vmatpush.msra.mxu0 0.0
    %4706 = vmatpush.msra.mxu0 0.0
    %4707 = vmatpush.msra.mxu0 0.0
    %4708 = vmatpush.msra.mxu0 0.0
    %4709 = vmatpush.msra.mxu0 0.0
    %4710 = vmatpush.msra.mxu0 0.0
    %4711 = vmatpush.msra.mxu0 0.0
    %4712 = vmatpush.msra.mxu0 0.0
    %4713 = vmatpush.msra.mxu0 0.0
    %4714 = vmatpush.msra.mxu0 %v4651
    %4715 = vmatmul.f32.gmra.mxu0 %v4645
    %v4716 = vpop.f32.mrf.mxu0
    %v4717 = vadd.f32 0.0, %v4716
    %4718 = vdwg.mxu0
    %4719 = vmatpush.msra.mxu0 0.0
    %4720 = vmatpush.msra.mxu0 0.0
    %4721 = vmatpush.msra.mxu0 0.0
    %4722 = vmatpush.msra.mxu0 0.0
    %4723 = vmatpush.msra.mxu0 0.0
    %4724 = vmatpush.msra.mxu0 0.0
    %4725 = vmatpush.msra.mxu0 0.0
    %4726 = vmatpush.msra.mxu0 0.0
    %4727 = vmatpush.msra.mxu0 0.0
    %4728 = vmatpush.msra.mxu0 0.0
    %4729 = vmatpush.msra.mxu0 0.0
    %4730 = vmatpush.msra.mxu0 0.0
    %4731 = vmatpush.msra.mxu0 0.0
    %4732 = vmatpush.msra.mxu0 0.0
    %4733 = vmatpush.msra.mxu0 0.0
    %4734 = vmatpush.msra.mxu0 %v4653
    %4735 = vmatmul.f32.gmra.mxu0 %v4645
    %v4736 = vpop.f32.mrf.mxu0
    %v4737 = vadd.f32 0.0, %v4736
    %4738 = vdwg.mxu0
    %4739 = vmatpush.msra.mxu0 0.0
    %4740 = vmatpush.msra.mxu0 0.0
    %4741 = vmatpush.msra.mxu0 0.0
    %4742 = vmatpush.msra.mxu0 0.0
    %4743 = vmatpush.msra.mxu0 0.0
    %4744 = vmatpush.msra.mxu0 0.0
    %4745 = vmatpush.msra.mxu0 0.0
    %4746 = vmatpush.msra.mxu0 0.0
    %4747 = vmatpush.msra.mxu0 0.0
    %4748 = vmatpush.msra.mxu0 0.0
    %4749 = vmatpush.msra.mxu0 0.0
    %4750 = vmatpush.msra.mxu0 0.0
    %4751 = vmatpush.msra.mxu0 0.0
    %4752 = vmatpush.msra.mxu0 0.0
    %4753 = vmatpush.msra.mxu0 0.0
    %4754 = vmatpush.msra.mxu0 %v4655
    %4755 = vmatmul.f32.gmra.mxu0 %v4645
    %v4756 = vpop.f32.mrf.mxu0
    %v4757 = vadd.f32 0.0, %v4756
    %4758 = vdwg.mxu0
    %4759 = vmatpush.msra.mxu0 0.0
    %4760 = vmatpush.msra.mxu0 0.0
    %4761 = vmatpush.msra.mxu0 0.0
    %4762 = vmatpush.msra.mxu0 0.0
    %4763 = vmatpush.msra.mxu0 0.0
    %4764 = vmatpush.msra.mxu0 0.0
    %4765 = vmatpush.msra.mxu0 0.0
    %4766 = vmatpush.msra.mxu0 0.0
    %4767 = vmatpush.msra.mxu0 0.0
    %4768 = vmatpush.msra.mxu0 0.0
    %4769 = vmatpush.msra.mxu0 0.0
    %4770 = vmatpush.msra.mxu0 0.0
    %4771 = vmatpush.msra.mxu0 0.0
    %4772 = vmatpush.msra.mxu0 0.0
    %4773 = vmatpush.msra.mxu0 0.0
    %4774 = vmatpush.msra.mxu0 %v4657
    %4775 = vmatmul.f32.gmra.mxu0 %v4645
    %v4776 = vpop.f32.mrf.mxu0
    %v4777 = vadd.f32 0.0, %v4776
    %4778 = vdwg.mxu0
    %v4779 = vadd.f32 %v4603, %v4677
    %v4780 = vadd.f32 %v4604, %v4697
    %v4781 = vadd.f32 %v4605, %v4717
    %v4782 = vadd.f32 %v4606, %v4737
    %v4783 = vadd.f32 %v4607, %v4757
    %v4784 = vadd.f32 %v4608, %v4777
    %v4785 = vld [vmem:[%s1433] sm:$0xf]
    %v4786 = vld [vmem:[#allocation2 + $0x4] sm:$0xff]
    %v4787 = vld [vmem:[#allocation2 + $0xc] sm:$0xff]
    %v4788 = vld [vmem:[#allocation2 + $0x14] sm:$0xff]
    %4792 = vst [vmem:[#allocation1] ss:$2 sm:$0xff] %v4786
    %s4793 = scalar_lea.vmem [#allocation1], 16
    %4794 = vst [vmem:[%s4793] ss:$2 sm:$0xff] %v4787
    %s4795 = scalar_lea.vmem [#allocation1], 32
    %4796 = vst [vmem:[%s4795] ss:$2 sm:$0xff] %v4788
    %v4797 = vld.sshfl [vmem:[#allocation1] sm:$0xff pattern:$0x75316420]
    %v4798 = vld.sshfl [vmem:[#allocation1 + $0x8] sm:$0xff pattern:$0x75316420]
    %v4799 = vld.sshfl [vmem:[#allocation1 + $0x10] sm:$0xff pattern:$0x75316420]
    %v4800 = vld.sshfl [vmem:[#allocation1 + $0x18] sm:$0xff pattern:$0x75316420]
    %v4801 = vld.sshfl [vmem:[#allocation1 + $0x20] sm:$0xff pattern:$0x75316420]
    %v4802 = vld.sshfl [vmem:[#allocation1 + $0x28] sm:$0xff pattern:$0x75316420]
    %4803 = vrot.lane.b32.xlu0 %v4797, 109
    %v4804 = vpop.permute.xlu0 %4803
    %4805 = vrot.lane.b32.xlu0 %v4798, 109
    %v4806 = vpop.permute.xlu0 %4805
    %4807 = vrot.lane.b32.xlu0 %v4799, 109
    %v4808 = vpop.permute.xlu0 %4807
    %4809 = vrot.lane.b32.xlu0 %v4800, 109
    %v4810 = vpop.permute.xlu0 %4809
    %4811 = vrot.lane.b32.xlu0 %v4801, 109
    %v4812 = vpop.permute.xlu0 %4811
    %4813 = vrot.lane.b32.xlu0 %v4802, 109
    %v4814 = vpop.permute.xlu0 %4813
    %v4815 = vsel %vm1464, %v4804, %v4806
    %v4816 = vsel %vm1464, %v4806, %v4808
    %v4817 = vsel %vm1464, %v4808, %v4810
    %v4818 = vsel %vm1464, %v4810, %v4812
    %v4819 = vsel %vm1464, %v4812, %v4814
    %v4821 = vsel %vm75, %v4785, 0
    %v4823 = vsel %vm34, %v4815, 0
    %v4825 = vsel %vm34, %v4816, 0
    %v4827 = vsel %vm34, %v4817, 0
    %v4829 = vsel %vm34, %v4818, 0
    %v4831 = vsel %vm34, %v4819, 0
    %v4833 = vsel %vm34, %v4814, 0
    %4835 = vmatpush.msra.mxu0 0.0
    %4836 = vmatpush.msra.mxu0 0.0
    %4837 = vmatpush.msra.mxu0 0.0
    %4838 = vmatpush.msra.mxu0 0.0
    %4839 = vmatpush.msra.mxu0 0.0
    %4840 = vmatpush.msra.mxu0 0.0
    %4841 = vmatpush.msra.mxu0 0.0
    %4842 = vmatpush.msra.mxu0 0.0
    %4843 = vmatpush.msra.mxu0 0.0
    %4844 = vmatpush.msra.mxu0 0.0
    %4845 = vmatpush.msra.mxu0 0.0
    %4846 = vmatpush.msra.mxu0 0.0
    %4847 = vmatpush.msra.mxu0 0.0
    %4848 = vmatpush.msra.mxu0 0.0
    %4849 = vmatpush.msra.mxu0 0.0
    %4850 = vmatpush.msra.mxu0 %v4823
    %4851 = vmatmul.f32.gmra.mxu0 %v4821
    %v4852 = vpop.f32.mrf.mxu0
    %v4853 = vadd.f32 0.0, %v4852
    %4854 = vdwg.mxu0
    %4855 = vmatpush.msra.mxu0 0.0
    %4856 = vmatpush.msra.mxu0 0.0
    %4857 = vmatpush.msra.mxu0 0.0
    %4858 = vmatpush.msra.mxu0 0.0
    %4859 = vmatpush.msra.mxu0 0.0
    %4860 = vmatpush.msra.mxu0 0.0
    %4861 = vmatpush.msra.mxu0 0.0
    %4862 = vmatpush.msra.mxu0 0.0
    %4863 = vmatpush.msra.mxu0 0.0
    %4864 = vmatpush.msra.mxu0 0.0
    %4865 = vmatpush.msra.mxu0 0.0
    %4866 = vmatpush.msra.mxu0 0.0
    %4867 = vmatpush.msra.mxu0 0.0
    %4868 = vmatpush.msra.mxu0 0.0
    %4869 = vmatpush.msra.mxu0 0.0
    %4870 = vmatpush.msra.mxu0 %v4825
    %4871 = vmatmul.f32.gmra.mxu0 %v4821
    %v4872 = vpop.f32.mrf.mxu0
    %v4873 = vadd.f32 0.0, %v4872
    %4874 = vdwg.mxu0
    %4875 = vmatpush.msra.mxu0 0.0
    %4876 = vmatpush.msra.mxu0 0.0
    %4877 = vmatpush.msra.mxu0 0.0
    %4878 = vmatpush.msra.mxu0 0.0
    %4879 = vmatpush.msra.mxu0 0.0
    %4880 = vmatpush.msra.mxu0 0.0
    %4881 = vmatpush.msra.mxu0 0.0
    %4882 = vmatpush.msra.mxu0 0.0
    %4883 = vmatpush.msra.mxu0 0.0
    %4884 = vmatpush.msra.mxu0 0.0
    %4885 = vmatpush.msra.mxu0 0.0
    %4886 = vmatpush.msra.mxu0 0.0
    %4887 = vmatpush.msra.mxu0 0.0
    %4888 = vmatpush.msra.mxu0 0.0
    %4889 = vmatpush.msra.mxu0 0.0
    %4890 = vmatpush.msra.mxu0 %v4827
    %4891 = vmatmul.f32.gmra.mxu0 %v4821
    %v4892 = vpop.f32.mrf.mxu0
    %v4893 = vadd.f32 0.0, %v4892
    %4894 = vdwg.mxu0
    %4895 = vmatpush.msra.mxu0 0.0
    %4896 = vmatpush.msra.mxu0 0.0
    %4897 = vmatpush.msra.mxu0 0.0
    %4898 = vmatpush.msra.mxu0 0.0
    %4899 = vmatpush.msra.mxu0 0.0
    %4900 = vmatpush.msra.mxu0 0.0
    %4901 = vmatpush.msra.mxu0 0.0
    %4902 = vmatpush.msra.mxu0 0.0
    %4903 = vmatpush.msra.mxu0 0.0
    %4904 = vmatpush.msra.mxu0 0.0
    %4905 = vmatpush.msra.mxu0 0.0
    %4906 = vmatpush.msra.mxu0 0.0
    %4907 = vmatpush.msra.mxu0 0.0
    %4908 = vmatpush.msra.mxu0 0.0
    %4909 = vmatpush.msra.mxu0 0.0
    %4910 = vmatpush.msra.mxu0 %v4829
    %4911 = vmatmul.f32.gmra.mxu0 %v4821
    %v4912 = vpop.f32.mrf.mxu0
    %v4913 = vadd.f32 0.0, %v4912
    %4914 = vdwg.mxu0
    %4915 = vmatpush.msra.mxu0 0.0
    %4916 = vmatpush.msra.mxu0 0.0
    %4917 = vmatpush.msra.mxu0 0.0
    %4918 = vmatpush.msra.mxu0 0.0
    %4919 = vmatpush.msra.mxu0 0.0
    %4920 = vmatpush.msra.mxu0 0.0
    %4921 = vmatpush.msra.mxu0 0.0
    %4922 = vmatpush.msra.mxu0 0.0
    %4923 = vmatpush.msra.mxu0 0.0
    %4924 = vmatpush.msra.mxu0 0.0
    %4925 = vmatpush.msra.mxu0 0.0
    %4926 = vmatpush.msra.mxu0 0.0
    %4927 = vmatpush.msra.mxu0 0.0
    %4928 = vmatpush.msra.mxu0 0.0
    %4929 = vmatpush.msra.mxu0 0.0
    %4930 = vmatpush.msra.mxu0 %v4831
    %4931 = vmatmul.f32.gmra.mxu0 %v4821
    %v4932 = vpop.f32.mrf.mxu0
    %v4933 = vadd.f32 0.0, %v4932
    %4934 = vdwg.mxu0
    %4935 = vmatpush.msra.mxu0 0.0
    %4936 = vmatpush.msra.mxu0 0.0
    %4937 = vmatpush.msra.mxu0 0.0
    %4938 = vmatpush.msra.mxu0 0.0
    %4939 = vmatpush.msra.mxu0 0.0
    %4940 = vmatpush.msra.mxu0 0.0
    %4941 = vmatpush.msra.mxu0 0.0
    %4942 = vmatpush.msra.mxu0 0.0
    %4943 = vmatpush.msra.mxu0 0.0
    %4944 = vmatpush.msra.mxu0 0.0
    %4945 = vmatpush.msra.mxu0 0.0
    %4946 = vmatpush.msra.mxu0 0.0
    %4947 = vmatpush.msra.mxu0 0.0
    %4948 = vmatpush.msra.mxu0 0.0
    %4949 = vmatpush.msra.mxu0 0.0
    %4950 = vmatpush.msra.mxu0 %v4833
    %4951 = vmatmul.f32.gmra.mxu0 %v4821
    %v4952 = vpop.f32.mrf.mxu0
    %v4953 = vadd.f32 0.0, %v4952
    %4954 = vdwg.mxu0
    %v4955 = vadd.f32 %v4779, %v4853
    %v4956 = vadd.f32 %v4780, %v4873
    %v4957 = vadd.f32 %v4781, %v4893
    %v4958 = vadd.f32 %v4782, %v4913
    %v4959 = vadd.f32 %v4783, %v4933
    %v4960 = vadd.f32 %v4784, %v4953
    %v4961 = vmul.f32 %v4955, %v1612
    %v4962 = vmul.f32 %v4956, %v1613
    %v4963 = vmul.f32 %v4957, %v1614
    %v4964 = vmul.f32 %v4958, %v1615
    %v4965 = vmul.f32 %v4959, %v1616
    %v4966 = vmul.f32 %v4960, %v1617
    %v4967 = vsel %vm34, %v4961, 0.0
    %v4968 = vsel %vm34, %v4962, 0.0
    %v4969 = vadd.f32 %v4967, %v4968
    %v4970 = vsel %vm34, %v4963, 0.0
    %v4971 = vadd.f32 %v4969, %v4970
    %v4972 = vsel %vm34, %v4964, 0.0
    %v4973 = vadd.f32 %v4971, %v4972
    %v4974 = vsel %vm34, %v4965, 0.0
    %v4975 = vadd.f32 %v4973, %v4974
    %v4976 = vsel %vm1639, %v4966, 0.0
    %v4977 = vadd.f32 %v4975, %v4976
    %4978 = vadd.xlane.f32.xlu0 %v4977
    %v4979 = vpop.xlane.xlu0 %4978
    %v4980 = vmul.f32 %v4979, 0.001953125
    %v4981 = vmul.f32 %v4961, %v4961
    %v4982 = vmul.f32 %v4962, %v4962
    %v4983 = vmul.f32 %v4963, %v4963
    %v4984 = vmul.f32 %v4964, %v4964
    %v4985 = vmul.f32 %v4965, %v4965
    %v4986 = vmul.f32 %v4966, %v4966
    %v4987 = vsel %vm34, %v4981, 0.0
    %v4988 = vsel %vm34, %v4982, 0.0
    %v4989 = vadd.f32 %v4987, %v4988
    %v4990 = vsel %vm34, %v4983, 0.0
    %v4991 = vadd.f32 %v4989, %v4990
    %v4992 = vsel %vm34, %v4984, 0.0
    %v4993 = vadd.f32 %v4991, %v4992
    %v4994 = vsel %vm34, %v4985, 0.0
    %v4995 = vadd.f32 %v4993, %v4994
    %v4996 = vsel %vm1639, %v4986, 0.0
    %v4997 = vadd.f32 %v4995, %v4996
    %4998 = vadd.xlane.f32.xlu0 %v4997
    %v4999 = vpop.xlane.xlu0 %4998
    %v5000 = vmul.f32 %v4999, 0.001953125
    %v5001 = vmul.f32 %v4980, %v4980
    %v5002 = vsub.f32 %v5000, %v5001
    %v5003 = vadd.f32 %v5002, 1e-05
    %v5004 = vrsqrt.pop %v5003
    %v5005 = vmul.f32 %v5004, %v5003
    %v5006 = vmul.f32 %v5005, %v5004
    %v5007 = vmul.f32 0.5, %v5006
    %v5008 = vsub.f32 1.5, %v5007
    %v5009 = vmul.f32 %v5004, %v5008
    %vm5010 = vweird.f32 %v5003
    %vm5011 = vweird.f32 %v5004
    %vm5012 = vmor %vm5010, %vm5011
    %v5013 = vsel %vm5012, %v5004, %v5009
    %v5014 = vmul.f32 %v21, %v5013
    %v5015 = vmul.f32 %v4980, %v5014
    %v5016 = vsub.f32 %v22, %v5015
    %5018 = vset.pattern.permute.xlu0 0
    %5019 = vperm.xlu0 %5018, %v5014
    %v5020 = vpop.permute.xlu0 %5019
    %v5022 = vmul.f32 %v4961, %v5020
    %v5023 = vmul.f32 %v4962, %v5020
    %v5024 = vmul.f32 %v4963, %v5020
    %v5025 = vmul.f32 %v4964, %v5020
    %v5026 = vmul.f32 %v4965, %v5020
    %v5027 = vmul.f32 %v4966, %v5020
    %5029 = vset.pattern.permute.xlu0 0
    %5030 = vperm.xlu0 %5029, %v5016
    %v5031 = vpop.permute.xlu0 %5030
    %v5033 = vadd.f32 %v5022, %v5031
    %v5034 = vadd.f32 %v5023, %v5031
    %v5035 = vadd.f32 %v5024, %v5031
    %v5036 = vadd.f32 %v5025, %v5031
    %v5037 = vadd.f32 %v5026, %v5031
    %v5038 = vadd.f32 %v5027, %v5031
    %v5039 = vmax.f32 %v5033, 0.0
    %v5040 = vmax.f32 %v5034, 0.0
    %v5041 = vmax.f32 %v5035, 0.0
    %v5042 = vmax.f32 %v5036, 0.0
    %v5043 = vmax.f32 %v5037, 0.0
    %v5044 = vmax.f32 %v5038, 0.0
    %v5045 = vmul.f32 %v5039, %v1612
    %v5046 = vmul.f32 %v5040, %v1613
    %v5047 = vmul.f32 %v5041, %v1614
    %v5048 = vmul.f32 %v5042, %v1615
    %v5049 = vmul.f32 %v5043, %v1616
    %v5050 = vmul.f32 %v5044, %v1617
    %v5057 = vrot.slane %v5046, 4
    %v5058 = vrot.slane %v5048, 4
    %v5059 = vrot.slane %v5050, 4
    %v5060 = vsel %vm34, %v5045, %v5057
    %v5061 = vsel %vm34, %v5047, %v5058
    %v5062 = vsel %vm34, %v5049, %v5059
    %5066 = vst [vmem:[#allocation3] sm:$0xff] %v5060
    %5067 = vst [vmem:[#allocation3 + $0x8] sm:$0xff] %v5061
    %5068 = vst.msk [vmem:[#allocation3 + $0x10] sm:$0xff] %vm35, %v5062
    // Predicated region
    $region22: #{tpu_custom_call.1} parent=1 // pred_check
      _
    $region23: #{tpu_custom_call.1} parent=1 // pred_check_branch
      %5070 = sbr.rel (0) target = $region25
    $region24: #{tpu_custom_call.1} parent=1 // pred_region
      %5072 = vsyncadd [#allocation4], 0
      %s5074 = sshll.u32 [#allocation3], 4
      %s5075 = int_to_ptr.vmem [resolvable:$true] %s5074
      %s5076 = sshll.u32 %s5, 4
      %s5077 = int_to_ptr.hbm [resolvable:$true] %s5076
      %5079 = dma.vmem_to_hbm [thread:$0]  %s5075, 384, %s5077, [#allocation4]
    $region25: #{tpu_custom_call.1} parent=1 // pred_fallthru
      _
    // Predicated region
    $region26: #{tpu_custom_call.1} parent=1 // pred_check
      _
    $region27: #{tpu_custom_call.1} parent=1 // pred_check_branch
      %5081 = sbr.rel (0) target = $region29
    $region28: #{tpu_custom_call.1} parent=1 // pred_region
      %5083 = dma.done [#allocation4], 384
    $region29: #{tpu_custom_call.1} parent=1 // pred_fallthru
      _
    %5084 = vsyncpa [#allocation4], 1

</llo_original>
